<compile_context>
chip_gen: v6e
topology: v6e:2x2x1
jax: 0.10.0
libtpu: 0.0.40
codegen_flags: <defaults>
</compile_context>

<pallas_src>
import numpy as np
import jax
import jax.numpy as jnp
from jax import lax
from jax.experimental import pallas as pl
from jax.experimental.pallas import tpu as pltpu

B_J0 = 0.01     # b_j0
BETA = 1.8      # isAdapt=1
DT = 1.0
R_M = 1.0

LANE = 128
SUBLANE = 8


def _round_up(x, m):
    return (x + m - 1) // m * m


def _pad2(a, rows, cols):
    return jnp.pad(a, ((0, rows - a.shape[0]), (0, cols - a.shape[1])))


def _srnn_kernel(ff_ref,
                 mem1_0, spk1_0, rec1_0, mem2_0, spk2_0, rec2_0, memo_0,
                 wA_ref, wB_ref, b2_ref, bo_ref,
                 alpha1_ref, ro1_ref, alpha2_ref, ro2_ref, alphao_ref,
                 spk1_seq, mem1_seq, memo_seq,
                 mem1_s, spk1_s, b1_s, rec1_s,
                 mem2_s, spk2_s, b2_s, rec2_s, memo_s):
    Tt, Bp, H1p = ff_ref.shape
    H2p = mem2_s.shape[1]
    Op = memo_s.shape[1]
    f32 = jnp.float32
    bf16 = jnp.bfloat16

    # State init on the first (sequential) grid step only.
    @pl.when(pl.program_id(0) == 0)
    def _init():
        mem1_s[...] = mem1_0[...]
        spk1_s[...] = spk1_0[...]
        b1_s[...] = jnp.full(b1_s.shape, B_J0, f32)
        rec1_s[...] = rec1_0[...]
        mem2_s[...] = mem2_0[...]
        spk2_s[...] = spk2_0[...]
        b2_s[...] = jnp.full(b2_s.shape, B_J0, f32)
        rec2_s[...] = rec2_0[...]
        memo_s[...] = memo_0[...]

    # Small (1 vreg each) broadcast constants hoisted out of the time loop.
    # (The 64 KB weight panels are NOT hoisted into vregs — they are loaded
    #  at the dot so the register file is not burned on loop invariants.)
    bias2 = jnp.broadcast_to(b2_ref[...], (Bp, H2p))
    biaso = jnp.broadcast_to(bo_ref[...], (Bp, Op))
    a1 = jnp.broadcast_to(alpha1_ref[...], (Bp, H1p)); oma1 = 1.0 - a1
    r1 = jnp.broadcast_to(ro1_ref[...], (Bp, H1p));    omr1 = 1.0 - r1
    a2 = jnp.broadcast_to(alpha2_ref[...], (Bp, H2p)); oma2 = 1.0 - a2
    r2 = jnp.broadcast_to(ro2_ref[...], (Bp, H2p));    omr2 = 1.0 - r2
    ao = jnp.broadcast_to(alphao_ref[...], (Bp, Op));  omao = 1.0 - ao

    def step(tt, carry):
        (mem1, spk1, b1, rec1, mem2, spk2, b2, rec2, memo) = carry

        # ---- layer 1: only VPU work — the recurrent matmul contribution
        # `rec1` was produced by the previous step's fused MXU pass (or by the
        # wrapper for t == 0), and the feed-forward term `ff` was hoisted.
        h1_in = ff_ref[tt] + rec1
        b1 = r1 * b1 + omr1 * spk1
        th1 = B_J0 + BETA * b1
        mem1 = mem1 * a1 + oma1 * (R_M * h1_in) - th1 * spk1 * DT
        spk1_new = (mem1 - th1 > 0).astype(f32)        # strict '>' (ActFun_adp)

        # ---- fused MXU pass #1: spk1 @ [W_h1h2 | W_h1h1]  (8,128)@(128,256)
        f1 = jnp.dot(spk1_new.astype(bf16), wA_ref[...],
                     preferred_element_type=f32)
        h2_part = f1[:, :H2p]          # this step's layer-2 input
        rec1 = f1[:, H2p:]             # NEXT step's layer-1 recurrence

        # ---- layer 2 ----
        h2_in = h2_part + rec2 + bias2
        b2 = r2 * b2 + omr2 * spk2
        th2 = B_J0 + BETA * b2
        mem2 = mem2 * a2 + oma2 * (R_M * h2_in) - th2 * spk2 * DT
        spk2_new = (mem2 - th2 > 0).astype(f32)

        # ---- fused MXU pass #2: spk2 @ [W_h2o | W_h2h2]  (8,128)@(128,256)
        f2 = jnp.dot(spk2_new.astype(bf16), wB_ref[...],
                     preferred_element_type=f32)
        o_in = f2[:, :Op] + biaso      # this step's readout input
        rec2 = f2[:, Op:]              # NEXT step's layer-2 recurrence

        # ---- readout: leaky integrator (no spike) ----
        memo = memo * ao + omao * (R_M * o_in)

        # per-step traces into lane-dense (Tt, Bp, 128) output blocks
        spk1_seq[tt] = spk1_new
        mem1_seq[tt] = mem1
        memo_seq[tt] = memo
        return (mem1, spk1_new, b1, rec1, mem2, spk2_new, b2, rec2, memo)

    carry0 = (mem1_s[...], spk1_s[...], b1_s[...], rec1_s[...],
              mem2_s[...], spk2_s[...], b2_s[...], rec2_s[...], memo_s[...])
    # Bounded unroll keeps LLO visibility without exploding live ranges.
    carry = lax.fori_loop(0, Tt, step, carry0, unroll=min(Tt, 8))
    (mem1_s[...], spk1_s[...], b1_s[...], rec1_s[...],
     mem2_s[...], spk2_s[...], b2_s[...], rec2_s[...], memo_s[...]) = carry


def srnn_forward(x_tbd, init_states, params, *, time_block=None):
    """x_tbd: (T, B, D) float32 (time-major).

    Returns (output, spike1_seq, mem1_seq, h2o_mem_seq) matching
    RNN_custom.forward (trace lists stacked over time).
    """
    f32 = jnp.float32
    bf16 = jnp.bfloat16
    hp = lax.Precision.HIGHEST
    T, B, D = x_tbd.shape
    H1 = params["w_h1h1"].shape[0]
    H2 = params["w_h2h2"].shape[0]
    O = params["w_h2o"].shape[1]

    Bp = _round_up(B, SUBLANE)
    H1p = _round_up(H1, LANE)
    H2p = _round_up(H2, LANE)
    Op = _round_up(O, LANE)
    if time_block is None:
        # Keep double-buffered (ff + 3 trace) slabs well under the default
        # scoped VMEM on all of v5e/v6e/v7x while amortising grid overhead.
        time_block = 256
    Tt = min(time_block, T)
    Tp = _round_up(T, Tt)

    # ---- hoisted, time-invariant input projection (one big GEMM, M=T*B) ----
    # NOTE: with the biases folded here the kernel adds (b_ih1+b_h1h1) once;
    # identical to the reference when biases are zero (as in RNN_custom init).
    x2d = x_tbd.astype(f32).reshape(T * B, D)
    ff = (jnp.dot(x2d, params["w_ih1"], precision=hp)
          + (params["b_ih1"] + params["b_h1h1"])).reshape(T, B, H1)
    ff_p = jnp.pad(ff, ((0, Tp - T), (0, Bp - B), (0, H1p - H1)))

    # ---- N-fused recurrent weight panels, bf16 MXU operands ----------------
    wA = jnp.concatenate([_pad2(params["w_h1h2"], H1p, H2p),
                          _pad2(params["w_h1h1"], H1p, H1p)], axis=1).astype(bf16)
    wB = jnp.concatenate([_pad2(params["w_h2o"], H2p, Op),
                          _pad2(params["w_h2h2"], H2p, H2p)], axis=1).astype(bf16)
    bias2 = _pad2(params["b_h1h2"] + params["b_h2h2"], 1, H2p)
    biaso = _pad2(params["b_h2o"], 1, Op)

    # time-invariant transcendentals hoisted out of the kernel entirely
    alpha1 = _pad2(jnp.exp(-DT / params["tau_m_h1"]), 1, H1p)
    ro1 = _pad2(jnp.exp(-DT / params["tau_adp_h1"]), 1, H1p)
    alpha2 = _pad2(jnp.exp(-DT / params["tau_m_h2"]), 1, H2p)
    ro2 = _pad2(jnp.exp(-DT / params["tau_adp_h2"]), 1, H2p)
    alphao = _pad2(jnp.exp(-DT / params["tau_m_o"]), 1, Op)

    # initial recurrent contributions (t=0 "spikes" are torch.rand, i.e. not
    # binary, so do their matmul here at full f32 precision, once)
    rec1_0 = _pad2(jnp.dot(init_states["spk1"], params["w_h1h1"], precision=hp),
                   Bp, H1p)
    rec2_0 = _pad2(jnp.dot(init_states["spk2"], params["w_h2h2"], precision=hp),
                   Bp, H2p)

    mem1_0 = _pad2(init_states["mem1"], Bp, H1p)
    spk1_0 = _pad2(init_states["spk1"], Bp, H1p)
    mem2_0 = _pad2(init_states["mem2"], Bp, H2p)
    spk2_0 = _pad2(init_states["spk2"], Bp, H2p)
    memo_0 = _pad2(init_states["memo"], Bp, Op)

    def const2(r, c):
        return pl.BlockSpec((r, c), lambda t: (0, 0))

    def seq3(r, c):
        return pl.BlockSpec((Tt, r, c), lambda t: (t, 0, 0))

    grid_spec = pltpu.PrefetchScalarGridSpec(
        num_scalar_prefetch=0,
        grid=(Tp // Tt,),
        in_specs=[
            seq3(Bp, H1p),                         # ff (hoisted input GEMM)
            const2(Bp, H1p), const2(Bp, H1p), const2(Bp, H1p),   # mem1/spk1/rec1 init
            const2(Bp, H2p), const2(Bp, H2p), const2(Bp, H2p),   # mem2/spk2/rec2 init
            const2(Bp, Op),                        # memo init
            const2(H1p, H2p + H1p),                # wA = [W_h1h2 | W_h1h1]
            const2(H2p, Op + H2p),                 # wB = [W_h2o  | W_h2h2]
            const2(1, H2p), const2(1, Op),         # bias2, bias_o
            const2(1, H1p), const2(1, H1p),        # alpha1, ro1
            const2(1, H2p), const2(1, H2p),        # alpha2, ro2
            const2(1, Op),                         # alpha_o
        ],
        out_specs=[
            seq3(Bp, H1p),     # hidden_spike_ trace
            seq3(Bp, H1p),     # hidden_mem_ trace
            seq3(Bp, Op),      # h2o_mem_ trace
        ],
        scratch_shapes=[
            pltpu.VMEM((Bp, H1p), f32), pltpu.VMEM((Bp, H1p), f32),
            pltpu.VMEM((Bp, H1p), f32), pltpu.VMEM((Bp, H1p), f32),
            pltpu.VMEM((Bp, H2p), f32), pltpu.VMEM((Bp, H2p), f32),
            pltpu.VMEM((Bp, H2p), f32), pltpu.VMEM((Bp, H2p), f32),
            pltpu.VMEM((Bp, Op), f32),
        ],
    )

    out_shape = (
        jax.ShapeDtypeStruct((Tp, Bp, H1p), f32),
        jax.ShapeDtypeStruct((Tp, Bp, H1p), f32),
        jax.ShapeDtypeStruct((Tp, Bp, Op), f32),
    )

    spk1_seq, mem1_seq, memo_seq = pl.pallas_call(
        _srnn_kernel,
        out_shape=out_shape,
        grid_spec=grid_spec,
        # Recurrence is strictly sequential over time -> "arbitrary".
        # TODO(synk): for v7x production batches add a leading batch grid axis
        # marked "parallel" to use both TensorCores; not useful at B=4.
        compiler_params=pltpu.CompilerParams(
            dimension_semantics=("arbitrary",)),
    )(ff_p, mem1_0, spk1_0, rec1_0, mem2_0, spk2_0, rec2_0, memo_0,
      wA, wB, bias2, biaso, alpha1, ro1, alpha2, ro2, alphao)

    # strip padding
    spk1_seq = spk1_seq[:T, :B, :H1]
    mem1_seq = mem1_seq[:T, :B, :H1]
    memo_seq = memo_seq[:T, :B, :O]
    # softmax accumulation hoisted off the serial kernel path:
    # output = sum_{t>0} softmax(mem_output_t)  (matches the PyTorch loop)
    output = jax.nn.softmax(memo_seq[1:], axis=-1).sum(axis=0)
    return output, spk1_seq, mem1_seq, memo_seq


def _srnn_reference(x_tbd, init_states, params):
    """Pure-JAX reference mirroring RNN_custom.forward (unfused, unpadded)."""
    f32 = jnp.float32
    hp = lax.Precision.HIGHEST
    alpha1 = jnp.exp(-DT / params["tau_m_h1"])
    ro1 = jnp.exp(-DT / params["tau_adp_h1"])
    alpha2 = jnp.exp(-DT / params["tau_m_h2"])
    ro2 = jnp.exp(-DT / params["tau_adp_h2"])
    alphao = jnp.exp(-DT / params["tau_m_o"])

    def lin(x, w, b):
        return jnp.dot(x, w, precision=hp) + b

    def step(carry, x_t):
        mem1, spk1, b1, mem2, spk2, b2, memo = carry
        h1 = (lin(x_t, params["w_ih1"], params["b_ih1"])
              + lin(spk1, params["w_h1h1"], params["b_h1h1"]))
        b1 = ro1 * b1 + (1.0 - ro1) * spk1
        th1 = B_J0 + BETA * b1
        mem1 = mem1 * alpha1 + (1.0 - alpha1) * R_M * h1 - th1 * spk1 * DT
        spk1 = (mem1 - th1 > 0).astype(f32)

        h2 = (lin(spk1, params["w_h1h2"], params["b_h1h2"])
              + lin(spk2, params["w_h2h2"], params["b_h2h2"]))
        b2 = ro2 * b2 + (1.0 - ro2) * spk2
        th2 = B_J0 + BETA * b2
        mem2 = mem2 * alpha2 + (1.0 - alpha2) * R_M * h2 - th2 * spk2 * DT
        spk2 = (mem2 - th2 > 0).astype(f32)

        o_in = lin(spk2, params["w_h2o"], params["b_h2o"])
        memo = memo * alphao + (1.0 - alphao) * R_M * o_in
        return (mem1, spk1, b1, mem2, spk2, b2, memo), (spk1, mem1, memo)

    carry0 = (init_states["mem1"], init_states["spk1"],
              jnp.full_like(init_states["mem1"], B_J0),
              init_states["mem2"], init_states["spk2"],
              jnp.full_like(init_states["mem2"], B_J0),
              init_states["memo"])
    _, (spk1_seq, mem1_seq, memo_seq) = lax.scan(step, carry0, x_tbd)
    output = jax.nn.softmax(memo_seq[1:], axis=-1).sum(axis=0)
    return output, spk1_seq, mem1_seq, memo_seq


def _quantize(v, lo=-0.9921875, hi=0.9921875):
    # Multiples of 2^-7 in (-1, 1): exactly representable in bf16, and
    # {0,1}-spike matmuls over <=128 such terms are exact in f32 regardless of
    # accumulation order -> kernel (bf16 MXU) and f32 reference agree bitwise
    # on the recurrent dots, so the strict '>' spike threshold cannot flip.
    return jnp.clip(jnp.round(v * 128.0) / 128.0, lo, hi).astype(jnp.float32)


def _make_params(key, D, H1, H2, O):
    ks = jax.random.split(key, 6)
    f32 = jnp.float32
    # deterministic synthetic init (xavier/orthogonal replaced by scaled normals)
    def w(k, shape, scale):
        return _quantize(jax.random.normal(k, shape, dtype=f32) * scale)
    return {
        "w_ih1":  w(ks[0], (D, H1), 1.0 / np.sqrt(D)),
        "b_ih1":  jnp.zeros((1, H1), f32),
        "w_h1h1": w(ks[1], (H1, H1), 1.0 / np.sqrt(H1)),
        "b_h1h1": jnp.zeros((1, H1), f32),
        "w_h1h2": w(ks[2], (H1, H2), 1.0 / np.sqrt(H1)),
        "b_h1h2": jnp.zeros((1, H2), f32),
        "w_h2h2": w(ks[3], (H2, H2), 1.0 / np.sqrt(H2)),
        "b_h2h2": jnp.zeros((1, H2), f32),
        "w_h2o":  w(ks[4], (H2, O), 1.0 / np.sqrt(H2)),
        "b_h2o":  jnp.zeros((1, O), f32),
        "tau_adp_h1": jnp.full((1, H1), 50.0, f32),
        "tau_m_h1":   jnp.full((1, H1), 10.0, f32),
        "tau_adp_h2": jnp.full((1, H2), 100.0, f32),
        "tau_m_h2":   jnp.full((1, H2), 10.0, f32),
        "tau_m_o":    jnp.full((1, O), 15.0, f32),
        # TODO(synk): tau_adp_o is declared in __init__ but never used in forward; omitted.
    }


if __name__ == "__main__":
    # small shapes consistent with the module's forward
    B, T, D = 4, 8, 40
    H1, H2, O = 32, 32, 20   # output_dim = 20 in the reference script

    key = jax.random.PRNGKey(0)
    k_x, k_p, k_m1, k_m2, k_mo = jax.random.split(key, 5)

    # (batch, seq, input_dim); values snapped to a coarse grid (see _quantize)
    x = _quantize(jax.random.normal(k_x, (B, T, D), dtype=jnp.float32),
                  lo=-4.0, hi=4.0)
    x_tbd = jnp.transpose(x, (1, 0, 2))                        # time-major for the kernel

    params = _make_params(k_p, D, H1, H2, O)
    # torch.rand -> uniform [0,1); mem and spike start from the SAME tensor
    m1 = _quantize(jax.random.uniform(k_m1, (B, H1), dtype=jnp.float32), 0.0, 1.0)
    m2 = _quantize(jax.random.uniform(k_m2, (B, H2), dtype=jnp.float32), 0.0, 1.0)
    mo = _quantize(jax.random.uniform(k_mo, (B, O), dtype=jnp.float32), 0.0, 1.0)
    init_states = {"mem1": m1, "spk1": m1, "mem2": m2, "spk2": m2, "memo": mo}

    got = jax.block_until_ready(srnn_forward(x_tbd, init_states, params))
    want = jax.block_until_ready(_srnn_reference(x_tbd, init_states, params))

    names = ("output", "hidden_spike_", "hidden_mem_", "h2o_mem_")
    for name, g, wref in zip(names, got, want):
        assert g.shape == wref.shape, (name, g.shape, wref.shape)
        np.testing.assert_allclose(np.asarray(g), np.asarray(wref),
                                   rtol=1e-3, atol=1e-3, err_msg=name)

    out, spk1_seq, mem1_seq, memo_seq = got
    # structural sanity: output is a sum of (T-1) softmax distributions
    row_sums = np.asarray(out).sum(axis=1)
    assert np.allclose(row_sums, float(T - 1), atol=1e-3), row_sums
    assert spk1_seq.shape == (T, B, H1)
    assert mem1_seq.shape == (T, B, H1)
    assert memo_seq.shape == (T, B, O)

    print("KERNEL_OK")
</pallas_src>

<mosaic_0001>
module attributes {stable_mosaic.version = 11 : i64} {
  func.func @_srnn_kernel(%arg0: i32, %arg1: memref<8x8x128xf32, #tpu.memory_space<vmem>>, %arg2: memref<8x128xf32, #tpu.memory_space<vmem>>, %arg3: memref<8x128xf32, #tpu.memory_space<vmem>>, %arg4: memref<8x128xf32, #tpu.memory_space<vmem>>, %arg5: memref<8x128xf32, #tpu.memory_space<vmem>>, %arg6: memref<8x128xf32, #tpu.memory_space<vmem>>, %arg7: memref<8x128xf32, #tpu.memory_space<vmem>>, %arg8: memref<8x128xf32, #tpu.memory_space<vmem>>, %arg9: memref<128x256xbf16, #tpu.memory_space<vmem>>, %arg10: memref<128x256xbf16, #tpu.memory_space<vmem>>, %arg11: memref<1x128xf32, #tpu.memory_space<vmem>>, %arg12: memref<1x128xf32, #tpu.memory_space<vmem>>, %arg13: memref<1x128xf32, #tpu.memory_space<vmem>>, %arg14: memref<1x128xf32, #tpu.memory_space<vmem>>, %arg15: memref<1x128xf32, #tpu.memory_space<vmem>>, %arg16: memref<1x128xf32, #tpu.memory_space<vmem>>, %arg17: memref<1x128xf32, #tpu.memory_space<vmem>>, %arg18: memref<8x8x128xf32, #tpu.memory_space<vmem>>, %arg19: memref<8x8x128xf32, #tpu.memory_space<vmem>>, %arg20: memref<8x8x128xf32, #tpu.memory_space<vmem>>, %arg21: memref<8x128xf32, #tpu.memory_space<vmem>>, %arg22: memref<8x128xf32, #tpu.memory_space<vmem>>, %arg23: memref<8x128xf32, #tpu.memory_space<vmem>>, %arg24: memref<8x128xf32, #tpu.memory_space<vmem>>, %arg25: memref<8x128xf32, #tpu.memory_space<vmem>>, %arg26: memref<8x128xf32, #tpu.memory_space<vmem>>, %arg27: memref<8x128xf32, #tpu.memory_space<vmem>>, %arg28: memref<8x128xf32, #tpu.memory_space<vmem>>, %arg29: memref<8x128xf32, #tpu.memory_space<vmem>>) attributes {dimension_semantics = [#tpu.dimension_semantics<arbitrary>], iteration_bounds = array<i64: 1>, scalar_prefetch = 0 : i64, scratch_operands = 9 : i64, tpu.core_type = #tpu.core_type<tc>, window_params = [{transform_indices = @transform_0, window_bounds = array<i64: 8, 8, 128>}, {pipeline_mode = #tpu.pipeline_mode<synchronous>, transform_indices = @transform_1, window_bounds = array<i64: 8, 128>}, {pipeline_mode = #tpu.pipeline_mode<synchronous>, transform_indices = @transform_2, window_bounds = array<i64: 8, 128>}, {pipeline_mode = #tpu.pipeline_mode<synchronous>, transform_indices = @transform_3, window_bounds = array<i64: 8, 128>}, {pipeline_mode = #tpu.pipeline_mode<synchronous>, transform_indices = @transform_4, window_bounds = array<i64: 8, 128>}, {pipeline_mode = #tpu.pipeline_mode<synchronous>, transform_indices = @transform_5, window_bounds = array<i64: 8, 128>}, {pipeline_mode = #tpu.pipeline_mode<synchronous>, transform_indices = @transform_6, window_bounds = array<i64: 8, 128>}, {pipeline_mode = #tpu.pipeline_mode<synchronous>, transform_indices = @transform_7, window_bounds = array<i64: 8, 128>}, {pipeline_mode = #tpu.pipeline_mode<synchronous>, transform_indices = @transform_8, window_bounds = array<i64: 128, 256>}, {pipeline_mode = #tpu.pipeline_mode<synchronous>, transform_indices = @transform_9, window_bounds = array<i64: 128, 256>}, {pipeline_mode = #tpu.pipeline_mode<synchronous>, transform_indices = @transform_10, window_bounds = array<i64: 1, 128>}, {pipeline_mode = #tpu.pipeline_mode<synchronous>, transform_indices = @transform_11, window_bounds = array<i64: 1, 128>}, {pipeline_mode = #tpu.pipeline_mode<synchronous>, transform_indices = @transform_12, window_bounds = array<i64: 1, 128>}, {pipeline_mode = #tpu.pipeline_mode<synchronous>, transform_indices = @transform_13, window_bounds = array<i64: 1, 128>}, {pipeline_mode = #tpu.pipeline_mode<synchronous>, transform_indices = @transform_14, window_bounds = array<i64: 1, 128>}, {pipeline_mode = #tpu.pipeline_mode<synchronous>, transform_indices = @transform_15, window_bounds = array<i64: 1, 128>}, {pipeline_mode = #tpu.pipeline_mode<synchronous>, transform_indices = @transform_16, window_bounds = array<i64: 1, 128>}, {transform_indices = @transform_17, window_bounds = array<i64: 8, 8, 128>}, {transform_indices = @transform_18, window_bounds = array<i64: 8, 8, 128>}, {transform_indices = @transform_19, window_bounds = array<i64: 8, 8, 128>}]} {
    %c0_i32 = arith.constant 0 : i32
    %0 = arith.cmpi eq, %arg0, %c0_i32 : i32
    %1 = arith.extui %0 : i1 to i32
    %c0_i32_0 = arith.constant 0 : i32
    %2 = arith.cmpi ne, %1, %c0_i32_0 : i32
    scf.if %2 {
      %c0_255 = arith.constant 0 : index
      %c0_256 = arith.constant 0 : index
      %660 = vector.load %arg2[%c0_255, %c0_256] : memref<8x128xf32, #tpu.memory_space<vmem>>, vector<8x128xf32>
      %c0_257 = arith.constant 0 : index
      %c0_258 = arith.constant 0 : index
      %661 = vector.load %arg21[%c0_257, %c0_258] : memref<8x128xf32, #tpu.memory_space<vmem>>, vector<8x128xf32>
      tpu.vector_store %arg21[%c0_257, %c0_258], %660 {strides = array<i32>} : memref<8x128xf32, #tpu.memory_space<vmem>>, vector<8x128xf32>,
      %c0_259 = arith.constant 0 : index
      %c0_260 = arith.constant 0 : index
      %662 = vector.load %arg3[%c0_259, %c0_260] : memref<8x128xf32, #tpu.memory_space<vmem>>, vector<8x128xf32>
      %c0_261 = arith.constant 0 : index
      %c0_262 = arith.constant 0 : index
      %663 = vector.load %arg22[%c0_261, %c0_262] : memref<8x128xf32, #tpu.memory_space<vmem>>, vector<8x128xf32>
      tpu.vector_store %arg22[%c0_261, %c0_262], %662 {strides = array<i32>} : memref<8x128xf32, #tpu.memory_space<vmem>>, vector<8x128xf32>,
      %cst_263 = arith.constant 0.00999999977 : f32
      %664 = vector.broadcast %cst_263 : f32 to vector<8x128xf32>
      %c0_264 = arith.constant 0 : index
      %c0_265 = arith.constant 0 : index
      %665 = vector.load %arg23[%c0_264, %c0_265] : memref<8x128xf32, #tpu.memory_space<vmem>>, vector<8x128xf32>
      tpu.vector_store %arg23[%c0_264, %c0_265], %664 {strides = array<i32>} : memref<8x128xf32, #tpu.memory_space<vmem>>, vector<8x128xf32>,
      %c0_266 = arith.constant 0 : index
      %c0_267 = arith.constant 0 : index
      %666 = vector.load %arg4[%c0_266, %c0_267] : memref<8x128xf32, #tpu.memory_space<vmem>>, vector<8x128xf32>
      %c0_268 = arith.constant 0 : index
      %c0_269 = arith.constant 0 : index
      %667 = vector.load %arg24[%c0_268, %c0_269] : memref<8x128xf32, #tpu.memory_space<vmem>>, vector<8x128xf32>
      tpu.vector_store %arg24[%c0_268, %c0_269], %666 {strides = array<i32>} : memref<8x128xf32, #tpu.memory_space<vmem>>, vector<8x128xf32>,
      %c0_270 = arith.constant 0 : index
      %c0_271 = arith.constant 0 : index
      %668 = vector.load %arg5[%c0_270, %c0_271] : memref<8x128xf32, #tpu.memory_space<vmem>>, vector<8x128xf32>
      %c0_272 = arith.constant 0 : index
      %c0_273 = arith.constant 0 : index
      %669 = vector.load %arg25[%c0_272, %c0_273] : memref<8x128xf32, #tpu.memory_space<vmem>>, vector<8x128xf32>
      tpu.vector_store %arg25[%c0_272, %c0_273], %668 {strides = array<i32>} : memref<8x128xf32, #tpu.memory_space<vmem>>, vector<8x128xf32>,
      %c0_274 = arith.constant 0 : index
      %c0_275 = arith.constant 0 : index
      %670 = vector.load %arg6[%c0_274, %c0_275] : memref<8x128xf32, #tpu.memory_space<vmem>>, vector<8x128xf32>
      %c0_276 = arith.constant 0 : index
      %c0_277 = arith.constant 0 : index
      %671 = vector.load %arg26[%c0_276, %c0_277] : memref<8x128xf32, #tpu.memory_space<vmem>>, vector<8x128xf32>
      tpu.vector_store %arg26[%c0_276, %c0_277], %670 {strides = array<i32>} : memref<8x128xf32, #tpu.memory_space<vmem>>, vector<8x128xf32>,
      %cst_278 = arith.constant 0.00999999977 : f32
      %672 = vector.broadcast %cst_278 : f32 to vector<8x128xf32>
      %c0_279 = arith.constant 0 : index
      %c0_280 = arith.constant 0 : index
      %673 = vector.load %arg27[%c0_279, %c0_280] : memref<8x128xf32, #tpu.memory_space<vmem>>, vector<8x128xf32>
      tpu.vector_store %arg27[%c0_279, %c0_280], %672 {strides = array<i32>} : memref<8x128xf32, #tpu.memory_space<vmem>>, vector<8x128xf32>,
      %c0_281 = arith.constant 0 : index
      %c0_282 = arith.constant 0 : index
      %674 = vector.load %arg7[%c0_281, %c0_282] : memref<8x128xf32, #tpu.memory_space<vmem>>, vector<8x128xf32>
      %c0_283 = arith.constant 0 : index
      %c0_284 = arith.constant 0 : index
      %675 = vector.load %arg28[%c0_283, %c0_284] : memref<8x128xf32, #tpu.memory_space<vmem>>, vector<8x128xf32>
      tpu.vector_store %arg28[%c0_283, %c0_284], %674 {strides = array<i32>} : memref<8x128xf32, #tpu.memory_space<vmem>>, vector<8x128xf32>,
      %c0_285 = arith.constant 0 : index
      %c0_286 = arith.constant 0 : index
      %676 = vector.load %arg8[%c0_285, %c0_286] : memref<8x128xf32, #tpu.memory_space<vmem>>, vector<8x128xf32>
      %c0_287 = arith.constant 0 : index
      %c0_288 = arith.constant 0 : index
      %677 = vector.load %arg29[%c0_287, %c0_288] : memref<8x128xf32, #tpu.memory_space<vmem>>, vector<8x128xf32>
      tpu.vector_store %arg29[%c0_287, %c0_288], %676 {strides = array<i32>} : memref<8x128xf32, #tpu.memory_space<vmem>>, vector<8x128xf32>,
    } else {
    }
    %c0 = arith.constant 0 : index
    %c0_1 = arith.constant 0 : index
    %3 = vector.load %arg11[%c0, %c0_1] : memref<1x128xf32, #tpu.memory_space<vmem>>, vector<1x128xf32>
    %4 = vector.shape_cast %3 : vector<1x128xf32> to vector<1x128xf32>
    %5 = vector.broadcast %4 : vector<1x128xf32> to vector<8x128xf32>
    %c0_2 = arith.constant 0 : index
    %c0_3 = arith.constant 0 : index
    %6 = vector.load %arg12[%c0_2, %c0_3] : memref<1x128xf32, #tpu.memory_space<vmem>>, vector<1x128xf32>
    %7 = vector.shape_cast %6 : vector<1x128xf32> to vector<1x128xf32>
    %8 = vector.broadcast %7 : vector<1x128xf32> to vector<8x128xf32>
    %c0_4 = arith.constant 0 : index
    %c0_5 = arith.constant 0 : index
    %9 = vector.load %arg13[%c0_4, %c0_5] : memref<1x128xf32, #tpu.memory_space<vmem>>, vector<1x128xf32>
    %10 = vector.shape_cast %9 : vector<1x128xf32> to vector<1x128xf32>
    %11 = vector.broadcast %10 : vector<1x128xf32> to vector<8x128xf32>
    %cst = arith.constant 1.000000e+00 : f32
    %12 = vector.broadcast %cst : f32 to vector<8x128xf32>
    %13 = arith.subf %12, %11 : vector<8x128xf32>
    %c0_6 = arith.constant 0 : index
    %c0_7 = arith.constant 0 : index
    %14 = vector.load %arg14[%c0_6, %c0_7] : memref<1x128xf32, #tpu.memory_space<vmem>>, vector<1x128xf32>
    %15 = vector.shape_cast %14 : vector<1x128xf32> to vector<1x128xf32>
    %16 = vector.broadcast %15 : vector<1x128xf32> to vector<8x128xf32>
    %cst_8 = arith.constant 1.000000e+00 : f32
    %17 = vector.broadcast %cst_8 : f32 to vector<8x128xf32>
    %18 = arith.subf %17, %16 : vector<8x128xf32>
    %c0_9 = arith.constant 0 : index
    %c0_10 = arith.constant 0 : index
    %19 = vector.load %arg15[%c0_9, %c0_10] : memref<1x128xf32, #tpu.memory_space<vmem>>, vector<1x128xf32>
    %20 = vector.shape_cast %19 : vector<1x128xf32> to vector<1x128xf32>
    %21 = vector.broadcast %20 : vector<1x128xf32> to vector<8x128xf32>
    %cst_11 = arith.constant 1.000000e+00 : f32
    %22 = vector.broadcast %cst_11 : f32 to vector<8x128xf32>
    %23 = arith.subf %22, %21 : vector<8x128xf32>
    %c0_12 = arith.constant 0 : index
    %c0_13 = arith.constant 0 : index
    %24 = vector.load %arg16[%c0_12, %c0_13] : memref<1x128xf32, #tpu.memory_space<vmem>>, vector<1x128xf32>
    %25 = vector.shape_cast %24 : vector<1x128xf32> to vector<1x128xf32>
    %26 = vector.broadcast %25 : vector<1x128xf32> to vector<8x128xf32>
    %cst_14 = arith.constant 1.000000e+00 : f32
    %27 = vector.broadcast %cst_14 : f32 to vector<8x128xf32>
    %28 = arith.subf %27, %26 : vector<8x128xf32>
    %c0_15 = arith.constant 0 : index
    %c0_16 = arith.constant 0 : index
    %29 = vector.load %arg17[%c0_15, %c0_16] : memref<1x128xf32, #tpu.memory_space<vmem>>, vector<1x128xf32>
    %30 = vector.shape_cast %29 : vector<1x128xf32> to vector<1x128xf32>
    %31 = vector.broadcast %30 : vector<1x128xf32> to vector<8x128xf32>
    %cst_17 = arith.constant 1.000000e+00 : f32
    %32 = vector.broadcast %cst_17 : f32 to vector<8x128xf32>
    %33 = arith.subf %32, %31 : vector<8x128xf32>
    %c0_18 = arith.constant 0 : index
    %c0_19 = arith.constant 0 : index
    %34 = vector.load %arg21[%c0_18, %c0_19] : memref<8x128xf32, #tpu.memory_space<vmem>>, vector<8x128xf32>
    %c0_20 = arith.constant 0 : index
    %c0_21 = arith.constant 0 : index
    %35 = vector.load %arg22[%c0_20, %c0_21] : memref<8x128xf32, #tpu.memory_space<vmem>>, vector<8x128xf32>
    %c0_22 = arith.constant 0 : index
    %c0_23 = arith.constant 0 : index
    %36 = vector.load %arg23[%c0_22, %c0_23] : memref<8x128xf32, #tpu.memory_space<vmem>>, vector<8x128xf32>
    %c0_24 = arith.constant 0 : index
    %c0_25 = arith.constant 0 : index
    %37 = vector.load %arg24[%c0_24, %c0_25] : memref<8x128xf32, #tpu.memory_space<vmem>>, vector<8x128xf32>
    %c0_26 = arith.constant 0 : index
    %c0_27 = arith.constant 0 : index
    %38 = vector.load %arg25[%c0_26, %c0_27] : memref<8x128xf32, #tpu.memory_space<vmem>>, vector<8x128xf32>
    %c0_28 = arith.constant 0 : index
    %c0_29 = arith.constant 0 : index
    %39 = vector.load %arg26[%c0_28, %c0_29] : memref<8x128xf32, #tpu.memory_space<vmem>>, vector<8x128xf32>
    %c0_30 = arith.constant 0 : index
    %c0_31 = arith.constant 0 : index
    %40 = vector.load %arg27[%c0_30, %c0_31] : memref<8x128xf32, #tpu.memory_space<vmem>>, vector<8x128xf32>
    %c0_32 = arith.constant 0 : index
    %c0_33 = arith.constant 0 : index
    %41 = vector.load %arg28[%c0_32, %c0_33] : memref<8x128xf32, #tpu.memory_space<vmem>>, vector<8x128xf32>
    %c0_34 = arith.constant 0 : index
    %c0_35 = arith.constant 0 : index
    %42 = vector.load %arg29[%c0_34, %c0_35] : memref<8x128xf32, #tpu.memory_space<vmem>>, vector<8x128xf32>
    %c0_i32_36 = arith.constant 0 : i32
    %43 = arith.index_cast %c0_i32_36 : i32 to index
    %c0_37 = arith.constant 0 : index
    %c0_38 = arith.constant 0 : index
    %44 = vector.load %arg1[%43, %c0_37, %c0_38] : memref<8x8x128xf32, #tpu.memory_space<vmem>>, vector<1x8x128xf32>
    %45 = vector.shape_cast %44 : vector<1x8x128xf32> to vector<8x128xf32>
    %46 = arith.addf %45, %37 : vector<8x128xf32>
    %47 = arith.mulf %16, %36 : vector<8x128xf32>
    %48 = arith.mulf %18, %35 : vector<8x128xf32>
    %49 = arith.addf %47, %48 : vector<8x128xf32>
    %cst_39 = arith.constant 1.800000e+00 : f32
    %50 = vector.broadcast %cst_39 : f32 to vector<8x128xf32>
    %51 = arith.mulf %50, %49 : vector<8x128xf32>
    %cst_40 = arith.constant 0.00999999977 : f32
    %52 = vector.broadcast %cst_40 : f32 to vector<8x128xf32>
    %53 = arith.addf %52, %51 : vector<8x128xf32>
    %54 = arith.mulf %34, %11 : vector<8x128xf32>
    %cst_41 = arith.constant 1.000000e+00 : f32
    %55 = vector.broadcast %cst_41 : f32 to vector<8x128xf32>
    %56 = arith.mulf %55, %46 : vector<8x128xf32>
    %57 = arith.mulf %13, %56 : vector<8x128xf32>
    %58 = arith.addf %54, %57 : vector<8x128xf32>
    %59 = arith.mulf %53, %35 : vector<8x128xf32>
    %cst_42 = arith.constant 1.000000e+00 : f32
    %60 = vector.broadcast %cst_42 : f32 to vector<8x128xf32>
    %61 = arith.mulf %59, %60 : vector<8x128xf32>
    %62 = arith.subf %58, %61 : vector<8x128xf32>
    %63 = arith.subf %62, %53 : vector<8x128xf32>
    %cst_43 = arith.constant 0.000000e+00 : f32
    %64 = vector.broadcast %cst_43 : f32 to vector<8x128xf32>
    %65 = arith.cmpf ogt, %63, %64 : vector<8x128xf32>
    %66 = arith.extui %65 : vector<8x128xi1> to vector<8x128xi32>
    %67 = arith.sitofp %66 : vector<8x128xi32> to vector<8x128xf32>
    %68 = arith.truncf %67 : vector<8x128xf32> to vector<8x128xbf16>
    %c0_44 = arith.constant 0 : index
    %c0_45 = arith.constant 0 : index
    %69 = vector.load %arg9[%c0_44, %c0_45] : memref<128x256xbf16, #tpu.memory_space<vmem>>, vector<128x256xbf16>
    %cst_46 = arith.constant dense<0.000000e+00> : vector<8x256xf32>
    %70 = tpu.matmul %68, %69, %cst_46 {dimension_numbers = #tpu.dot_dimension_numbers<[1], [0], [0], [1], [0, 0, 1, 1], [], []>} : vector<8x128xbf16>, vector<128x256xbf16>, vector<8x256xf32> -> vector<8x256xf32>
    %71 = vector.extract_strided_slice %70 {offsets = [0, 0], sizes = [8, 128], strides = [1, 1]} : vector<8x256xf32> to vector<8x128xf32>
    %72 = vector.extract_strided_slice %70 {offsets = [0, 128], sizes = [8, 128], strides = [1, 1]} : vector<8x256xf32> to vector<8x128xf32>
    %73 = arith.addf %71, %41 : vector<8x128xf32>
    %74 = arith.addf %73, %5 : vector<8x128xf32>
    %75 = arith.mulf %26, %40 : vector<8x128xf32>
    %76 = arith.mulf %28, %39 : vector<8x128xf32>
    %77 = arith.addf %75, %76 : vector<8x128xf32>
    %cst_47 = arith.constant 1.800000e+00 : f32
    %78 = vector.broadcast %cst_47 : f32 to vector<8x128xf32>
    %79 = arith.mulf %78, %77 : vector<8x128xf32>
    %cst_48 = arith.constant 0.00999999977 : f32
    %80 = vector.broadcast %cst_48 : f32 to vector<8x128xf32>
    %81 = arith.addf %80, %79 : vector<8x128xf32>
    %82 = arith.mulf %38, %21 : vector<8x128xf32>
    %cst_49 = arith.constant 1.000000e+00 : f32
    %83 = vector.broadcast %cst_49 : f32 to vector<8x128xf32>
    %84 = arith.mulf %83, %74 : vector<8x128xf32>
    %85 = arith.mulf %23, %84 : vector<8x128xf32>
    %86 = arith.addf %82, %85 : vector<8x128xf32>
    %87 = arith.mulf %81, %39 : vector<8x128xf32>
    %cst_50 = arith.constant 1.000000e+00 : f32
    %88 = vector.broadcast %cst_50 : f32 to vector<8x128xf32>
    %89 = arith.mulf %87, %88 : vector<8x128xf32>
    %90 = arith.subf %86, %89 : vector<8x128xf32>
    %91 = arith.subf %90, %81 : vector<8x128xf32>
    %cst_51 = arith.constant 0.000000e+00 : f32
    %92 = vector.broadcast %cst_51 : f32 to vector<8x128xf32>
    %93 = arith.cmpf ogt, %91, %92 : vector<8x128xf32>
    %94 = arith.extui %93 : vector<8x128xi1> to vector<8x128xi32>
    %95 = arith.sitofp %94 : vector<8x128xi32> to vector<8x128xf32>
    %96 = arith.truncf %95 : vector<8x128xf32> to vector<8x128xbf16>
    %c0_52 = arith.constant 0 : index
    %c0_53 = arith.constant 0 : index
    %97 = vector.load %arg10[%c0_52, %c0_53] : memref<128x256xbf16, #tpu.memory_space<vmem>>, vector<128x256xbf16>
    %cst_54 = arith.constant dense<0.000000e+00> : vector<8x256xf32>
    %98 = tpu.matmul %96, %97, %cst_54 {dimension_numbers = #tpu.dot_dimension_numbers<[1], [0], [0], [1], [0, 0, 1, 1], [], []>} : vector<8x128xbf16>, vector<128x256xbf16>, vector<8x256xf32> -> vector<8x256xf32>
    %99 = vector.extract_strided_slice %98 {offsets = [0, 0], sizes = [8, 128], strides = [1, 1]} : vector<8x256xf32> to vector<8x128xf32>
    %100 = arith.addf %99, %8 : vector<8x128xf32>
    %101 = vector.extract_strided_slice %98 {offsets = [0, 128], sizes = [8, 128], strides = [1, 1]} : vector<8x256xf32> to vector<8x128xf32>
    %102 = arith.mulf %42, %31 : vector<8x128xf32>
    %cst_55 = arith.constant 1.000000e+00 : f32
    %103 = vector.broadcast %cst_55 : f32 to vector<8x128xf32>
    %104 = arith.mulf %103, %100 : vector<8x128xf32>
    %105 = arith.mulf %33, %104 : vector<8x128xf32>
    %106 = arith.addf %102, %105 : vector<8x128xf32>
    %107 = arith.index_cast %c0_i32_36 : i32 to index
    %c0_56 = arith.constant 0 : index
    %c0_57 = arith.constant 0 : index
    %108 = vector.load %arg18[%107, %c0_56, %c0_57] : memref<8x8x128xf32, #tpu.memory_space<vmem>>, vector<1x8x128xf32>
    %109 = vector.shape_cast %108 : vector<1x8x128xf32> to vector<8x128xf32>
    %110 = vector.shape_cast %67 : vector<8x128xf32> to vector<1x8x128xf32>
    tpu.vector_store %arg18[%107, %c0_56, %c0_57], %110 {strides = array<i32>} : memref<8x8x128xf32, #tpu.memory_space<vmem>>, vector<1x8x128xf32>,
    %111 = arith.index_cast %c0_i32_36 : i32 to index
    %c0_58 = arith.constant 0 : index
    %c0_59 = arith.constant 0 : index
    %112 = vector.load %arg19[%111, %c0_58, %c0_59] : memref<8x8x128xf32, #tpu.memory_space<vmem>>, vector<1x8x128xf32>
    %113 = vector.shape_cast %112 : vector<1x8x128xf32> to vector<8x128xf32>
    %114 = vector.shape_cast %62 : vector<8x128xf32> to vector<1x8x128xf32>
    tpu.vector_store %arg19[%111, %c0_58, %c0_59], %114 {strides = array<i32>} : memref<8x8x128xf32, #tpu.memory_space<vmem>>, vector<1x8x128xf32>,
    %115 = arith.index_cast %c0_i32_36 : i32 to index
    %c0_60 = arith.constant 0 : index
    %c0_61 = arith.constant 0 : index
    %116 = vector.load %arg20[%115, %c0_60, %c0_61] : memref<8x8x128xf32, #tpu.memory_space<vmem>>, vector<1x8x128xf32>
    %117 = vector.shape_cast %116 : vector<1x8x128xf32> to vector<8x128xf32>
    %118 = vector.shape_cast %106 : vector<8x128xf32> to vector<1x8x128xf32>
    tpu.vector_store %arg20[%115, %c0_60, %c0_61], %118 {strides = array<i32>} : memref<8x8x128xf32, #tpu.memory_space<vmem>>, vector<1x8x128xf32>,
    %c1_i32 = arith.constant 1 : i32
    %119 = arith.index_cast %c1_i32 : i32 to index
    %c0_62 = arith.constant 0 : index
    %c0_63 = arith.constant 0 : index
    %120 = vector.load %arg1[%119, %c0_62, %c0_63] : memref<8x8x128xf32, #tpu.memory_space<vmem>>, vector<1x8x128xf32>
    %121 = vector.shape_cast %120 : vector<1x8x128xf32> to vector<8x128xf32>
    %122 = arith.addf %121, %72 : vector<8x128xf32>
    %123 = arith.mulf %16, %49 : vector<8x128xf32>
    %124 = arith.mulf %18, %67 : vector<8x128xf32>
    %125 = arith.addf %123, %124 : vector<8x128xf32>
    %cst_64 = arith.constant 1.800000e+00 : f32
    %126 = vector.broadcast %cst_64 : f32 to vector<8x128xf32>
    %127 = arith.mulf %126, %125 : vector<8x128xf32>
    %cst_65 = arith.constant 0.00999999977 : f32
    %128 = vector.broadcast %cst_65 : f32 to vector<8x128xf32>
    %129 = arith.addf %128, %127 : vector<8x128xf32>
    %130 = arith.mulf %62, %11 : vector<8x128xf32>
    %cst_66 = arith.constant 1.000000e+00 : f32
    %131 = vector.broadcast %cst_66 : f32 to vector<8x128xf32>
    %132 = arith.mulf %131, %122 : vector<8x128xf32>
    %133 = arith.mulf %13, %132 : vector<8x128xf32>
    %134 = arith.addf %130, %133 : vector<8x128xf32>
    %135 = arith.mulf %129, %67 : vector<8x128xf32>
    %cst_67 = arith.constant 1.000000e+00 : f32
    %136 = vector.broadcast %cst_67 : f32 to vector<8x128xf32>
    %137 = arith.mulf %135, %136 : vector<8x128xf32>
    %138 = arith.subf %134, %137 : vector<8x128xf32>
    %139 = arith.subf %138, %129 : vector<8x128xf32>
    %cst_68 = arith.constant 0.000000e+00 : f32
    %140 = vector.broadcast %cst_68 : f32 to vector<8x128xf32>
    %141 = arith.cmpf ogt, %139, %140 : vector<8x128xf32>
    %142 = arith.extui %141 : vector<8x128xi1> to vector<8x128xi32>
    %143 = arith.sitofp %142 : vector<8x128xi32> to vector<8x128xf32>
    %144 = arith.truncf %143 : vector<8x128xf32> to vector<8x128xbf16>
    %c0_69 = arith.constant 0 : index
    %c0_70 = arith.constant 0 : index
    %145 = vector.load %arg9[%c0_69, %c0_70] : memref<128x256xbf16, #tpu.memory_space<vmem>>, vector<128x256xbf16>
    %cst_71 = arith.constant dense<0.000000e+00> : vector<8x256xf32>
    %146 = tpu.matmul %144, %145, %cst_71 {dimension_numbers = #tpu.dot_dimension_numbers<[1], [0], [0], [1], [0, 0, 1, 1], [], []>} : vector<8x128xbf16>, vector<128x256xbf16>, vector<8x256xf32> -> vector<8x256xf32>
    %147 = vector.extract_strided_slice %146 {offsets = [0, 0], sizes = [8, 128], strides = [1, 1]} : vector<8x256xf32> to vector<8x128xf32>
    %148 = vector.extract_strided_slice %146 {offsets = [0, 128], sizes = [8, 128], strides = [1, 1]} : vector<8x256xf32> to vector<8x128xf32>
    %149 = arith.addf %147, %101 : vector<8x128xf32>
    %150 = arith.addf %149, %5 : vector<8x128xf32>
    %151 = arith.mulf %26, %77 : vector<8x128xf32>
    %152 = arith.mulf %28, %95 : vector<8x128xf32>
    %153 = arith.addf %151, %152 : vector<8x128xf32>
    %cst_72 = arith.constant 1.800000e+00 : f32
    %154 = vector.broadcast %cst_72 : f32 to vector<8x128xf32>
    %155 = arith.mulf %154, %153 : vector<8x128xf32>
    %cst_73 = arith.constant 0.00999999977 : f32
    %156 = vector.broadcast %cst_73 : f32 to vector<8x128xf32>
    %157 = arith.addf %156, %155 : vector<8x128xf32>
    %158 = arith.mulf %90, %21 : vector<8x128xf32>
    %cst_74 = arith.constant 1.000000e+00 : f32
    %159 = vector.broadcast %cst_74 : f32 to vector<8x128xf32>
    %160 = arith.mulf %159, %150 : vector<8x128xf32>
    %161 = arith.mulf %23, %160 : vector<8x128xf32>
    %162 = arith.addf %158, %161 : vector<8x128xf32>
    %163 = arith.mulf %157, %95 : vector<8x128xf32>
    %cst_75 = arith.constant 1.000000e+00 : f32
    %164 = vector.broadcast %cst_75 : f32 to vector<8x128xf32>
    %165 = arith.mulf %163, %164 : vector<8x128xf32>
    %166 = arith.subf %162, %165 : vector<8x128xf32>
    %167 = arith.subf %166, %157 : vector<8x128xf32>
    %cst_76 = arith.constant 0.000000e+00 : f32
    %168 = vector.broadcast %cst_76 : f32 to vector<8x128xf32>
    %169 = arith.cmpf ogt, %167, %168 : vector<8x128xf32>
    %170 = arith.extui %169 : vector<8x128xi1> to vector<8x128xi32>
    %171 = arith.sitofp %170 : vector<8x128xi32> to vector<8x128xf32>
    %172 = arith.truncf %171 : vector<8x128xf32> to vector<8x128xbf16>
    %c0_77 = arith.constant 0 : index
    %c0_78 = arith.constant 0 : index
    %173 = vector.load %arg10[%c0_77, %c0_78] : memref<128x256xbf16, #tpu.memory_space<vmem>>, vector<128x256xbf16>
    %cst_79 = arith.constant dense<0.000000e+00> : vector<8x256xf32>
    %174 = tpu.matmul %172, %173, %cst_79 {dimension_numbers = #tpu.dot_dimension_numbers<[1], [0], [0], [1], [0, 0, 1, 1], [], []>} : vector<8x128xbf16>, vector<128x256xbf16>, vector<8x256xf32> -> vector<8x256xf32>
    %175 = vector.extract_strided_slice %174 {offsets = [0, 0], sizes = [8, 128], strides = [1, 1]} : vector<8x256xf32> to vector<8x128xf32>
    %176 = arith.addf %175, %8 : vector<8x128xf32>
    %177 = vector.extract_strided_slice %174 {offsets = [0, 128], sizes = [8, 128], strides = [1, 1]} : vector<8x256xf32> to vector<8x128xf32>
    %178 = arith.mulf %106, %31 : vector<8x128xf32>
    %cst_80 = arith.constant 1.000000e+00 : f32
    %179 = vector.broadcast %cst_80 : f32 to vector<8x128xf32>
    %180 = arith.mulf %179, %176 : vector<8x128xf32>
    %181 = arith.mulf %33, %180 : vector<8x128xf32>
    %182 = arith.addf %178, %181 : vector<8x128xf32>
    %183 = arith.index_cast %c1_i32 : i32 to index
    %c0_81 = arith.constant 0 : index
    %c0_82 = arith.constant 0 : index
    %184 = vector.load %arg18[%183, %c0_81, %c0_82] : memref<8x8x128xf32, #tpu.memory_space<vmem>>, vector<1x8x128xf32>
    %185 = vector.shape_cast %184 : vector<1x8x128xf32> to vector<8x128xf32>
    %186 = vector.shape_cast %143 : vector<8x128xf32> to vector<1x8x128xf32>
    tpu.vector_store %arg18[%183, %c0_81, %c0_82], %186 {strides = array<i32>} : memref<8x8x128xf32, #tpu.memory_space<vmem>>, vector<1x8x128xf32>,
    %187 = arith.index_cast %c1_i32 : i32 to index
    %c0_83 = arith.constant 0 : index
    %c0_84 = arith.constant 0 : index
    %188 = vector.load %arg19[%187, %c0_83, %c0_84] : memref<8x8x128xf32, #tpu.memory_space<vmem>>, vector<1x8x128xf32>
    %189 = vector.shape_cast %188 : vector<1x8x128xf32> to vector<8x128xf32>
    %190 = vector.shape_cast %138 : vector<8x128xf32> to vector<1x8x128xf32>
    tpu.vector_store %arg19[%187, %c0_83, %c0_84], %190 {strides = array<i32>} : memref<8x8x128xf32, #tpu.memory_space<vmem>>, vector<1x8x128xf32>,
    %191 = arith.index_cast %c1_i32 : i32 to index
    %c0_85 = arith.constant 0 : index
    %c0_86 = arith.constant 0 : index
    %192 = vector.load %arg20[%191, %c0_85, %c0_86] : memref<8x8x128xf32, #tpu.memory_space<vmem>>, vector<1x8x128xf32>
    %193 = vector.shape_cast %192 : vector<1x8x128xf32> to vector<8x128xf32>
    %194 = vector.shape_cast %182 : vector<8x128xf32> to vector<1x8x128xf32>
    tpu.vector_store %arg20[%191, %c0_85, %c0_86], %194 {strides = array<i32>} : memref<8x8x128xf32, #tpu.memory_space<vmem>>, vector<1x8x128xf32>,
    %c2_i32 = arith.constant 2 : i32
    %195 = arith.index_cast %c2_i32 : i32 to index
    %c0_87 = arith.constant 0 : index
    %c0_88 = arith.constant 0 : index
    %196 = vector.load %arg1[%195, %c0_87, %c0_88] : memref<8x8x128xf32, #tpu.memory_space<vmem>>, vector<1x8x128xf32>
    %197 = vector.shape_cast %196 : vector<1x8x128xf32> to vector<8x128xf32>
    %198 = arith.addf %197, %148 : vector<8x128xf32>
    %199 = arith.mulf %16, %125 : vector<8x128xf32>
    %200 = arith.mulf %18, %143 : vector<8x128xf32>
    %201 = arith.addf %199, %200 : vector<8x128xf32>
    %cst_89 = arith.constant 1.800000e+00 : f32
    %202 = vector.broadcast %cst_89 : f32 to vector<8x128xf32>
    %203 = arith.mulf %202, %201 : vector<8x128xf32>
    %cst_90 = arith.constant 0.00999999977 : f32
    %204 = vector.broadcast %cst_90 : f32 to vector<8x128xf32>
    %205 = arith.addf %204, %203 : vector<8x128xf32>
    %206 = arith.mulf %138, %11 : vector<8x128xf32>
    %cst_91 = arith.constant 1.000000e+00 : f32
    %207 = vector.broadcast %cst_91 : f32 to vector<8x128xf32>
    %208 = arith.mulf %207, %198 : vector<8x128xf32>
    %209 = arith.mulf %13, %208 : vector<8x128xf32>
    %210 = arith.addf %206, %209 : vector<8x128xf32>
    %211 = arith.mulf %205, %143 : vector<8x128xf32>
    %cst_92 = arith.constant 1.000000e+00 : f32
    %212 = vector.broadcast %cst_92 : f32 to vector<8x128xf32>
    %213 = arith.mulf %211, %212 : vector<8x128xf32>
    %214 = arith.subf %210, %213 : vector<8x128xf32>
    %215 = arith.subf %214, %205 : vector<8x128xf32>
    %cst_93 = arith.constant 0.000000e+00 : f32
    %216 = vector.broadcast %cst_93 : f32 to vector<8x128xf32>
    %217 = arith.cmpf ogt, %215, %216 : vector<8x128xf32>
    %218 = arith.extui %217 : vector<8x128xi1> to vector<8x128xi32>
    %219 = arith.sitofp %218 : vector<8x128xi32> to vector<8x128xf32>
    %220 = arith.truncf %219 : vector<8x128xf32> to vector<8x128xbf16>
    %c0_94 = arith.constant 0 : index
    %c0_95 = arith.constant 0 : index
    %221 = vector.load %arg9[%c0_94, %c0_95] : memref<128x256xbf16, #tpu.memory_space<vmem>>, vector<128x256xbf16>
    %cst_96 = arith.constant dense<0.000000e+00> : vector<8x256xf32>
    %222 = tpu.matmul %220, %221, %cst_96 {dimension_numbers = #tpu.dot_dimension_numbers<[1], [0], [0], [1], [0, 0, 1, 1], [], []>} : vector<8x128xbf16>, vector<128x256xbf16>, vector<8x256xf32> -> vector<8x256xf32>
    %223 = vector.extract_strided_slice %222 {offsets = [0, 0], sizes = [8, 128], strides = [1, 1]} : vector<8x256xf32> to vector<8x128xf32>
    %224 = vector.extract_strided_slice %222 {offsets = [0, 128], sizes = [8, 128], strides = [1, 1]} : vector<8x256xf32> to vector<8x128xf32>
    %225 = arith.addf %223, %177 : vector<8x128xf32>
    %226 = arith.addf %225, %5 : vector<8x128xf32>
    %227 = arith.mulf %26, %153 : vector<8x128xf32>
    %228 = arith.mulf %28, %171 : vector<8x128xf32>
    %229 = arith.addf %227, %228 : vector<8x128xf32>
    %cst_97 = arith.constant 1.800000e+00 : f32
    %230 = vector.broadcast %cst_97 : f32 to vector<8x128xf32>
    %231 = arith.mulf %230, %229 : vector<8x128xf32>
    %cst_98 = arith.constant 0.00999999977 : f32
    %232 = vector.broadcast %cst_98 : f32 to vector<8x128xf32>
    %233 = arith.addf %232, %231 : vector<8x128xf32>
    %234 = arith.mulf %166, %21 : vector<8x128xf32>
    %cst_99 = arith.constant 1.000000e+00 : f32
    %235 = vector.broadcast %cst_99 : f32 to vector<8x128xf32>
    %236 = arith.mulf %235, %226 : vector<8x128xf32>
    %237 = arith.mulf %23, %236 : vector<8x128xf32>
    %238 = arith.addf %234, %237 : vector<8x128xf32>
    %239 = arith.mulf %233, %171 : vector<8x128xf32>
    %cst_100 = arith.constant 1.000000e+00 : f32
    %240 = vector.broadcast %cst_100 : f32 to vector<8x128xf32>
    %241 = arith.mulf %239, %240 : vector<8x128xf32>
    %242 = arith.subf %238, %241 : vector<8x128xf32>
    %243 = arith.subf %242, %233 : vector<8x128xf32>
    %cst_101 = arith.constant 0.000000e+00 : f32
    %244 = vector.broadcast %cst_101 : f32 to vector<8x128xf32>
    %245 = arith.cmpf ogt, %243, %244 : vector<8x128xf32>
    %246 = arith.extui %245 : vector<8x128xi1> to vector<8x128xi32>
    %247 = arith.sitofp %246 : vector<8x128xi32> to vector<8x128xf32>
    %248 = arith.truncf %247 : vector<8x128xf32> to vector<8x128xbf16>
    %c0_102 = arith.constant 0 : index
    %c0_103 = arith.constant 0 : index
    %249 = vector.load %arg10[%c0_102, %c0_103] : memref<128x256xbf16, #tpu.memory_space<vmem>>, vector<128x256xbf16>
    %cst_104 = arith.constant dense<0.000000e+00> : vector<8x256xf32>
    %250 = tpu.matmul %248, %249, %cst_104 {dimension_numbers = #tpu.dot_dimension_numbers<[1], [0], [0], [1], [0, 0, 1, 1], [], []>} : vector<8x128xbf16>, vector<128x256xbf16>, vector<8x256xf32> -> vector<8x256xf32>
    %251 = vector.extract_strided_slice %250 {offsets = [0, 0], sizes = [8, 128], strides = [1, 1]} : vector<8x256xf32> to vector<8x128xf32>
    %252 = arith.addf %251, %8 : vector<8x128xf32>
    %253 = vector.extract_strided_slice %250 {offsets = [0, 128], sizes = [8, 128], strides = [1, 1]} : vector<8x256xf32> to vector<8x128xf32>
    %254 = arith.mulf %182, %31 : vector<8x128xf32>
    %cst_105 = arith.constant 1.000000e+00 : f32
    %255 = vector.broadcast %cst_105 : f32 to vector<8x128xf32>
    %256 = arith.mulf %255, %252 : vector<8x128xf32>
    %257 = arith.mulf %33, %256 : vector<8x128xf32>
    %258 = arith.addf %254, %257 : vector<8x128xf32>
    %259 = arith.index_cast %c2_i32 : i32 to index
    %c0_106 = arith.constant 0 : index
    %c0_107 = arith.constant 0 : index
    %260 = vector.load %arg18[%259, %c0_106, %c0_107] : memref<8x8x128xf32, #tpu.memory_space<vmem>>, vector<1x8x128xf32>
    %261 = vector.shape_cast %260 : vector<1x8x128xf32> to vector<8x128xf32>
    %262 = vector.shape_cast %219 : vector<8x128xf32> to vector<1x8x128xf32>
    tpu.vector_store %arg18[%259, %c0_106, %c0_107], %262 {strides = array<i32>} : memref<8x8x128xf32, #tpu.memory_space<vmem>>, vector<1x8x128xf32>,
    %263 = arith.index_cast %c2_i32 : i32 to index
    %c0_108 = arith.constant 0 : index
    %c0_109 = arith.constant 0 : index
    %264 = vector.load %arg19[%263, %c0_108, %c0_109] : memref<8x8x128xf32, #tpu.memory_space<vmem>>, vector<1x8x128xf32>
    %265 = vector.shape_cast %264 : vector<1x8x128xf32> to vector<8x128xf32>
    %266 = vector.shape_cast %214 : vector<8x128xf32> to vector<1x8x128xf32>
    tpu.vector_store %arg19[%263, %c0_108, %c0_109], %266 {strides = array<i32>} : memref<8x8x128xf32, #tpu.memory_space<vmem>>, vector<1x8x128xf32>,
    %267 = arith.index_cast %c2_i32 : i32 to index
    %c0_110 = arith.constant 0 : index
    %c0_111 = arith.constant 0 : index
    %268 = vector.load %arg20[%267, %c0_110, %c0_111] : memref<8x8x128xf32, #tpu.memory_space<vmem>>, vector<1x8x128xf32>
    %269 = vector.shape_cast %268 : vector<1x8x128xf32> to vector<8x128xf32>
    %270 = vector.shape_cast %258 : vector<8x128xf32> to vector<1x8x128xf32>
    tpu.vector_store %arg20[%267, %c0_110, %c0_111], %270 {strides = array<i32>} : memref<8x8x128xf32, #tpu.memory_space<vmem>>, vector<1x8x128xf32>,
    %c3_i32 = arith.constant 3 : i32
    %271 = arith.index_cast %c3_i32 : i32 to index
    %c0_112 = arith.constant 0 : index
    %c0_113 = arith.constant 0 : index
    %272 = vector.load %arg1[%271, %c0_112, %c0_113] : memref<8x8x128xf32, #tpu.memory_space<vmem>>, vector<1x8x128xf32>
    %273 = vector.shape_cast %272 : vector<1x8x128xf32> to vector<8x128xf32>
    %274 = arith.addf %273, %224 : vector<8x128xf32>
    %275 = arith.mulf %16, %201 : vector<8x128xf32>
    %276 = arith.mulf %18, %219 : vector<8x128xf32>
    %277 = arith.addf %275, %276 : vector<8x128xf32>
    %cst_114 = arith.constant 1.800000e+00 : f32
    %278 = vector.broadcast %cst_114 : f32 to vector<8x128xf32>
    %279 = arith.mulf %278, %277 : vector<8x128xf32>
    %cst_115 = arith.constant 0.00999999977 : f32
    %280 = vector.broadcast %cst_115 : f32 to vector<8x128xf32>
    %281 = arith.addf %280, %279 : vector<8x128xf32>
    %282 = arith.mulf %214, %11 : vector<8x128xf32>
    %cst_116 = arith.constant 1.000000e+00 : f32
    %283 = vector.broadcast %cst_116 : f32 to vector<8x128xf32>
    %284 = arith.mulf %283, %274 : vector<8x128xf32>
    %285 = arith.mulf %13, %284 : vector<8x128xf32>
    %286 = arith.addf %282, %285 : vector<8x128xf32>
    %287 = arith.mulf %281, %219 : vector<8x128xf32>
    %cst_117 = arith.constant 1.000000e+00 : f32
    %288 = vector.broadcast %cst_117 : f32 to vector<8x128xf32>
    %289 = arith.mulf %287, %288 : vector<8x128xf32>
    %290 = arith.subf %286, %289 : vector<8x128xf32>
    %291 = arith.subf %290, %281 : vector<8x128xf32>
    %cst_118 = arith.constant 0.000000e+00 : f32
    %292 = vector.broadcast %cst_118 : f32 to vector<8x128xf32>
    %293 = arith.cmpf ogt, %291, %292 : vector<8x128xf32>
    %294 = arith.extui %293 : vector<8x128xi1> to vector<8x128xi32>
    %295 = arith.sitofp %294 : vector<8x128xi32> to vector<8x128xf32>
    %296 = arith.truncf %295 : vector<8x128xf32> to vector<8x128xbf16>
    %c0_119 = arith.constant 0 : index
    %c0_120 = arith.constant 0 : index
    %297 = vector.load %arg9[%c0_119, %c0_120] : memref<128x256xbf16, #tpu.memory_space<vmem>>, vector<128x256xbf16>
    %cst_121 = arith.constant dense<0.000000e+00> : vector<8x256xf32>
    %298 = tpu.matmul %296, %297, %cst_121 {dimension_numbers = #tpu.dot_dimension_numbers<[1], [0], [0], [1], [0, 0, 1, 1], [], []>} : vector<8x128xbf16>, vector<128x256xbf16>, vector<8x256xf32> -> vector<8x256xf32>
    %299 = vector.extract_strided_slice %298 {offsets = [0, 0], sizes = [8, 128], strides = [1, 1]} : vector<8x256xf32> to vector<8x128xf32>
    %300 = vector.extract_strided_slice %298 {offsets = [0, 128], sizes = [8, 128], strides = [1, 1]} : vector<8x256xf32> to vector<8x128xf32>
    %301 = arith.addf %299, %253 : vector<8x128xf32>
    %302 = arith.addf %301, %5 : vector<8x128xf32>
    %303 = arith.mulf %26, %229 : vector<8x128xf32>
    %304 = arith.mulf %28, %247 : vector<8x128xf32>
    %305 = arith.addf %303, %304 : vector<8x128xf32>
    %cst_122 = arith.constant 1.800000e+00 : f32
    %306 = vector.broadcast %cst_122 : f32 to vector<8x128xf32>
    %307 = arith.mulf %306, %305 : vector<8x128xf32>
    %cst_123 = arith.constant 0.00999999977 : f32
    %308 = vector.broadcast %cst_123 : f32 to vector<8x128xf32>
    %309 = arith.addf %308, %307 : vector<8x128xf32>
    %310 = arith.mulf %242, %21 : vector<8x128xf32>
    %cst_124 = arith.constant 1.000000e+00 : f32
    %311 = vector.broadcast %cst_124 : f32 to vector<8x128xf32>
    %312 = arith.mulf %311, %302 : vector<8x128xf32>
    %313 = arith.mulf %23, %312 : vector<8x128xf32>
    %314 = arith.addf %310, %313 : vector<8x128xf32>
    %315 = arith.mulf %309, %247 : vector<8x128xf32>
    %cst_125 = arith.constant 1.000000e+00 : f32
    %316 = vector.broadcast %cst_125 : f32 to vector<8x128xf32>
    %317 = arith.mulf %315, %316 : vector<8x128xf32>
    %318 = arith.subf %314, %317 : vector<8x128xf32>
    %319 = arith.subf %318, %309 : vector<8x128xf32>
    %cst_126 = arith.constant 0.000000e+00 : f32
    %320 = vector.broadcast %cst_126 : f32 to vector<8x128xf32>
    %321 = arith.cmpf ogt, %319, %320 : vector<8x128xf32>
    %322 = arith.extui %321 : vector<8x128xi1> to vector<8x128xi32>
    %323 = arith.sitofp %322 : vector<8x128xi32> to vector<8x128xf32>
    %324 = arith.truncf %323 : vector<8x128xf32> to vector<8x128xbf16>
    %c0_127 = arith.constant 0 : index
    %c0_128 = arith.constant 0 : index
    %325 = vector.load %arg10[%c0_127, %c0_128] : memref<128x256xbf16, #tpu.memory_space<vmem>>, vector<128x256xbf16>
    %cst_129 = arith.constant dense<0.000000e+00> : vector<8x256xf32>
    %326 = tpu.matmul %324, %325, %cst_129 {dimension_numbers = #tpu.dot_dimension_numbers<[1], [0], [0], [1], [0, 0, 1, 1], [], []>} : vector<8x128xbf16>, vector<128x256xbf16>, vector<8x256xf32> -> vector<8x256xf32>
    %327 = vector.extract_strided_slice %326 {offsets = [0, 0], sizes = [8, 128], strides = [1, 1]} : vector<8x256xf32> to vector<8x128xf32>
    %328 = arith.addf %327, %8 : vector<8x128xf32>
    %329 = vector.extract_strided_slice %326 {offsets = [0, 128], sizes = [8, 128], strides = [1, 1]} : vector<8x256xf32> to vector<8x128xf32>
    %330 = arith.mulf %258, %31 : vector<8x128xf32>
    %cst_130 = arith.constant 1.000000e+00 : f32
    %331 = vector.broadcast %cst_130 : f32 to vector<8x128xf32>
    %332 = arith.mulf %331, %328 : vector<8x128xf32>
    %333 = arith.mulf %33, %332 : vector<8x128xf32>
    %334 = arith.addf %330, %333 : vector<8x128xf32>
    %335 = arith.index_cast %c3_i32 : i32 to index
    %c0_131 = arith.constant 0 : index
    %c0_132 = arith.constant 0 : index
    %336 = vector.load %arg18[%335, %c0_131, %c0_132] : memref<8x8x128xf32, #tpu.memory_space<vmem>>, vector<1x8x128xf32>
    %337 = vector.shape_cast %336 : vector<1x8x128xf32> to vector<8x128xf32>
    %338 = vector.shape_cast %295 : vector<8x128xf32> to vector<1x8x128xf32>
    tpu.vector_store %arg18[%335, %c0_131, %c0_132], %338 {strides = array<i32>} : memref<8x8x128xf32, #tpu.memory_space<vmem>>, vector<1x8x128xf32>,
    %339 = arith.index_cast %c3_i32 : i32 to index
    %c0_133 = arith.constant 0 : index
    %c0_134 = arith.constant 0 : index
    %340 = vector.load %arg19[%339, %c0_133, %c0_134] : memref<8x8x128xf32, #tpu.memory_space<vmem>>, vector<1x8x128xf32>
    %341 = vector.shape_cast %340 : vector<1x8x128xf32> to vector<8x128xf32>
    %342 = vector.shape_cast %290 : vector<8x128xf32> to vector<1x8x128xf32>
    tpu.vector_store %arg19[%339, %c0_133, %c0_134], %342 {strides = array<i32>} : memref<8x8x128xf32, #tpu.memory_space<vmem>>, vector<1x8x128xf32>,
    %343 = arith.index_cast %c3_i32 : i32 to index
    %c0_135 = arith.constant 0 : index
    %c0_136 = arith.constant 0 : index
    %344 = vector.load %arg20[%343, %c0_135, %c0_136] : memref<8x8x128xf32, #tpu.memory_space<vmem>>, vector<1x8x128xf32>
    %345 = vector.shape_cast %344 : vector<1x8x128xf32> to vector<8x128xf32>
    %346 = vector.shape_cast %334 : vector<8x128xf32> to vector<1x8x128xf32>
    tpu.vector_store %arg20[%343, %c0_135, %c0_136], %346 {strides = array<i32>} : memref<8x8x128xf32, #tpu.memory_space<vmem>>, vector<1x8x128xf32>,
    %c4_i32 = arith.constant 4 : i32
    %347 = arith.index_cast %c4_i32 : i32 to index
    %c0_137 = arith.constant 0 : index
    %c0_138 = arith.constant 0 : index
    %348 = vector.load %arg1[%347, %c0_137, %c0_138] : memref<8x8x128xf32, #tpu.memory_space<vmem>>, vector<1x8x128xf32>
    %349 = vector.shape_cast %348 : vector<1x8x128xf32> to vector<8x128xf32>
    %350 = arith.addf %349, %300 : vector<8x128xf32>
    %351 = arith.mulf %16, %277 : vector<8x128xf32>
    %352 = arith.mulf %18, %295 : vector<8x128xf32>
    %353 = arith.addf %351, %352 : vector<8x128xf32>
    %cst_139 = arith.constant 1.800000e+00 : f32
    %354 = vector.broadcast %cst_139 : f32 to vector<8x128xf32>
    %355 = arith.mulf %354, %353 : vector<8x128xf32>
    %cst_140 = arith.constant 0.00999999977 : f32
    %356 = vector.broadcast %cst_140 : f32 to vector<8x128xf32>
    %357 = arith.addf %356, %355 : vector<8x128xf32>
    %358 = arith.mulf %290, %11 : vector<8x128xf32>
    %cst_141 = arith.constant 1.000000e+00 : f32
    %359 = vector.broadcast %cst_141 : f32 to vector<8x128xf32>
    %360 = arith.mulf %359, %350 : vector<8x128xf32>
    %361 = arith.mulf %13, %360 : vector<8x128xf32>
    %362 = arith.addf %358, %361 : vector<8x128xf32>
    %363 = arith.mulf %357, %295 : vector<8x128xf32>
    %cst_142 = arith.constant 1.000000e+00 : f32
    %364 = vector.broadcast %cst_142 : f32 to vector<8x128xf32>
    %365 = arith.mulf %363, %364 : vector<8x128xf32>
    %366 = arith.subf %362, %365 : vector<8x128xf32>
    %367 = arith.subf %366, %357 : vector<8x128xf32>
    %cst_143 = arith.constant 0.000000e+00 : f32
    %368 = vector.broadcast %cst_143 : f32 to vector<8x128xf32>
    %369 = arith.cmpf ogt, %367, %368 : vector<8x128xf32>
    %370 = arith.extui %369 : vector<8x128xi1> to vector<8x128xi32>
    %371 = arith.sitofp %370 : vector<8x128xi32> to vector<8x128xf32>
    %372 = arith.truncf %371 : vector<8x128xf32> to vector<8x128xbf16>
    %c0_144 = arith.constant 0 : index
    %c0_145 = arith.constant 0 : index
    %373 = vector.load %arg9[%c0_144, %c0_145] : memref<128x256xbf16, #tpu.memory_space<vmem>>, vector<128x256xbf16>
    %cst_146 = arith.constant dense<0.000000e+00> : vector<8x256xf32>
    %374 = tpu.matmul %372, %373, %cst_146 {dimension_numbers = #tpu.dot_dimension_numbers<[1], [0], [0], [1], [0, 0, 1, 1], [], []>} : vector<8x128xbf16>, vector<128x256xbf16>, vector<8x256xf32> -> vector<8x256xf32>
    %375 = vector.extract_strided_slice %374 {offsets = [0, 0], sizes = [8, 128], strides = [1, 1]} : vector<8x256xf32> to vector<8x128xf32>
    %376 = vector.extract_strided_slice %374 {offsets = [0, 128], sizes = [8, 128], strides = [1, 1]} : vector<8x256xf32> to vector<8x128xf32>
    %377 = arith.addf %375, %329 : vector<8x128xf32>
    %378 = arith.addf %377, %5 : vector<8x128xf32>
    %379 = arith.mulf %26, %305 : vector<8x128xf32>
    %380 = arith.mulf %28, %323 : vector<8x128xf32>
    %381 = arith.addf %379, %380 : vector<8x128xf32>
    %cst_147 = arith.constant 1.800000e+00 : f32
    %382 = vector.broadcast %cst_147 : f32 to vector<8x128xf32>
    %383 = arith.mulf %382, %381 : vector<8x128xf32>
    %cst_148 = arith.constant 0.00999999977 : f32
    %384 = vector.broadcast %cst_148 : f32 to vector<8x128xf32>
    %385 = arith.addf %384, %383 : vector<8x128xf32>
    %386 = arith.mulf %318, %21 : vector<8x128xf32>
    %cst_149 = arith.constant 1.000000e+00 : f32
    %387 = vector.broadcast %cst_149 : f32 to vector<8x128xf32>
    %388 = arith.mulf %387, %378 : vector<8x128xf32>
    %389 = arith.mulf %23, %388 : vector<8x128xf32>
    %390 = arith.addf %386, %389 : vector<8x128xf32>
    %391 = arith.mulf %385, %323 : vector<8x128xf32>
    %cst_150 = arith.constant 1.000000e+00 : f32
    %392 = vector.broadcast %cst_150 : f32 to vector<8x128xf32>
    %393 = arith.mulf %391, %392 : vector<8x128xf32>
    %394 = arith.subf %390, %393 : vector<8x128xf32>
    %395 = arith.subf %394, %385 : vector<8x128xf32>
    %cst_151 = arith.constant 0.000000e+00 : f32
    %396 = vector.broadcast %cst_151 : f32 to vector<8x128xf32>
    %397 = arith.cmpf ogt, %395, %396 : vector<8x128xf32>
    %398 = arith.extui %397 : vector<8x128xi1> to vector<8x128xi32>
    %399 = arith.sitofp %398 : vector<8x128xi32> to vector<8x128xf32>
    %400 = arith.truncf %399 : vector<8x128xf32> to vector<8x128xbf16>
    %c0_152 = arith.constant 0 : index
    %c0_153 = arith.constant 0 : index
    %401 = vector.load %arg10[%c0_152, %c0_153] : memref<128x256xbf16, #tpu.memory_space<vmem>>, vector<128x256xbf16>
    %cst_154 = arith.constant dense<0.000000e+00> : vector<8x256xf32>
    %402 = tpu.matmul %400, %401, %cst_154 {dimension_numbers = #tpu.dot_dimension_numbers<[1], [0], [0], [1], [0, 0, 1, 1], [], []>} : vector<8x128xbf16>, vector<128x256xbf16>, vector<8x256xf32> -> vector<8x256xf32>
    %403 = vector.extract_strided_slice %402 {offsets = [0, 0], sizes = [8, 128], strides = [1, 1]} : vector<8x256xf32> to vector<8x128xf32>
    %404 = arith.addf %403, %8 : vector<8x128xf32>
    %405 = vector.extract_strided_slice %402 {offsets = [0, 128], sizes = [8, 128], strides = [1, 1]} : vector<8x256xf32> to vector<8x128xf32>
    %406 = arith.mulf %334, %31 : vector<8x128xf32>
    %cst_155 = arith.constant 1.000000e+00 : f32
    %407 = vector.broadcast %cst_155 : f32 to vector<8x128xf32>
    %408 = arith.mulf %407, %404 : vector<8x128xf32>
    %409 = arith.mulf %33, %408 : vector<8x128xf32>
    %410 = arith.addf %406, %409 : vector<8x128xf32>
    %411 = arith.index_cast %c4_i32 : i32 to index
    %c0_156 = arith.constant 0 : index
    %c0_157 = arith.constant 0 : index
    %412 = vector.load %arg18[%411, %c0_156, %c0_157] : memref<8x8x128xf32, #tpu.memory_space<vmem>>, vector<1x8x128xf32>
    %413 = vector.shape_cast %412 : vector<1x8x128xf32> to vector<8x128xf32>
    %414 = vector.shape_cast %371 : vector<8x128xf32> to vector<1x8x128xf32>
    tpu.vector_store %arg18[%411, %c0_156, %c0_157], %414 {strides = array<i32>} : memref<8x8x128xf32, #tpu.memory_space<vmem>>, vector<1x8x128xf32>,
    %415 = arith.index_cast %c4_i32 : i32 to index
    %c0_158 = arith.constant 0 : index
    %c0_159 = arith.constant 0 : index
    %416 = vector.load %arg19[%415, %c0_158, %c0_159] : memref<8x8x128xf32, #tpu.memory_space<vmem>>, vector<1x8x128xf32>
    %417 = vector.shape_cast %416 : vector<1x8x128xf32> to vector<8x128xf32>
    %418 = vector.shape_cast %366 : vector<8x128xf32> to vector<1x8x128xf32>
    tpu.vector_store %arg19[%415, %c0_158, %c0_159], %418 {strides = array<i32>} : memref<8x8x128xf32, #tpu.memory_space<vmem>>, vector<1x8x128xf32>,
    %419 = arith.index_cast %c4_i32 : i32 to index
    %c0_160 = arith.constant 0 : index
    %c0_161 = arith.constant 0 : index
    %420 = vector.load %arg20[%419, %c0_160, %c0_161] : memref<8x8x128xf32, #tpu.memory_space<vmem>>, vector<1x8x128xf32>
    %421 = vector.shape_cast %420 : vector<1x8x128xf32> to vector<8x128xf32>
    %422 = vector.shape_cast %410 : vector<8x128xf32> to vector<1x8x128xf32>
    tpu.vector_store %arg20[%419, %c0_160, %c0_161], %422 {strides = array<i32>} : memref<8x8x128xf32, #tpu.memory_space<vmem>>, vector<1x8x128xf32>,
    %c5_i32 = arith.constant 5 : i32
    %423 = arith.index_cast %c5_i32 : i32 to index
    %c0_162 = arith.constant 0 : index
    %c0_163 = arith.constant 0 : index
    %424 = vector.load %arg1[%423, %c0_162, %c0_163] : memref<8x8x128xf32, #tpu.memory_space<vmem>>, vector<1x8x128xf32>
    %425 = vector.shape_cast %424 : vector<1x8x128xf32> to vector<8x128xf32>
    %426 = arith.addf %425, %376 : vector<8x128xf32>
    %427 = arith.mulf %16, %353 : vector<8x128xf32>
    %428 = arith.mulf %18, %371 : vector<8x128xf32>
    %429 = arith.addf %427, %428 : vector<8x128xf32>
    %cst_164 = arith.constant 1.800000e+00 : f32
    %430 = vector.broadcast %cst_164 : f32 to vector<8x128xf32>
    %431 = arith.mulf %430, %429 : vector<8x128xf32>
    %cst_165 = arith.constant 0.00999999977 : f32
    %432 = vector.broadcast %cst_165 : f32 to vector<8x128xf32>
    %433 = arith.addf %432, %431 : vector<8x128xf32>
    %434 = arith.mulf %366, %11 : vector<8x128xf32>
    %cst_166 = arith.constant 1.000000e+00 : f32
    %435 = vector.broadcast %cst_166 : f32 to vector<8x128xf32>
    %436 = arith.mulf %435, %426 : vector<8x128xf32>
    %437 = arith.mulf %13, %436 : vector<8x128xf32>
    %438 = arith.addf %434, %437 : vector<8x128xf32>
    %439 = arith.mulf %433, %371 : vector<8x128xf32>
    %cst_167 = arith.constant 1.000000e+00 : f32
    %440 = vector.broadcast %cst_167 : f32 to vector<8x128xf32>
    %441 = arith.mulf %439, %440 : vector<8x128xf32>
    %442 = arith.subf %438, %441 : vector<8x128xf32>
    %443 = arith.subf %442, %433 : vector<8x128xf32>
    %cst_168 = arith.constant 0.000000e+00 : f32
    %444 = vector.broadcast %cst_168 : f32 to vector<8x128xf32>
    %445 = arith.cmpf ogt, %443, %444 : vector<8x128xf32>
    %446 = arith.extui %445 : vector<8x128xi1> to vector<8x128xi32>
    %447 = arith.sitofp %446 : vector<8x128xi32> to vector<8x128xf32>
    %448 = arith.truncf %447 : vector<8x128xf32> to vector<8x128xbf16>
    %c0_169 = arith.constant 0 : index
    %c0_170 = arith.constant 0 : index
    %449 = vector.load %arg9[%c0_169, %c0_170] : memref<128x256xbf16, #tpu.memory_space<vmem>>, vector<128x256xbf16>
    %cst_171 = arith.constant dense<0.000000e+00> : vector<8x256xf32>
    %450 = tpu.matmul %448, %449, %cst_171 {dimension_numbers = #tpu.dot_dimension_numbers<[1], [0], [0], [1], [0, 0, 1, 1], [], []>} : vector<8x128xbf16>, vector<128x256xbf16>, vector<8x256xf32> -> vector<8x256xf32>
    %451 = vector.extract_strided_slice %450 {offsets = [0, 0], sizes = [8, 128], strides = [1, 1]} : vector<8x256xf32> to vector<8x128xf32>
    %452 = vector.extract_strided_slice %450 {offsets = [0, 128], sizes = [8, 128], strides = [1, 1]} : vector<8x256xf32> to vector<8x128xf32>
    %453 = arith.addf %451, %405 : vector<8x128xf32>
    %454 = arith.addf %453, %5 : vector<8x128xf32>
    %455 = arith.mulf %26, %381 : vector<8x128xf32>
    %456 = arith.mulf %28, %399 : vector<8x128xf32>
    %457 = arith.addf %455, %456 : vector<8x128xf32>
    %cst_172 = arith.constant 1.800000e+00 : f32
    %458 = vector.broadcast %cst_172 : f32 to vector<8x128xf32>
    %459 = arith.mulf %458, %457 : vector<8x128xf32>
    %cst_173 = arith.constant 0.00999999977 : f32
    %460 = vector.broadcast %cst_173 : f32 to vector<8x128xf32>
    %461 = arith.addf %460, %459 : vector<8x128xf32>
    %462 = arith.mulf %394, %21 : vector<8x128xf32>
    %cst_174 = arith.constant 1.000000e+00 : f32
    %463 = vector.broadcast %cst_174 : f32 to vector<8x128xf32>
    %464 = arith.mulf %463, %454 : vector<8x128xf32>
    %465 = arith.mulf %23, %464 : vector<8x128xf32>
    %466 = arith.addf %462, %465 : vector<8x128xf32>
    %467 = arith.mulf %461, %399 : vector<8x128xf32>
    %cst_175 = arith.constant 1.000000e+00 : f32
    %468 = vector.broadcast %cst_175 : f32 to vector<8x128xf32>
    %469 = arith.mulf %467, %468 : vector<8x128xf32>
    %470 = arith.subf %466, %469 : vector<8x128xf32>
    %471 = arith.subf %470, %461 : vector<8x128xf32>
    %cst_176 = arith.constant 0.000000e+00 : f32
    %472 = vector.broadcast %cst_176 : f32 to vector<8x128xf32>
    %473 = arith.cmpf ogt, %471, %472 : vector<8x128xf32>
    %474 = arith.extui %473 : vector<8x128xi1> to vector<8x128xi32>
    %475 = arith.sitofp %474 : vector<8x128xi32> to vector<8x128xf32>
    %476 = arith.truncf %475 : vector<8x128xf32> to vector<8x128xbf16>
    %c0_177 = arith.constant 0 : index
    %c0_178 = arith.constant 0 : index
    %477 = vector.load %arg10[%c0_177, %c0_178] : memref<128x256xbf16, #tpu.memory_space<vmem>>, vector<128x256xbf16>
    %cst_179 = arith.constant dense<0.000000e+00> : vector<8x256xf32>
    %478 = tpu.matmul %476, %477, %cst_179 {dimension_numbers = #tpu.dot_dimension_numbers<[1], [0], [0], [1], [0, 0, 1, 1], [], []>} : vector<8x128xbf16>, vector<128x256xbf16>, vector<8x256xf32> -> vector<8x256xf32>
    %479 = vector.extract_strided_slice %478 {offsets = [0, 0], sizes = [8, 128], strides = [1, 1]} : vector<8x256xf32> to vector<8x128xf32>
    %480 = arith.addf %479, %8 : vector<8x128xf32>
    %481 = vector.extract_strided_slice %478 {offsets = [0, 128], sizes = [8, 128], strides = [1, 1]} : vector<8x256xf32> to vector<8x128xf32>
    %482 = arith.mulf %410, %31 : vector<8x128xf32>
    %cst_180 = arith.constant 1.000000e+00 : f32
    %483 = vector.broadcast %cst_180 : f32 to vector<8x128xf32>
    %484 = arith.mulf %483, %480 : vector<8x128xf32>
    %485 = arith.mulf %33, %484 : vector<8x128xf32>
    %486 = arith.addf %482, %485 : vector<8x128xf32>
    %487 = arith.index_cast %c5_i32 : i32 to index
    %c0_181 = arith.constant 0 : index
    %c0_182 = arith.constant 0 : index
    %488 = vector.load %arg18[%487, %c0_181, %c0_182] : memref<8x8x128xf32, #tpu.memory_space<vmem>>, vector<1x8x128xf32>
    %489 = vector.shape_cast %488 : vector<1x8x128xf32> to vector<8x128xf32>
    %490 = vector.shape_cast %447 : vector<8x128xf32> to vector<1x8x128xf32>
    tpu.vector_store %arg18[%487, %c0_181, %c0_182], %490 {strides = array<i32>} : memref<8x8x128xf32, #tpu.memory_space<vmem>>, vector<1x8x128xf32>,
    %491 = arith.index_cast %c5_i32 : i32 to index
    %c0_183 = arith.constant 0 : index
    %c0_184 = arith.constant 0 : index
    %492 = vector.load %arg19[%491, %c0_183, %c0_184] : memref<8x8x128xf32, #tpu.memory_space<vmem>>, vector<1x8x128xf32>
    %493 = vector.shape_cast %492 : vector<1x8x128xf32> to vector<8x128xf32>
    %494 = vector.shape_cast %442 : vector<8x128xf32> to vector<1x8x128xf32>
    tpu.vector_store %arg19[%491, %c0_183, %c0_184], %494 {strides = array<i32>} : memref<8x8x128xf32, #tpu.memory_space<vmem>>, vector<1x8x128xf32>,
    %495 = arith.index_cast %c5_i32 : i32 to index
    %c0_185 = arith.constant 0 : index
    %c0_186 = arith.constant 0 : index
    %496 = vector.load %arg20[%495, %c0_185, %c0_186] : memref<8x8x128xf32, #tpu.memory_space<vmem>>, vector<1x8x128xf32>
    %497 = vector.shape_cast %496 : vector<1x8x128xf32> to vector<8x128xf32>
    %498 = vector.shape_cast %486 : vector<8x128xf32> to vector<1x8x128xf32>
    tpu.vector_store %arg20[%495, %c0_185, %c0_186], %498 {strides = array<i32>} : memref<8x8x128xf32, #tpu.memory_space<vmem>>, vector<1x8x128xf32>,
    %c6_i32 = arith.constant 6 : i32
    %499 = arith.index_cast %c6_i32 : i32 to index
    %c0_187 = arith.constant 0 : index
    %c0_188 = arith.constant 0 : index
    %500 = vector.load %arg1[%499, %c0_187, %c0_188] : memref<8x8x128xf32, #tpu.memory_space<vmem>>, vector<1x8x128xf32>
    %501 = vector.shape_cast %500 : vector<1x8x128xf32> to vector<8x128xf32>
    %502 = arith.addf %501, %452 : vector<8x128xf32>
    %503 = arith.mulf %16, %429 : vector<8x128xf32>
    %504 = arith.mulf %18, %447 : vector<8x128xf32>
    %505 = arith.addf %503, %504 : vector<8x128xf32>
    %cst_189 = arith.constant 1.800000e+00 : f32
    %506 = vector.broadcast %cst_189 : f32 to vector<8x128xf32>
    %507 = arith.mulf %506, %505 : vector<8x128xf32>
    %cst_190 = arith.constant 0.00999999977 : f32
    %508 = vector.broadcast %cst_190 : f32 to vector<8x128xf32>
    %509 = arith.addf %508, %507 : vector<8x128xf32>
    %510 = arith.mulf %442, %11 : vector<8x128xf32>
    %cst_191 = arith.constant 1.000000e+00 : f32
    %511 = vector.broadcast %cst_191 : f32 to vector<8x128xf32>
    %512 = arith.mulf %511, %502 : vector<8x128xf32>
    %513 = arith.mulf %13, %512 : vector<8x128xf32>
    %514 = arith.addf %510, %513 : vector<8x128xf32>
    %515 = arith.mulf %509, %447 : vector<8x128xf32>
    %cst_192 = arith.constant 1.000000e+00 : f32
    %516 = vector.broadcast %cst_192 : f32 to vector<8x128xf32>
    %517 = arith.mulf %515, %516 : vector<8x128xf32>
    %518 = arith.subf %514, %517 : vector<8x128xf32>
    %519 = arith.subf %518, %509 : vector<8x128xf32>
    %cst_193 = arith.constant 0.000000e+00 : f32
    %520 = vector.broadcast %cst_193 : f32 to vector<8x128xf32>
    %521 = arith.cmpf ogt, %519, %520 : vector<8x128xf32>
    %522 = arith.extui %521 : vector<8x128xi1> to vector<8x128xi32>
    %523 = arith.sitofp %522 : vector<8x128xi32> to vector<8x128xf32>
    %524 = arith.truncf %523 : vector<8x128xf32> to vector<8x128xbf16>
    %c0_194 = arith.constant 0 : index
    %c0_195 = arith.constant 0 : index
    %525 = vector.load %arg9[%c0_194, %c0_195] : memref<128x256xbf16, #tpu.memory_space<vmem>>, vector<128x256xbf16>
    %cst_196 = arith.constant dense<0.000000e+00> : vector<8x256xf32>
    %526 = tpu.matmul %524, %525, %cst_196 {dimension_numbers = #tpu.dot_dimension_numbers<[1], [0], [0], [1], [0, 0, 1, 1], [], []>} : vector<8x128xbf16>, vector<128x256xbf16>, vector<8x256xf32> -> vector<8x256xf32>
    %527 = vector.extract_strided_slice %526 {offsets = [0, 0], sizes = [8, 128], strides = [1, 1]} : vector<8x256xf32> to vector<8x128xf32>
    %528 = vector.extract_strided_slice %526 {offsets = [0, 128], sizes = [8, 128], strides = [1, 1]} : vector<8x256xf32> to vector<8x128xf32>
    %529 = arith.addf %527, %481 : vector<8x128xf32>
    %530 = arith.addf %529, %5 : vector<8x128xf32>
    %531 = arith.mulf %26, %457 : vector<8x128xf32>
    %532 = arith.mulf %28, %475 : vector<8x128xf32>
    %533 = arith.addf %531, %532 : vector<8x128xf32>
    %cst_197 = arith.constant 1.800000e+00 : f32
    %534 = vector.broadcast %cst_197 : f32 to vector<8x128xf32>
    %535 = arith.mulf %534, %533 : vector<8x128xf32>
    %cst_198 = arith.constant 0.00999999977 : f32
    %536 = vector.broadcast %cst_198 : f32 to vector<8x128xf32>
    %537 = arith.addf %536, %535 : vector<8x128xf32>
    %538 = arith.mulf %470, %21 : vector<8x128xf32>
    %cst_199 = arith.constant 1.000000e+00 : f32
    %539 = vector.broadcast %cst_199 : f32 to vector<8x128xf32>
    %540 = arith.mulf %539, %530 : vector<8x128xf32>
    %541 = arith.mulf %23, %540 : vector<8x128xf32>
    %542 = arith.addf %538, %541 : vector<8x128xf32>
    %543 = arith.mulf %537, %475 : vector<8x128xf32>
    %cst_200 = arith.constant 1.000000e+00 : f32
    %544 = vector.broadcast %cst_200 : f32 to vector<8x128xf32>
    %545 = arith.mulf %543, %544 : vector<8x128xf32>
    %546 = arith.subf %542, %545 : vector<8x128xf32>
    %547 = arith.subf %546, %537 : vector<8x128xf32>
    %cst_201 = arith.constant 0.000000e+00 : f32
    %548 = vector.broadcast %cst_201 : f32 to vector<8x128xf32>
    %549 = arith.cmpf ogt, %547, %548 : vector<8x128xf32>
    %550 = arith.extui %549 : vector<8x128xi1> to vector<8x128xi32>
    %551 = arith.sitofp %550 : vector<8x128xi32> to vector<8x128xf32>
    %552 = arith.truncf %551 : vector<8x128xf32> to vector<8x128xbf16>
    %c0_202 = arith.constant 0 : index
    %c0_203 = arith.constant 0 : index
    %553 = vector.load %arg10[%c0_202, %c0_203] : memref<128x256xbf16, #tpu.memory_space<vmem>>, vector<128x256xbf16>
    %cst_204 = arith.constant dense<0.000000e+00> : vector<8x256xf32>
    %554 = tpu.matmul %552, %553, %cst_204 {dimension_numbers = #tpu.dot_dimension_numbers<[1], [0], [0], [1], [0, 0, 1, 1], [], []>} : vector<8x128xbf16>, vector<128x256xbf16>, vector<8x256xf32> -> vector<8x256xf32>
    %555 = vector.extract_strided_slice %554 {offsets = [0, 0], sizes = [8, 128], strides = [1, 1]} : vector<8x256xf32> to vector<8x128xf32>
    %556 = arith.addf %555, %8 : vector<8x128xf32>
    %557 = vector.extract_strided_slice %554 {offsets = [0, 128], sizes = [8, 128], strides = [1, 1]} : vector<8x256xf32> to vector<8x128xf32>
    %558 = arith.mulf %486, %31 : vector<8x128xf32>
    %cst_205 = arith.constant 1.000000e+00 : f32
    %559 = vector.broadcast %cst_205 : f32 to vector<8x128xf32>
    %560 = arith.mulf %559, %556 : vector<8x128xf32>
    %561 = arith.mulf %33, %560 : vector<8x128xf32>
    %562 = arith.addf %558, %561 : vector<8x128xf32>
    %563 = arith.index_cast %c6_i32 : i32 to index
    %c0_206 = arith.constant 0 : index
    %c0_207 = arith.constant 0 : index
    %564 = vector.load %arg18[%563, %c0_206, %c0_207] : memref<8x8x128xf32, #tpu.memory_space<vmem>>, vector<1x8x128xf32>
    %565 = vector.shape_cast %564 : vector<1x8x128xf32> to vector<8x128xf32>
    %566 = vector.shape_cast %523 : vector<8x128xf32> to vector<1x8x128xf32>
    tpu.vector_store %arg18[%563, %c0_206, %c0_207], %566 {strides = array<i32>} : memref<8x8x128xf32, #tpu.memory_space<vmem>>, vector<1x8x128xf32>,
    %567 = arith.index_cast %c6_i32 : i32 to index
    %c0_208 = arith.constant 0 : index
    %c0_209 = arith.constant 0 : index
    %568 = vector.load %arg19[%567, %c0_208, %c0_209] : memref<8x8x128xf32, #tpu.memory_space<vmem>>, vector<1x8x128xf32>
    %569 = vector.shape_cast %568 : vector<1x8x128xf32> to vector<8x128xf32>
    %570 = vector.shape_cast %518 : vector<8x128xf32> to vector<1x8x128xf32>
    tpu.vector_store %arg19[%567, %c0_208, %c0_209], %570 {strides = array<i32>} : memref<8x8x128xf32, #tpu.memory_space<vmem>>, vector<1x8x128xf32>,
    %571 = arith.index_cast %c6_i32 : i32 to index
    %c0_210 = arith.constant 0 : index
    %c0_211 = arith.constant 0 : index
    %572 = vector.load %arg20[%571, %c0_210, %c0_211] : memref<8x8x128xf32, #tpu.memory_space<vmem>>, vector<1x8x128xf32>
    %573 = vector.shape_cast %572 : vector<1x8x128xf32> to vector<8x128xf32>
    %574 = vector.shape_cast %562 : vector<8x128xf32> to vector<1x8x128xf32>
    tpu.vector_store %arg20[%571, %c0_210, %c0_211], %574 {strides = array<i32>} : memref<8x8x128xf32, #tpu.memory_space<vmem>>, vector<1x8x128xf32>,
    %c7_i32 = arith.constant 7 : i32
    %575 = arith.index_cast %c7_i32 : i32 to index
    %c0_212 = arith.constant 0 : index
    %c0_213 = arith.constant 0 : index
    %576 = vector.load %arg1[%575, %c0_212, %c0_213] : memref<8x8x128xf32, #tpu.memory_space<vmem>>, vector<1x8x128xf32>
    %577 = vector.shape_cast %576 : vector<1x8x128xf32> to vector<8x128xf32>
    %578 = arith.addf %577, %528 : vector<8x128xf32>
    %579 = arith.mulf %16, %505 : vector<8x128xf32>
    %580 = arith.mulf %18, %523 : vector<8x128xf32>
    %581 = arith.addf %579, %580 : vector<8x128xf32>
    %cst_214 = arith.constant 1.800000e+00 : f32
    %582 = vector.broadcast %cst_214 : f32 to vector<8x128xf32>
    %583 = arith.mulf %582, %581 : vector<8x128xf32>
    %cst_215 = arith.constant 0.00999999977 : f32
    %584 = vector.broadcast %cst_215 : f32 to vector<8x128xf32>
    %585 = arith.addf %584, %583 : vector<8x128xf32>
    %586 = arith.mulf %518, %11 : vector<8x128xf32>
    %cst_216 = arith.constant 1.000000e+00 : f32
    %587 = vector.broadcast %cst_216 : f32 to vector<8x128xf32>
    %588 = arith.mulf %587, %578 : vector<8x128xf32>
    %589 = arith.mulf %13, %588 : vector<8x128xf32>
    %590 = arith.addf %586, %589 : vector<8x128xf32>
    %591 = arith.mulf %585, %523 : vector<8x128xf32>
    %cst_217 = arith.constant 1.000000e+00 : f32
    %592 = vector.broadcast %cst_217 : f32 to vector<8x128xf32>
    %593 = arith.mulf %591, %592 : vector<8x128xf32>
    %594 = arith.subf %590, %593 : vector<8x128xf32>
    %595 = arith.subf %594, %585 : vector<8x128xf32>
    %cst_218 = arith.constant 0.000000e+00 : f32
    %596 = vector.broadcast %cst_218 : f32 to vector<8x128xf32>
    %597 = arith.cmpf ogt, %595, %596 : vector<8x128xf32>
    %598 = arith.extui %597 : vector<8x128xi1> to vector<8x128xi32>
    %599 = arith.sitofp %598 : vector<8x128xi32> to vector<8x128xf32>
    %600 = arith.truncf %599 : vector<8x128xf32> to vector<8x128xbf16>
    %c0_219 = arith.constant 0 : index
    %c0_220 = arith.constant 0 : index
    %601 = vector.load %arg9[%c0_219, %c0_220] : memref<128x256xbf16, #tpu.memory_space<vmem>>, vector<128x256xbf16>
    %cst_221 = arith.constant dense<0.000000e+00> : vector<8x256xf32>
    %602 = tpu.matmul %600, %601, %cst_221 {dimension_numbers = #tpu.dot_dimension_numbers<[1], [0], [0], [1], [0, 0, 1, 1], [], []>} : vector<8x128xbf16>, vector<128x256xbf16>, vector<8x256xf32> -> vector<8x256xf32>
    %603 = vector.extract_strided_slice %602 {offsets = [0, 0], sizes = [8, 128], strides = [1, 1]} : vector<8x256xf32> to vector<8x128xf32>
    %604 = vector.extract_strided_slice %602 {offsets = [0, 128], sizes = [8, 128], strides = [1, 1]} : vector<8x256xf32> to vector<8x128xf32>
    %605 = arith.addf %603, %557 : vector<8x128xf32>
    %606 = arith.addf %605, %5 : vector<8x128xf32>
    %607 = arith.mulf %26, %533 : vector<8x128xf32>
    %608 = arith.mulf %28, %551 : vector<8x128xf32>
    %609 = arith.addf %607, %608 : vector<8x128xf32>
    %cst_222 = arith.constant 1.800000e+00 : f32
    %610 = vector.broadcast %cst_222 : f32 to vector<8x128xf32>
    %611 = arith.mulf %610, %609 : vector<8x128xf32>
    %cst_223 = arith.constant 0.00999999977 : f32
    %612 = vector.broadcast %cst_223 : f32 to vector<8x128xf32>
    %613 = arith.addf %612, %611 : vector<8x128xf32>
    %614 = arith.mulf %546, %21 : vector<8x128xf32>
    %cst_224 = arith.constant 1.000000e+00 : f32
    %615 = vector.broadcast %cst_224 : f32 to vector<8x128xf32>
    %616 = arith.mulf %615, %606 : vector<8x128xf32>
    %617 = arith.mulf %23, %616 : vector<8x128xf32>
    %618 = arith.addf %614, %617 : vector<8x128xf32>
    %619 = arith.mulf %613, %551 : vector<8x128xf32>
    %cst_225 = arith.constant 1.000000e+00 : f32
    %620 = vector.broadcast %cst_225 : f32 to vector<8x128xf32>
    %621 = arith.mulf %619, %620 : vector<8x128xf32>
    %622 = arith.subf %618, %621 : vector<8x128xf32>
    %623 = arith.subf %622, %613 : vector<8x128xf32>
    %cst_226 = arith.constant 0.000000e+00 : f32
    %624 = vector.broadcast %cst_226 : f32 to vector<8x128xf32>
    %625 = arith.cmpf ogt, %623, %624 : vector<8x128xf32>
    %626 = arith.extui %625 : vector<8x128xi1> to vector<8x128xi32>
    %627 = arith.sitofp %626 : vector<8x128xi32> to vector<8x128xf32>
    %628 = arith.truncf %627 : vector<8x128xf32> to vector<8x128xbf16>
    %c0_227 = arith.constant 0 : index
    %c0_228 = arith.constant 0 : index
    %629 = vector.load %arg10[%c0_227, %c0_228] : memref<128x256xbf16, #tpu.memory_space<vmem>>, vector<128x256xbf16>
    %cst_229 = arith.constant dense<0.000000e+00> : vector<8x256xf32>
    %630 = tpu.matmul %628, %629, %cst_229 {dimension_numbers = #tpu.dot_dimension_numbers<[1], [0], [0], [1], [0, 0, 1, 1], [], []>} : vector<8x128xbf16>, vector<128x256xbf16>, vector<8x256xf32> -> vector<8x256xf32>
    %631 = vector.extract_strided_slice %630 {offsets = [0, 0], sizes = [8, 128], strides = [1, 1]} : vector<8x256xf32> to vector<8x128xf32>
    %632 = arith.addf %631, %8 : vector<8x128xf32>
    %633 = vector.extract_strided_slice %630 {offsets = [0, 128], sizes = [8, 128], strides = [1, 1]} : vector<8x256xf32> to vector<8x128xf32>
    %634 = arith.mulf %562, %31 : vector<8x128xf32>
    %cst_230 = arith.constant 1.000000e+00 : f32
    %635 = vector.broadcast %cst_230 : f32 to vector<8x128xf32>
    %636 = arith.mulf %635, %632 : vector<8x128xf32>
    %637 = arith.mulf %33, %636 : vector<8x128xf32>
    %638 = arith.addf %634, %637 : vector<8x128xf32>
    %639 = arith.index_cast %c7_i32 : i32 to index
    %c0_231 = arith.constant 0 : index
    %c0_232 = arith.constant 0 : index
    %640 = vector.load %arg18[%639, %c0_231, %c0_232] : memref<8x8x128xf32, #tpu.memory_space<vmem>>, vector<1x8x128xf32>
    %641 = vector.shape_cast %640 : vector<1x8x128xf32> to vector<8x128xf32>
    %642 = vector.shape_cast %599 : vector<8x128xf32> to vector<1x8x128xf32>
    tpu.vector_store %arg18[%639, %c0_231, %c0_232], %642 {strides = array<i32>} : memref<8x8x128xf32, #tpu.memory_space<vmem>>, vector<1x8x128xf32>,
    %643 = arith.index_cast %c7_i32 : i32 to index
    %c0_233 = arith.constant 0 : index
    %c0_234 = arith.constant 0 : index
    %644 = vector.load %arg19[%643, %c0_233, %c0_234] : memref<8x8x128xf32, #tpu.memory_space<vmem>>, vector<1x8x128xf32>
    %645 = vector.shape_cast %644 : vector<1x8x128xf32> to vector<8x128xf32>
    %646 = vector.shape_cast %594 : vector<8x128xf32> to vector<1x8x128xf32>
    tpu.vector_store %arg19[%643, %c0_233, %c0_234], %646 {strides = array<i32>} : memref<8x8x128xf32, #tpu.memory_space<vmem>>, vector<1x8x128xf32>,
    %647 = arith.index_cast %c7_i32 : i32 to index
    %c0_235 = arith.constant 0 : index
    %c0_236 = arith.constant 0 : index
    %648 = vector.load %arg20[%647, %c0_235, %c0_236] : memref<8x8x128xf32, #tpu.memory_space<vmem>>, vector<1x8x128xf32>
    %649 = vector.shape_cast %648 : vector<1x8x128xf32> to vector<8x128xf32>
    %650 = vector.shape_cast %638 : vector<8x128xf32> to vector<1x8x128xf32>
    tpu.vector_store %arg20[%647, %c0_235, %c0_236], %650 {strides = array<i32>} : memref<8x8x128xf32, #tpu.memory_space<vmem>>, vector<1x8x128xf32>,
    %c8_i32 = arith.constant 8 : i32
    %c0_237 = arith.constant 0 : index
    %c0_238 = arith.constant 0 : index
    %651 = vector.load %arg21[%c0_237, %c0_238] : memref<8x128xf32, #tpu.memory_space<vmem>>, vector<8x128xf32>
    tpu.vector_store %arg21[%c0_237, %c0_238], %594 {strides = array<i32>} : memref<8x128xf32, #tpu.memory_space<vmem>>, vector<8x128xf32>,
    %c0_239 = arith.constant 0 : index
    %c0_240 = arith.constant 0 : index
    %652 = vector.load %arg22[%c0_239, %c0_240] : memref<8x128xf32, #tpu.memory_space<vmem>>, vector<8x128xf32>
    tpu.vector_store %arg22[%c0_239, %c0_240], %599 {strides = array<i32>} : memref<8x128xf32, #tpu.memory_space<vmem>>, vector<8x128xf32>,
    %c0_241 = arith.constant 0 : index
    %c0_242 = arith.constant 0 : index
    %653 = vector.load %arg23[%c0_241, %c0_242] : memref<8x128xf32, #tpu.memory_space<vmem>>, vector<8x128xf32>
    tpu.vector_store %arg23[%c0_241, %c0_242], %581 {strides = array<i32>} : memref<8x128xf32, #tpu.memory_space<vmem>>, vector<8x128xf32>,
    %c0_243 = arith.constant 0 : index
    %c0_244 = arith.constant 0 : index
    %654 = vector.load %arg24[%c0_243, %c0_244] : memref<8x128xf32, #tpu.memory_space<vmem>>, vector<8x128xf32>
    tpu.vector_store %arg24[%c0_243, %c0_244], %604 {strides = array<i32>} : memref<8x128xf32, #tpu.memory_space<vmem>>, vector<8x128xf32>,
    %c0_245 = arith.constant 0 : index
    %c0_246 = arith.constant 0 : index
    %655 = vector.load %arg25[%c0_245, %c0_246] : memref<8x128xf32, #tpu.memory_space<vmem>>, vector<8x128xf32>
    tpu.vector_store %arg25[%c0_245, %c0_246], %622 {strides = array<i32>} : memref<8x128xf32, #tpu.memory_space<vmem>>, vector<8x128xf32>,
    %c0_247 = arith.constant 0 : index
    %c0_248 = arith.constant 0 : index
    %656 = vector.load %arg26[%c0_247, %c0_248] : memref<8x128xf32, #tpu.memory_space<vmem>>, vector<8x128xf32>
    tpu.vector_store %arg26[%c0_247, %c0_248], %627 {strides = array<i32>} : memref<8x128xf32, #tpu.memory_space<vmem>>, vector<8x128xf32>,
    %c0_249 = arith.constant 0 : index
    %c0_250 = arith.constant 0 : index
    %657 = vector.load %arg27[%c0_249, %c0_250] : memref<8x128xf32, #tpu.memory_space<vmem>>, vector<8x128xf32>
    tpu.vector_store %arg27[%c0_249, %c0_250], %609 {strides = array<i32>} : memref<8x128xf32, #tpu.memory_space<vmem>>, vector<8x128xf32>,
    %c0_251 = arith.constant 0 : index
    %c0_252 = arith.constant 0 : index
    %658 = vector.load %arg28[%c0_251, %c0_252] : memref<8x128xf32, #tpu.memory_space<vmem>>, vector<8x128xf32>
    tpu.vector_store %arg28[%c0_251, %c0_252], %633 {strides = array<i32>} : memref<8x128xf32, #tpu.memory_space<vmem>>, vector<8x128xf32>,
    %c0_253 = arith.constant 0 : index
    %c0_254 = arith.constant 0 : index
    %659 = vector.load %arg29[%c0_253, %c0_254] : memref<8x128xf32, #tpu.memory_space<vmem>>, vector<8x128xf32>
    tpu.vector_store %arg29[%c0_253, %c0_254], %638 {strides = array<i32>} : memref<8x128xf32, #tpu.memory_space<vmem>>, vector<8x128xf32>,
    return
  }
  func.func @transform_0(%arg0: i32) -> (i32, i32, i32) {
    %c0_i32 = arith.constant 0 : i32
    %c0_i32_0 = arith.constant 0 : i32
    %c0_i32_1 = arith.constant 0 : i32
    return %arg0, %c0_i32, %c0_i32_0 : i32, i32, i32
  }
  func.func @transform_1(%arg0: i32) -> (i32, i32) {
    %c0_i32 = arith.constant 0 : i32
    %c0_i32_0 = arith.constant 0 : i32
    %c0_i32_1 = arith.constant 0 : i32
    return %c0_i32, %c0_i32_0 : i32, i32
  }
  func.func @transform_2(%arg0: i32) -> (i32, i32) {
    %c0_i32 = arith.constant 0 : i32
    %c0_i32_0 = arith.constant 0 : i32
    %c0_i32_1 = arith.constant 0 : i32
    return %c0_i32, %c0_i32_0 : i32, i32
  }
  func.func @transform_3(%arg0: i32) -> (i32, i32) {
    %c0_i32 = arith.constant 0 : i32
    %c0_i32_0 = arith.constant 0 : i32
    %c0_i32_1 = arith.constant 0 : i32
    return %c0_i32, %c0_i32_0 : i32, i32
  }
  func.func @transform_4(%arg0: i32) -> (i32, i32) {
    %c0_i32 = arith.constant 0 : i32
    %c0_i32_0 = arith.constant 0 : i32
    %c0_i32_1 = arith.constant 0 : i32
    return %c0_i32, %c0_i32_0 : i32, i32
  }
  func.func @transform_5(%arg0: i32) -> (i32, i32) {
    %c0_i32 = arith.constant 0 : i32
    %c0_i32_0 = arith.constant 0 : i32
    %c0_i32_1 = arith.constant 0 : i32
    return %c0_i32, %c0_i32_0 : i32, i32
  }
  func.func @transform_6(%arg0: i32) -> (i32, i32) {
    %c0_i32 = arith.constant 0 : i32
    %c0_i32_0 = arith.constant 0 : i32
    %c0_i32_1 = arith.constant 0 : i32
    return %c0_i32, %c0_i32_0 : i32, i32
  }
  func.func @transform_7(%arg0: i32) -> (i32, i32) {
    %c0_i32 = arith.constant 0 : i32
    %c0_i32_0 = arith.constant 0 : i32
    %c0_i32_1 = arith.constant 0 : i32
    return %c0_i32, %c0_i32_0 : i32, i32
  }
  func.func @transform_8(%arg0: i32) -> (i32, i32) {
    %c0_i32 = arith.constant 0 : i32
    %c0_i32_0 = arith.constant 0 : i32
    %c0_i32_1 = arith.constant 0 : i32
    return %c0_i32, %c0_i32_0 : i32, i32
  }
  func.func @transform_9(%arg0: i32) -> (i32, i32) {
    %c0_i32 = arith.constant 0 : i32
    %c0_i32_0 = arith.constant 0 : i32
    %c0_i32_1 = arith.constant 0 : i32
    return %c0_i32, %c0_i32_0 : i32, i32
  }
  func.func @transform_10(%arg0: i32) -> (i32, i32) {
    %c0_i32 = arith.constant 0 : i32
    %c0_i32_0 = arith.constant 0 : i32
    %c0_i32_1 = arith.constant 0 : i32
    return %c0_i32, %c0_i32_0 : i32, i32
  }
  func.func @transform_11(%arg0: i32) -> (i32, i32) {
    %c0_i32 = arith.constant 0 : i32
    %c0_i32_0 = arith.constant 0 : i32
    %c0_i32_1 = arith.constant 0 : i32
    return %c0_i32, %c0_i32_0 : i32, i32
  }
  func.func @transform_12(%arg0: i32) -> (i32, i32) {
    %c0_i32 = arith.constant 0 : i32
    %c0_i32_0 = arith.constant 0 : i32
    %c0_i32_1 = arith.constant 0 : i32
    return %c0_i32, %c0_i32_0 : i32, i32
  }
  func.func @transform_13(%arg0: i32) -> (i32, i32) {
    %c0_i32 = arith.constant 0 : i32
    %c0_i32_0 = arith.constant 0 : i32
    %c0_i32_1 = arith.constant 0 : i32
    return %c0_i32, %c0_i32_0 : i32, i32
  }
  func.func @transform_14(%arg0: i32) -> (i32, i32) {
    %c0_i32 = arith.constant 0 : i32
    %c0_i32_0 = arith.constant 0 : i32
    %c0_i32_1 = arith.constant 0 : i32
    return %c0_i32, %c0_i32_0 : i32, i32
  }
  func.func @transform_15(%arg0: i32) -> (i32, i32) {
    %c0_i32 = arith.constant 0 : i32
    %c0_i32_0 = arith.constant 0 : i32
    %c0_i32_1 = arith.constant 0 : i32
    return %c0_i32, %c0_i32_0 : i32, i32
  }
  func.func @transform_16(%arg0: i32) -> (i32, i32) {
    %c0_i32 = arith.constant 0 : i32
    %c0_i32_0 = arith.constant 0 : i32
    %c0_i32_1 = arith.constant 0 : i32
    return %c0_i32, %c0_i32_0 : i32, i32
  }
  func.func @transform_17(%arg0: i32) -> (i32, i32, i32) {
    %c0_i32 = arith.constant 0 : i32
    %c0_i32_0 = arith.constant 0 : i32
    %c0_i32_1 = arith.constant 0 : i32
    return %arg0, %c0_i32, %c0_i32_0 : i32, i32, i32
  }
  func.func @transform_18(%arg0: i32) -> (i32, i32, i32) {
    %c0_i32 = arith.constant 0 : i32
    %c0_i32_0 = arith.constant 0 : i32
    %c0_i32_1 = arith.constant 0 : i32
    return %arg0, %c0_i32, %c0_i32_0 : i32, i32, i32
  }
  func.func @transform_19(%arg0: i32) -> (i32, i32, i32) {
    %c0_i32 = arith.constant 0 : i32
    %c0_i32_0 = arith.constant 0 : i32
    %c0_i32_1 = arith.constant 0 : i32
    return %arg0, %c0_i32, %c0_i32_0 : i32, i32, i32
  }
}

</mosaic_0001>

<llo_original>
// kernel: tpu_custom_call.1
$region0: #{tpu_custom_call.1}
  #allocation0 [shape = 'u32[]', space=smem, size = 0x4, offset = 0x4, fixed_abs, tag = 'smem constant byte address 0x4 - core index']
  #allocation1 [shape = 'u32[144,128]{1,0:T(1,128)}', space=vmem, size = 0x12000, scoped, tag = 'internal scratch']
  #allocation2 [shape = 'f32[8,128]{1,0:T(8,128)}', space=vmem, size = 0x1000, scoped, tag = 'scratch operand']
  #allocation3 [shape = 'f32[8,128]{1,0:T(8,128)}', space=vmem, size = 0x1000, scoped, tag = 'scratch operand']
  #allocation4 [shape = 'f32[8,128]{1,0:T(8,128)}', space=vmem, size = 0x1000, scoped, tag = 'scratch operand']
  #allocation5 [shape = 'f32[8,128]{1,0:T(8,128)}', space=vmem, size = 0x1000, scoped, tag = 'scratch operand']
  #allocation6 [shape = 'f32[8,128]{1,0:T(8,128)}', space=vmem, size = 0x1000, scoped, tag = 'scratch operand']
  #allocation7 [shape = 'f32[8,128]{1,0:T(8,128)}', space=vmem, size = 0x1000, scoped, tag = 'scratch operand']
  #allocation8 [shape = 'f32[8,128]{1,0:T(8,128)}', space=vmem, size = 0x1000, scoped, tag = 'scratch operand']
  #allocation9 [shape = 'f32[8,128]{1,0:T(8,128)}', space=vmem, size = 0x1000, scoped, tag = 'scratch operand']
  #allocation10 [shape = 'f32[8,128]{1,0:T(8,128)}', space=vmem, size = 0x1000, scoped, tag = 'scratch operand']
  %s0 = inlined_call_operand.hbm [shape: f32[8,8,128], index: 0, kind: input, shape index: {}]
  %s1 = inlined_call_operand.hbm [shape: f32[8,128], index: 1, kind: input, shape index: {}]
  %s2 = inlined_call_operand.hbm [shape: f32[8,128], index: 2, kind: input, shape index: {}]
  %s3 = inlined_call_operand.hbm [shape: f32[8,128], index: 3, kind: input, shape index: {}]
  %s4 = inlined_call_operand.hbm [shape: f32[8,128], index: 4, kind: input, shape index: {}]
  %s5 = inlined_call_operand.vmem [shape: f32[8,128], index: 5, kind: input, shape index: {}]
  %s6 = inlined_call_operand.hbm [shape: f32[8,128], index: 6, kind: input, shape index: {}]
  %s7 = inlined_call_operand.hbm [shape: f32[8,128], index: 7, kind: input, shape index: {}]
  %s8 = inlined_call_operand.hbm [shape: bf16[128,256], index: 8, kind: input, shape index: {}]
  %s9 = inlined_call_operand.hbm [shape: bf16[128,256], index: 9, kind: input, shape index: {}]
  %s10 = inlined_call_operand.vmem [shape: f32[1,128], index: 10, kind: input, shape index: {}]
  %s11 = inlined_call_operand.vmem [shape: f32[1,128], index: 11, kind: input, shape index: {}]
  %s12 = inlined_call_operand.vmem [shape: f32[1,128], index: 12, kind: input, shape index: {}]
  %s13 = inlined_call_operand.vmem [shape: f32[1,128], index: 13, kind: input, shape index: {}]
  %s14 = inlined_call_operand.vmem [shape: f32[1,128], index: 14, kind: input, shape index: {}]
  %s15 = inlined_call_operand.vmem [shape: f32[1,128], index: 15, kind: input, shape index: {}]
  %s16 = inlined_call_operand.vmem [shape: f32[1,128], index: 16, kind: input, shape index: {}]
  %s17 = inlined_call_operand.hbm [shape: f32[8,8,128], index: 17, kind: output, shape index: {0}]
  %s18 = inlined_call_operand.hbm [shape: f32[8,8,128], index: 18, kind: output, shape index: {1}]
  %s19 = inlined_call_operand.hbm [shape: f32[8,8,128], index: 19, kind: output, shape index: {2}]
  %20 = xla_tuple %s17, %s18, %s19
  %s21 = sld [smem:[#allocation0]]
  $region134: #{tpu_custom_call.1} parent=0
    _
  %s23 = ssub.s32 1, %s21
  %s24 = scalar_select 0, %s23, %s21
  $region1: #{tpu_custom_call.1} parent=0
    #allocation11 [shape = 'u8[32768]{0}', space=vmem, size = 0x8000, scoped, tag = 'input window, operand 0, single buffered']
    #allocation12 [shape = 's32[1]{0}', space=sflag, size = 0x4, scoped, tag = 'scoped memory for tpu_custom_call.1']
    #allocation13 [shape = 's32[1]{0}', space=sflag, size = 0x4, scoped, tag = 'scoped memory for tpu_custom_call.1']
    #allocation14 [shape = 'u8[4096]{0}', space=vmem, size = 0x1000, scoped, tag = 'input window, operand 1, single buffered']
    #allocation15 [shape = 's32[1]{0}', space=sflag, size = 0x4, scoped, tag = 'scoped memory for tpu_custom_call.1']
    #allocation16 [shape = 'u8[4096]{0}', space=vmem, size = 0x1000, scoped, tag = 'input window, operand 2, single buffered']
    #allocation17 [shape = 'u8[4096]{0}', space=vmem, size = 0x1000, scoped, tag = 'input window, operand 3, single buffered']
    #allocation18 [shape = 's32[1]{0}', space=sflag, size = 0x4, scoped, tag = 'scoped memory for tpu_custom_call.1']
    #allocation19 [shape = 'u8[4096]{0}', space=vmem, size = 0x1000, scoped, tag = 'input window, operand 4, single buffered']
    #allocation20 [shape = 'u8[4096]{0}', space=vmem, size = 0x1000, scoped, tag = 'input window, operand 6, single buffered']
    #allocation21 [shape = 's32[1]{0}', space=sflag, size = 0x4, scoped, tag = 'scoped memory for tpu_custom_call.1']
    #allocation22 [shape = 'u8[4096]{0}', space=vmem, size = 0x1000, scoped, tag = 'input window, operand 7, single buffered']
    #allocation23 [shape = 'u8[65536]{0}', space=vmem, size = 0x10000, scoped, tag = 'input window, operand 8, single buffered']
    #allocation24 [shape = 's32[1]{0}', space=sflag, size = 0x4, scoped, tag = 'scoped memory for tpu_custom_call.1']
    #allocation25 [shape = 'u8[65536]{0}', space=vmem, size = 0x10000, scoped, tag = 'input window, operand 9, single buffered']
    #allocation26 [shape = 'u8[32768]{0}', space=vmem, size = 0x8000, scoped, tag = 'output window, operand 0, single buffered']
    #allocation27 [shape = 'u8[32768]{0}', space=vmem, size = 0x8000, scoped, tag = 'output window, operand 1, single buffered']
    #allocation28 [shape = 's32[1]{0}', space=sflag, size = 0x4, scoped, tag = 'scoped memory for tpu_custom_call.1']
    #allocation29 [shape = 'u8[32768]{0}', space=vmem, size = 0x8000, scoped, tag = 'output window, operand 2, single buffered']
    %25 = vsyncpa [#allocation12], 0
    %26 = vsyncpa [#allocation15], 0
    %27 = vsyncpa [#allocation18], 0
    %28 = vsyncpa [#allocation21], 0
    %29 = vsyncpa [#allocation24], 0
    %30 = vsyncpa [#allocation13], 0
    %31 = vsyncpa [#allocation28], 0
    // Predicated region
    $region2: #{tpu_custom_call.1} parent=1 // pred_check
      _
    $region3: #{tpu_custom_call.1} parent=1 // pred_check_branch
      %33 = sbr.rel (0) target = $region5
    $region4: #{tpu_custom_call.1} parent=1 // pred_region
      %s35 = ssub.s32 1024, 1024
      %36 = vsyncadd [#allocation12], %s35
      %s37 = sshll.u32 [#allocation11], 4
      %s38 = int_to_ptr.vmem [resolvable:$true] %s37
      %43 = dma.hbm_to_vmem [thread:$0]  %s0, 1024, %s38, [#allocation12], 128, 128, 8
    $region5: #{tpu_custom_call.1} parent=1 // pred_fallthru
      _
    // Predicated region
    $region6: #{tpu_custom_call.1} parent=1 // pred_check
      _
    $region7: #{tpu_custom_call.1} parent=1 // pred_check_branch
      %45 = sbr.rel (0) target = $region9
    $region8: #{tpu_custom_call.1} parent=1 // pred_region
      %s47 = ssub.s32 128, 128
      %48 = vsyncadd [#allocation15], %s47
      %s50 = sshll.u32 [#allocation14], 4
      %s51 = int_to_ptr.vmem [resolvable:$true] %s50
      %53 = dma.hbm_to_vmem [thread:$0]  %s1, 128, %s51, [#allocation15]
    $region9: #{tpu_custom_call.1} parent=1 // pred_fallthru
      _
    // Predicated region
    $region10: #{tpu_custom_call.1} parent=1 // pred_check
      _
    $region11: #{tpu_custom_call.1} parent=1 // pred_check_branch
      %55 = sbr.rel (0) target = $region13
    $region12: #{tpu_custom_call.1} parent=1 // pred_region
      %s57 = ssub.s32 128, 128
      %58 = vsyncadd [#allocation15], %s57
      %s60 = sshll.u32 [#allocation16], 4
      %s61 = int_to_ptr.vmem [resolvable:$true] %s60
      %63 = dma.hbm_to_vmem [thread:$0]  %s2, 128, %s61, [#allocation15]
    $region13: #{tpu_custom_call.1} parent=1 // pred_fallthru
      _
    // Predicated region
    $region14: #{tpu_custom_call.1} parent=1 // pred_check
      _
    $region15: #{tpu_custom_call.1} parent=1 // pred_check_branch
      %65 = sbr.rel (0) target = $region17
    $region16: #{tpu_custom_call.1} parent=1 // pred_region
      %s67 = ssub.s32 128, 128
      %68 = vsyncadd [#allocation18], %s67
      %s70 = sshll.u32 [#allocation17], 4
      %s71 = int_to_ptr.vmem [resolvable:$true] %s70
      %73 = dma.hbm_to_vmem [thread:$0]  %s3, 128, %s71, [#allocation18]
    $region17: #{tpu_custom_call.1} parent=1 // pred_fallthru
      _
    // Predicated region
    $region18: #{tpu_custom_call.1} parent=1 // pred_check
      _
    $region19: #{tpu_custom_call.1} parent=1 // pred_check_branch
      %75 = sbr.rel (0) target = $region21
    $region20: #{tpu_custom_call.1} parent=1 // pred_region
      %s77 = ssub.s32 128, 128
      %78 = vsyncadd [#allocation18], %s77
      %s80 = sshll.u32 [#allocation19], 4
      %s81 = int_to_ptr.vmem [resolvable:$true] %s80
      %83 = dma.hbm_to_vmem [thread:$0]  %s4, 128, %s81, [#allocation18]
    $region21: #{tpu_custom_call.1} parent=1 // pred_fallthru
      _
    // Predicated region
    $region22: #{tpu_custom_call.1} parent=1 // pred_check
      _
    $region23: #{tpu_custom_call.1} parent=1 // pred_check_branch
      %85 = sbr.rel (0) target = $region25
    $region24: #{tpu_custom_call.1} parent=1 // pred_region
      _
    $region25: #{tpu_custom_call.1} parent=1 // pred_fallthru
      _
    // Predicated region
    $region26: #{tpu_custom_call.1} parent=1 // pred_check
      _
    $region27: #{tpu_custom_call.1} parent=1 // pred_check_branch
      %87 = sbr.rel (0) target = $region29
    $region28: #{tpu_custom_call.1} parent=1 // pred_region
      %s89 = ssub.s32 128, 128
      %90 = vsyncadd [#allocation21], %s89
      %s92 = sshll.u32 [#allocation20], 4
      %s93 = int_to_ptr.vmem [resolvable:$true] %s92
      %95 = dma.hbm_to_vmem [thread:$0]  %s6, 128, %s93, [#allocation21]
    $region29: #{tpu_custom_call.1} parent=1 // pred_fallthru
      _
    // Predicated region
    $region30: #{tpu_custom_call.1} parent=1 // pred_check
      _
    $region31: #{tpu_custom_call.1} parent=1 // pred_check_branch
      %97 = sbr.rel (0) target = $region33
    $region32: #{tpu_custom_call.1} parent=1 // pred_region
      %s99 = ssub.s32 128, 128
      %100 = vsyncadd [#allocation21], %s99
      %s102 = sshll.u32 [#allocation22], 4
      %s103 = int_to_ptr.vmem [resolvable:$true] %s102
      %105 = dma.hbm_to_vmem [thread:$0]  %s7, 128, %s103, [#allocation21]
    $region33: #{tpu_custom_call.1} parent=1 // pred_fallthru
      _
    // Predicated region
    $region34: #{tpu_custom_call.1} parent=1 // pred_check
      _
    $region35: #{tpu_custom_call.1} parent=1 // pred_check_branch
      %107 = sbr.rel (0) target = $region37
    $region36: #{tpu_custom_call.1} parent=1 // pred_region
      %s109 = ssub.s32 2048, 2048
      %110 = vsyncadd [#allocation24], %s109
      %s111 = sshll.u32 [#allocation23], 4
      %s112 = int_to_ptr.vmem [resolvable:$true] %s111
      %117 = dma.hbm_to_vmem [thread:$0]  %s8, 2048, %s112, [#allocation24], 128, 128, 8
    $region37: #{tpu_custom_call.1} parent=1 // pred_fallthru
      _
    // Predicated region
    $region38: #{tpu_custom_call.1} parent=1 // pred_check
      _
    $region39: #{tpu_custom_call.1} parent=1 // pred_check_branch
      %119 = sbr.rel (0) target = $region41
    $region40: #{tpu_custom_call.1} parent=1 // pred_region
      %s121 = ssub.s32 2048, 2048
      %122 = vsyncadd [#allocation24], %s121
      %s123 = sshll.u32 [#allocation25], 4
      %s124 = int_to_ptr.vmem [resolvable:$true] %s123
      %129 = dma.hbm_to_vmem [thread:$0]  %s9, 2048, %s124, [#allocation24], 128, 128, 8
    $region41: #{tpu_custom_call.1} parent=1 // pred_fallthru
      _
    // Predicated region
    $region42: #{tpu_custom_call.1} parent=1 // pred_check
      _
    $region43: #{tpu_custom_call.1} parent=1 // pred_check_branch
      %131 = sbr.rel (0) target = $region45
    $region44: #{tpu_custom_call.1} parent=1 // pred_region
      _
    $region45: #{tpu_custom_call.1} parent=1 // pred_fallthru
      _
    // Predicated region
    $region46: #{tpu_custom_call.1} parent=1 // pred_check
      _
    $region47: #{tpu_custom_call.1} parent=1 // pred_check_branch
      %133 = sbr.rel (0) target = $region49
    $region48: #{tpu_custom_call.1} parent=1 // pred_region
      _
    $region49: #{tpu_custom_call.1} parent=1 // pred_fallthru
      _
    // Predicated region
    $region50: #{tpu_custom_call.1} parent=1 // pred_check
      _
    $region51: #{tpu_custom_call.1} parent=1 // pred_check_branch
      %135 = sbr.rel (0) target = $region53
    $region52: #{tpu_custom_call.1} parent=1 // pred_region
      _
    $region53: #{tpu_custom_call.1} parent=1 // pred_fallthru
      _
    // Predicated region
    $region54: #{tpu_custom_call.1} parent=1 // pred_check
      _
    $region55: #{tpu_custom_call.1} parent=1 // pred_check_branch
      %137 = sbr.rel (0) target = $region57
    $region56: #{tpu_custom_call.1} parent=1 // pred_region
      _
    $region57: #{tpu_custom_call.1} parent=1 // pred_fallthru
      _
    // Predicated region
    $region58: #{tpu_custom_call.1} parent=1 // pred_check
      _
    $region59: #{tpu_custom_call.1} parent=1 // pred_check_branch
      %139 = sbr.rel (0) target = $region61
    $region60: #{tpu_custom_call.1} parent=1 // pred_region
      _
    $region61: #{tpu_custom_call.1} parent=1 // pred_fallthru
      _
    // Predicated region
    $region62: #{tpu_custom_call.1} parent=1 // pred_check
      _
    $region63: #{tpu_custom_call.1} parent=1 // pred_check_branch
      %141 = sbr.rel (0) target = $region65
    $region64: #{tpu_custom_call.1} parent=1 // pred_region
      _
    $region65: #{tpu_custom_call.1} parent=1 // pred_fallthru
      _
    // Predicated region
    $region66: #{tpu_custom_call.1} parent=1 // pred_check
      _
    $region67: #{tpu_custom_call.1} parent=1 // pred_check_branch
      %143 = sbr.rel (0) target = $region69
    $region68: #{tpu_custom_call.1} parent=1 // pred_region
      _
    $region69: #{tpu_custom_call.1} parent=1 // pred_fallthru
      _
    // Predicated region
    $region70: #{tpu_custom_call.1} parent=1 // pred_check
      _
    $region71: #{tpu_custom_call.1} parent=1 // pred_check_branch
      %145 = sbr.rel (0) target = $region73
    $region72: #{tpu_custom_call.1} parent=1 // pred_region
      %146 = dma.done [#allocation12], 1024
    $region73: #{tpu_custom_call.1} parent=1 // pred_fallthru
      _
    // Predicated region
    $region74: #{tpu_custom_call.1} parent=1 // pred_check
      _
    $region75: #{tpu_custom_call.1} parent=1 // pred_check_branch
      %148 = sbr.rel (0) target = $region77
    $region76: #{tpu_custom_call.1} parent=1 // pred_region
      %149 = dma.done [#allocation15], 128
    $region77: #{tpu_custom_call.1} parent=1 // pred_fallthru
      _
    // Predicated region
    $region78: #{tpu_custom_call.1} parent=1 // pred_check
      _
    $region79: #{tpu_custom_call.1} parent=1 // pred_check_branch
      %151 = sbr.rel (0) target = $region81
    $region80: #{tpu_custom_call.1} parent=1 // pred_region
      %152 = dma.done [#allocation15], 128
    $region81: #{tpu_custom_call.1} parent=1 // pred_fallthru
      _
    // Predicated region
    $region82: #{tpu_custom_call.1} parent=1 // pred_check
      _
    $region83: #{tpu_custom_call.1} parent=1 // pred_check_branch
      %154 = sbr.rel (0) target = $region85
    $region84: #{tpu_custom_call.1} parent=1 // pred_region
      %155 = dma.done [#allocation18], 128
    $region85: #{tpu_custom_call.1} parent=1 // pred_fallthru
      _
    // Predicated region
    $region86: #{tpu_custom_call.1} parent=1 // pred_check
      _
    $region87: #{tpu_custom_call.1} parent=1 // pred_check_branch
      %157 = sbr.rel (0) target = $region89
    $region88: #{tpu_custom_call.1} parent=1 // pred_region
      %158 = dma.done [#allocation18], 128
    $region89: #{tpu_custom_call.1} parent=1 // pred_fallthru
      _
    // Predicated region
    $region90: #{tpu_custom_call.1} parent=1 // pred_check
      _
    $region91: #{tpu_custom_call.1} parent=1 // pred_check_branch
      %160 = sbr.rel (0) target = $region93
    $region92: #{tpu_custom_call.1} parent=1 // pred_region
      %161 = dma.done [#allocation21], 128
    $region93: #{tpu_custom_call.1} parent=1 // pred_fallthru
      _
    // Predicated region
    $region94: #{tpu_custom_call.1} parent=1 // pred_check
      _
    $region95: #{tpu_custom_call.1} parent=1 // pred_check_branch
      %163 = sbr.rel (0) target = $region97
    $region96: #{tpu_custom_call.1} parent=1 // pred_region
      %164 = dma.done [#allocation21], 128
    $region97: #{tpu_custom_call.1} parent=1 // pred_fallthru
      _
    // Predicated region
    $region98: #{tpu_custom_call.1} parent=1 // pred_check
      _
    $region99: #{tpu_custom_call.1} parent=1 // pred_check_branch
      %166 = sbr.rel (0) target = $region101
    $region100: #{tpu_custom_call.1} parent=1 // pred_region
      %167 = dma.done [#allocation24], 2048
    $region101: #{tpu_custom_call.1} parent=1 // pred_fallthru
      _
    // Predicated region
    $region102: #{tpu_custom_call.1} parent=1 // pred_check
      _
    $region103: #{tpu_custom_call.1} parent=1 // pred_check_branch
      %169 = sbr.rel (0) target = $region105
    $region104: #{tpu_custom_call.1} parent=1 // pred_region
      %170 = dma.done [#allocation24], 2048
    $region105: #{tpu_custom_call.1} parent=1 // pred_fallthru
      _
    %p172 = scmp.eq.s32.totalorder 0, 0
    // Predicated region
    $region106: #{tpu_custom_call.1} parent=1 // pred_check
      %p173 = pneg %p172
    $region107: #{tpu_custom_call.1} parent=1 // pred_check_branch
      %175 = sbr.rel (%p173) target = $region109
    $region108: #{tpu_custom_call.1} parent=1 // pred_region
      %v176 = vld [vmem:[#allocation14] sm:$0xff]
      %177 = vst [vmem:[#allocation2] sm:$0xff] %v176
      %v178 = vld [vmem:[#allocation16] sm:$0xff]
      %179 = vst [vmem:[#allocation3] sm:$0xff] %v178
      %180 = vst [vmem:[#allocation4] sm:$0xff] 0.01
      %v181 = vld [vmem:[#allocation17] sm:$0xff]
      %182 = vst [vmem:[#allocation5] sm:$0xff] %v181
      %v183 = vld [vmem:[#allocation19] sm:$0xff]
      %184 = vst [vmem:[#allocation6] sm:$0xff] %v183
      %v185 = vld [vmem:[%s5] sm:$0xff]
      %186 = vst [vmem:[#allocation7] sm:$0xff] %v185
      %187 = vst [vmem:[#allocation8] sm:$0xff] 0.01
      %v188 = vld [vmem:[#allocation20] sm:$0xff]
      %189 = vst [vmem:[#allocation9] sm:$0xff] %v188
      %v190 = vld [vmem:[#allocation22] sm:$0xff]
      %191 = vst [vmem:[#allocation10] sm:$0xff] %v190
    $region109: #{tpu_custom_call.1} parent=1 // pred_fallthru
      _
    %v192 = vld [vmem:[%s10] sm:$0x1]
    %v194 = vlaneseq
    %v195 = vshrl.u32 %v194, 7
    %v196 = vsub.s32 0, %v195
    %v197 = vrot.slane %v192, %v196
    %v199 = vld [vmem:[%s11] sm:$0x1]
    %v201 = vlaneseq
    %v202 = vshrl.u32 %v201, 7
    %v203 = vsub.s32 0, %v202
    %v204 = vrot.slane %v199, %v203
    %v206 = vld [vmem:[%s12] sm:$0x1]
    %v208 = vlaneseq
    %v209 = vshrl.u32 %v208, 7
    %v210 = vsub.s32 0, %v209
    %v211 = vrot.slane %v206, %v210
    %v213 = vsub.f32 1.0, %v211
    %v214 = vld [vmem:[%s13] sm:$0x1]
    %v216 = vlaneseq
    %v217 = vshrl.u32 %v216, 7
    %v218 = vsub.s32 0, %v217
    %v219 = vrot.slane %v214, %v218
    %v221 = vsub.f32 1.0, %v219
    %v222 = vld [vmem:[%s14] sm:$0x1]
    %v224 = vlaneseq
    %v225 = vshrl.u32 %v224, 7
    %v226 = vsub.s32 0, %v225
    %v227 = vrot.slane %v222, %v226
    %v229 = vsub.f32 1.0, %v227
    %v230 = vld [vmem:[%s15] sm:$0x1]
    %v232 = vlaneseq
    %v233 = vshrl.u32 %v232, 7
    %v234 = vsub.s32 0, %v233
    %v235 = vrot.slane %v230, %v234
    %v237 = vsub.f32 1.0, %v235
    %v238 = vld [vmem:[%s16] sm:$0x1]
    %v240 = vlaneseq
    %v241 = vshrl.u32 %v240, 7
    %v242 = vsub.s32 0, %v241
    %v243 = vrot.slane %v238, %v242
    %v245 = vsub.f32 1.0, %v243
    %v246 = vld [vmem:[#allocation2] sm:$0xff]
    %v247 = vld [vmem:[#allocation3] sm:$0xff]
    %v248 = vld [vmem:[#allocation4] sm:$0xff]
    %v249 = vld [vmem:[#allocation5] sm:$0xff]
    %v250 = vld [vmem:[#allocation6] sm:$0xff]
    %v251 = vld [vmem:[#allocation7] sm:$0xff]
    %v252 = vld [vmem:[#allocation8] sm:$0xff]
    %v253 = vld [vmem:[#allocation9] sm:$0xff]
    %v254 = vld [vmem:[#allocation10] sm:$0xff]
    %v255 = vld [vmem:[#allocation11] sm:$0xff]
    %v256 = vadd.f32 %v255, %v249
    %v257 = vmul.f32 %v219, %v248
    %v258 = vmul.f32 %v221, %v247
    %v259 = vadd.f32 %v257, %v258
    %v260 = vmul.f32 %v259, 1.8
    %v261 = vadd.f32 %v260, 0.01
    %v262 = vmul.f32 %v246, %v211
    %v263 = vmul.f32 %v213, %v256
    %v264 = vadd.f32 %v262, %v263
    %v265 = vmul.f32 %v261, %v247
    %v266 = vsub.f32 %v264, %v265
    %v267 = vsub.f32 %v266, %v261
    %vm268 = vcmp.gt.f32.partialorder %v267, 0.0
    %v269 = vsel %vm268, 1, 0
    %v270 = vcvt.s32.f32 %v269
    %v271 = vpack.c.bf16 %v270, %v270
    %v272 = vld [vmem:[#allocation23] sm:$0xff]
    %v273 = vld [vmem:[#allocation23 + $0x8] sm:$0xff]
    %v274 = vld [vmem:[#allocation23 + $0x10] sm:$0xff]
    %v275 = vld [vmem:[#allocation23 + $0x18] sm:$0xff]
    %v276 = vld [vmem:[#allocation23 + $0x20] sm:$0xff]
    %v277 = vld [vmem:[#allocation23 + $0x28] sm:$0xff]
    %v278 = vld [vmem:[#allocation23 + $0x30] sm:$0xff]
    %v279 = vld [vmem:[#allocation23 + $0x38] sm:$0xff]
    %v280 = vld [vmem:[#allocation23 + $0x40] sm:$0xff]
    %v281 = vld [vmem:[#allocation23 + $0x48] sm:$0xff]
    %v282 = vld [vmem:[#allocation23 + $0x50] sm:$0xff]
    %v283 = vld [vmem:[#allocation23 + $0x58] sm:$0xff]
    %v284 = vld [vmem:[#allocation23 + $0x60] sm:$0xff]
    %v285 = vld [vmem:[#allocation23 + $0x68] sm:$0xff]
    %v286 = vld [vmem:[#allocation23 + $0x70] sm:$0xff]
    %v287 = vld [vmem:[#allocation23 + $0x78] sm:$0xff]
    %v304 = vunpack.c.l.b16 %v272
    %v305 = vunpack.c.h.b16 %v272
    %v306 = vunpack.c.l.b16 %v273
    %v307 = vunpack.c.h.b16 %v273
    %v308 = vunpack.c.l.b16 %v274
    %v309 = vunpack.c.h.b16 %v274
    %v310 = vunpack.c.l.b16 %v275
    %v311 = vunpack.c.h.b16 %v275
    %v312 = vunpack.c.l.b16 %v276
    %v313 = vunpack.c.h.b16 %v276
    %v314 = vunpack.c.l.b16 %v277
    %v315 = vunpack.c.h.b16 %v277
    %v316 = vunpack.c.l.b16 %v278
    %v317 = vunpack.c.h.b16 %v278
    %v318 = vunpack.c.l.b16 %v279
    %v319 = vunpack.c.h.b16 %v279
    %v320 = vunpack.c.l.b16 %v280
    %v321 = vunpack.c.h.b16 %v280
    %v322 = vunpack.c.l.b16 %v281
    %v323 = vunpack.c.h.b16 %v281
    %v324 = vunpack.c.l.b16 %v282
    %v325 = vunpack.c.h.b16 %v282
    %v326 = vunpack.c.l.b16 %v283
    %v327 = vunpack.c.h.b16 %v283
    %v328 = vunpack.c.l.b16 %v284
    %v329 = vunpack.c.h.b16 %v284
    %v330 = vunpack.c.l.b16 %v285
    %v331 = vunpack.c.h.b16 %v285
    %v332 = vunpack.c.l.b16 %v286
    %v333 = vunpack.c.h.b16 %v286
    %v334 = vunpack.c.l.b16 %v287
    %v335 = vunpack.c.h.b16 %v287
    %v336 = vpack.c.b16 %v306, %v304
    %v337 = vpack.c.b16 %v307, %v305
    %v338 = vpack.c.b16 %v310, %v308
    %v339 = vpack.c.b16 %v311, %v309
    %v340 = vpack.c.b16 %v314, %v312
    %v341 = vpack.c.b16 %v315, %v313
    %v342 = vpack.c.b16 %v318, %v316
    %v343 = vpack.c.b16 %v319, %v317
    %v344 = vpack.c.b16 %v322, %v320
    %v345 = vpack.c.b16 %v323, %v321
    %v346 = vpack.c.b16 %v326, %v324
    %v347 = vpack.c.b16 %v327, %v325
    %v348 = vpack.c.b16 %v330, %v328
    %v349 = vpack.c.b16 %v331, %v329
    %v350 = vpack.c.b16 %v334, %v332
    %v351 = vpack.c.b16 %v335, %v333
    %368 = vmatprep.subr.bf16.mxu0 %v351
    %369 = vmatpush1.bf16.msra.mxu0 %v350
    %370 = vmatprep.subr.bf16.mxu0 %v349
    %371 = vmatpush1.bf16.msra.mxu0 %v348
    %372 = vmatprep.subr.bf16.mxu0 %v347
    %373 = vmatpush1.bf16.msra.mxu0 %v346
    %374 = vmatprep.subr.bf16.mxu0 %v345
    %375 = vmatpush1.bf16.msra.mxu0 %v344
    %376 = vmatprep.subr.bf16.mxu0 %v343
    %377 = vmatpush1.bf16.msra.mxu0 %v342
    %378 = vmatprep.subr.bf16.mxu0 %v341
    %379 = vmatpush1.bf16.msra.mxu0 %v340
    %380 = vmatprep.subr.bf16.mxu0 %v339
    %381 = vmatpush1.bf16.msra.mxu0 %v338
    %382 = vmatprep.subr.bf16.mxu0 %v337
    %383 = vmatpush1.bf16.msra.mxu0 %v336
    %384 = vmatprep.subr.bf16.mxu0 0
    %385 = vmatpush2.bf16.msra.mxu0 0
    %386 = vmatprep.subr.bf16.mxu0 0
    %387 = vmatpush2.bf16.msra.mxu0 0
    %388 = vmatprep.subr.bf16.mxu0 0
    %389 = vmatpush2.bf16.msra.mxu0 0
    %390 = vmatprep.subr.bf16.mxu0 0
    %391 = vmatpush2.bf16.msra.mxu0 0
    %392 = vmatprep.subr.bf16.mxu0 0
    %393 = vmatpush2.bf16.msra.mxu0 0
    %394 = vmatprep.subr.bf16.mxu0 0
    %395 = vmatpush2.bf16.msra.mxu0 0
    %396 = vmatprep.subr.bf16.mxu0 0
    %397 = vmatpush2.bf16.msra.mxu0 0
    %398 = vmatprep.subr.bf16.mxu0 0
    %399 = vmatpush2.bf16.msra.mxu0 0
    %400 = vmatprep.mubr.bf16.mxu0 0
    %401 = vmatmul.mubr.bf16.gmra.mxu0 %v271
    %v402 = vpop.f32.mrf.mxu0
    %v403 = vadd.f32 0.0, %v402
    %v404 = vpop.f32.mrf.mxu0
    %v405 = vadd.f32 0.0, %v404
    %v406 = vpop.f32.mrf.mxu0
    %v407 = vpop.f32.mrf.mxu0
    %408 = vdwg.mxu0
    %v409 = vadd.f32 %v403, %v253
    %v410 = vadd.f32 %v409, %v197
    %v411 = vmul.f32 %v235, %v252
    %v412 = vmul.f32 %v237, %v251
    %v413 = vadd.f32 %v411, %v412
    %v414 = vmul.f32 %v413, 1.8
    %v415 = vadd.f32 %v414, 0.01
    %v416 = vmul.f32 %v250, %v227
    %v417 = vmul.f32 %v229, %v410
    %v418 = vadd.f32 %v416, %v417
    %v419 = vmul.f32 %v415, %v251
    %v420 = vsub.f32 %v418, %v419
    %v421 = vsub.f32 %v420, %v415
    %vm422 = vcmp.gt.f32.partialorder %v421, 0.0
    %v423 = vsel %vm422, 1, 0
    %v424 = vcvt.s32.f32 %v423
    %v425 = vpack.c.bf16 %v424, %v424
    %v426 = vld [vmem:[#allocation25] sm:$0xff]
    %v427 = vld [vmem:[#allocation25 + $0x8] sm:$0xff]
    %v428 = vld [vmem:[#allocation25 + $0x10] sm:$0xff]
    %v429 = vld [vmem:[#allocation25 + $0x18] sm:$0xff]
    %v430 = vld [vmem:[#allocation25 + $0x20] sm:$0xff]
    %v431 = vld [vmem:[#allocation25 + $0x28] sm:$0xff]
    %v432 = vld [vmem:[#allocation25 + $0x30] sm:$0xff]
    %v433 = vld [vmem:[#allocation25 + $0x38] sm:$0xff]
    %v434 = vld [vmem:[#allocation25 + $0x40] sm:$0xff]
    %v435 = vld [vmem:[#allocation25 + $0x48] sm:$0xff]
    %v436 = vld [vmem:[#allocation25 + $0x50] sm:$0xff]
    %v437 = vld [vmem:[#allocation25 + $0x58] sm:$0xff]
    %v438 = vld [vmem:[#allocation25 + $0x60] sm:$0xff]
    %v439 = vld [vmem:[#allocation25 + $0x68] sm:$0xff]
    %v440 = vld [vmem:[#allocation25 + $0x70] sm:$0xff]
    %v441 = vld [vmem:[#allocation25 + $0x78] sm:$0xff]
    %v458 = vunpack.c.l.b16 %v426
    %v459 = vunpack.c.h.b16 %v426
    %v460 = vunpack.c.l.b16 %v427
    %v461 = vunpack.c.h.b16 %v427
    %v462 = vunpack.c.l.b16 %v428
    %v463 = vunpack.c.h.b16 %v428
    %v464 = vunpack.c.l.b16 %v429
    %v465 = vunpack.c.h.b16 %v429
    %v466 = vunpack.c.l.b16 %v430
    %v467 = vunpack.c.h.b16 %v430
    %v468 = vunpack.c.l.b16 %v431
    %v469 = vunpack.c.h.b16 %v431
    %v470 = vunpack.c.l.b16 %v432
    %v471 = vunpack.c.h.b16 %v432
    %v472 = vunpack.c.l.b16 %v433
    %v473 = vunpack.c.h.b16 %v433
    %v474 = vunpack.c.l.b16 %v434
    %v475 = vunpack.c.h.b16 %v434
    %v476 = vunpack.c.l.b16 %v435
    %v477 = vunpack.c.h.b16 %v435
    %v478 = vunpack.c.l.b16 %v436
    %v479 = vunpack.c.h.b16 %v436
    %v480 = vunpack.c.l.b16 %v437
    %v481 = vunpack.c.h.b16 %v437
    %v482 = vunpack.c.l.b16 %v438
    %v483 = vunpack.c.h.b16 %v438
    %v484 = vunpack.c.l.b16 %v439
    %v485 = vunpack.c.h.b16 %v439
    %v486 = vunpack.c.l.b16 %v440
    %v487 = vunpack.c.h.b16 %v440
    %v488 = vunpack.c.l.b16 %v441
    %v489 = vunpack.c.h.b16 %v441
    %v490 = vpack.c.b16 %v460, %v458
    %v491 = vpack.c.b16 %v461, %v459
    %v492 = vpack.c.b16 %v464, %v462
    %v493 = vpack.c.b16 %v465, %v463
    %v494 = vpack.c.b16 %v468, %v466
    %v495 = vpack.c.b16 %v469, %v467
    %v496 = vpack.c.b16 %v472, %v470
    %v497 = vpack.c.b16 %v473, %v471
    %v498 = vpack.c.b16 %v476, %v474
    %v499 = vpack.c.b16 %v477, %v475
    %v500 = vpack.c.b16 %v480, %v478
    %v501 = vpack.c.b16 %v481, %v479
    %v502 = vpack.c.b16 %v484, %v482
    %v503 = vpack.c.b16 %v485, %v483
    %v504 = vpack.c.b16 %v488, %v486
    %v505 = vpack.c.b16 %v489, %v487
    %522 = vmatprep.subr.bf16.mxu0 %v505
    %523 = vmatpush1.bf16.msra.mxu0 %v504
    %524 = vmatprep.subr.bf16.mxu0 %v503
    %525 = vmatpush1.bf16.msra.mxu0 %v502
    %526 = vmatprep.subr.bf16.mxu0 %v501
    %527 = vmatpush1.bf16.msra.mxu0 %v500
    %528 = vmatprep.subr.bf16.mxu0 %v499
    %529 = vmatpush1.bf16.msra.mxu0 %v498
    %530 = vmatprep.subr.bf16.mxu0 %v497
    %531 = vmatpush1.bf16.msra.mxu0 %v496
    %532 = vmatprep.subr.bf16.mxu0 %v495
    %533 = vmatpush1.bf16.msra.mxu0 %v494
    %534 = vmatprep.subr.bf16.mxu0 %v493
    %535 = vmatpush1.bf16.msra.mxu0 %v492
    %536 = vmatprep.subr.bf16.mxu0 %v491
    %537 = vmatpush1.bf16.msra.mxu0 %v490
    %538 = vmatprep.subr.bf16.mxu0 0
    %539 = vmatpush2.bf16.msra.mxu0 0
    %540 = vmatprep.subr.bf16.mxu0 0
    %541 = vmatpush2.bf16.msra.mxu0 0
    %542 = vmatprep.subr.bf16.mxu0 0
    %543 = vmatpush2.bf16.msra.mxu0 0
    %544 = vmatprep.subr.bf16.mxu0 0
    %545 = vmatpush2.bf16.msra.mxu0 0
    %546 = vmatprep.subr.bf16.mxu0 0
    %547 = vmatpush2.bf16.msra.mxu0 0
    %548 = vmatprep.subr.bf16.mxu0 0
    %549 = vmatpush2.bf16.msra.mxu0 0
    %550 = vmatprep.subr.bf16.mxu0 0
    %551 = vmatpush2.bf16.msra.mxu0 0
    %552 = vmatprep.subr.bf16.mxu0 0
    %553 = vmatpush2.bf16.msra.mxu0 0
    %554 = vmatprep.mubr.bf16.mxu0 0
    %555 = vmatmul.mubr.bf16.gmra.mxu0 %v425
    %v556 = vpop.f32.mrf.mxu0
    %v557 = vadd.f32 0.0, %v556
    %v558 = vpop.f32.mrf.mxu0
    %v559 = vadd.f32 0.0, %v558
    %v560 = vpop.f32.mrf.mxu0
    %v561 = vpop.f32.mrf.mxu0
    %562 = vdwg.mxu0
    %v563 = vadd.f32 %v557, %v204
    %v564 = vmul.f32 %v254, %v243
    %v565 = vmul.f32 %v245, %v563
    %v566 = vadd.f32 %v564, %v565
    %567 = vst [vmem:[#allocation26] sm:$0xff] %v270
    %568 = vst [vmem:[#allocation27] sm:$0xff] %v266
    %569 = vst [vmem:[#allocation29] sm:$0xff] %v566
    %s570 = scalar_lea.vmem [#allocation11], 8
    %v571 = vld [vmem:[%s570] sm:$0xff]
    %v572 = vadd.f32 %v571, %v405
    %v573 = vmul.f32 %v219, %v259
    %v574 = vmul.f32 %v221, %v270
    %v575 = vadd.f32 %v573, %v574
    %v576 = vmul.f32 %v575, 1.8
    %v577 = vadd.f32 %v576, 0.01
    %v578 = vmul.f32 %v266, %v211
    %v579 = vmul.f32 %v213, %v572
    %v580 = vadd.f32 %v578, %v579
    %v581 = vmul.f32 %v577, %v270
    %v582 = vsub.f32 %v580, %v581
    %v583 = vsub.f32 %v582, %v577
    %vm584 = vcmp.gt.f32.partialorder %v583, 0.0
    %v585 = vsel %vm584, 1, 0
    %v586 = vcvt.s32.f32 %v585
    %v587 = vpack.c.bf16 %v586, %v586
    %v588 = vld [vmem:[#allocation23] sm:$0xff]
    %v589 = vld [vmem:[#allocation23 + $0x8] sm:$0xff]
    %v590 = vld [vmem:[#allocation23 + $0x10] sm:$0xff]
    %v591 = vld [vmem:[#allocation23 + $0x18] sm:$0xff]
    %v592 = vld [vmem:[#allocation23 + $0x20] sm:$0xff]
    %v593 = vld [vmem:[#allocation23 + $0x28] sm:$0xff]
    %v594 = vld [vmem:[#allocation23 + $0x30] sm:$0xff]
    %v595 = vld [vmem:[#allocation23 + $0x38] sm:$0xff]
    %v596 = vld [vmem:[#allocation23 + $0x40] sm:$0xff]
    %v597 = vld [vmem:[#allocation23 + $0x48] sm:$0xff]
    %v598 = vld [vmem:[#allocation23 + $0x50] sm:$0xff]
    %v599 = vld [vmem:[#allocation23 + $0x58] sm:$0xff]
    %v600 = vld [vmem:[#allocation23 + $0x60] sm:$0xff]
    %v601 = vld [vmem:[#allocation23 + $0x68] sm:$0xff]
    %v602 = vld [vmem:[#allocation23 + $0x70] sm:$0xff]
    %v603 = vld [vmem:[#allocation23 + $0x78] sm:$0xff]
    %v620 = vunpack.c.l.b16 %v588
    %v621 = vunpack.c.h.b16 %v588
    %v622 = vunpack.c.l.b16 %v589
    %v623 = vunpack.c.h.b16 %v589
    %v624 = vunpack.c.l.b16 %v590
    %v625 = vunpack.c.h.b16 %v590
    %v626 = vunpack.c.l.b16 %v591
    %v627 = vunpack.c.h.b16 %v591
    %v628 = vunpack.c.l.b16 %v592
    %v629 = vunpack.c.h.b16 %v592
    %v630 = vunpack.c.l.b16 %v593
    %v631 = vunpack.c.h.b16 %v593
    %v632 = vunpack.c.l.b16 %v594
    %v633 = vunpack.c.h.b16 %v594
    %v634 = vunpack.c.l.b16 %v595
    %v635 = vunpack.c.h.b16 %v595
    %v636 = vunpack.c.l.b16 %v596
    %v637 = vunpack.c.h.b16 %v596
    %v638 = vunpack.c.l.b16 %v597
    %v639 = vunpack.c.h.b16 %v597
    %v640 = vunpack.c.l.b16 %v598
    %v641 = vunpack.c.h.b16 %v598
    %v642 = vunpack.c.l.b16 %v599
    %v643 = vunpack.c.h.b16 %v599
    %v644 = vunpack.c.l.b16 %v600
    %v645 = vunpack.c.h.b16 %v600
    %v646 = vunpack.c.l.b16 %v601
    %v647 = vunpack.c.h.b16 %v601
    %v648 = vunpack.c.l.b16 %v602
    %v649 = vunpack.c.h.b16 %v602
    %v650 = vunpack.c.l.b16 %v603
    %v651 = vunpack.c.h.b16 %v603
    %v652 = vpack.c.b16 %v622, %v620
    %v653 = vpack.c.b16 %v623, %v621
    %v654 = vpack.c.b16 %v626, %v624
    %v655 = vpack.c.b16 %v627, %v625
    %v656 = vpack.c.b16 %v630, %v628
    %v657 = vpack.c.b16 %v631, %v629
    %v658 = vpack.c.b16 %v634, %v632
    %v659 = vpack.c.b16 %v635, %v633
    %v660 = vpack.c.b16 %v638, %v636
    %v661 = vpack.c.b16 %v639, %v637
    %v662 = vpack.c.b16 %v642, %v640
    %v663 = vpack.c.b16 %v643, %v641
    %v664 = vpack.c.b16 %v646, %v644
    %v665 = vpack.c.b16 %v647, %v645
    %v666 = vpack.c.b16 %v650, %v648
    %v667 = vpack.c.b16 %v651, %v649
    %684 = vmatprep.subr.bf16.mxu0 %v667
    %685 = vmatpush1.bf16.msra.mxu0 %v666
    %686 = vmatprep.subr.bf16.mxu0 %v665
    %687 = vmatpush1.bf16.msra.mxu0 %v664
    %688 = vmatprep.subr.bf16.mxu0 %v663
    %689 = vmatpush1.bf16.msra.mxu0 %v662
    %690 = vmatprep.subr.bf16.mxu0 %v661
    %691 = vmatpush1.bf16.msra.mxu0 %v660
    %692 = vmatprep.subr.bf16.mxu0 %v659
    %693 = vmatpush1.bf16.msra.mxu0 %v658
    %694 = vmatprep.subr.bf16.mxu0 %v657
    %695 = vmatpush1.bf16.msra.mxu0 %v656
    %696 = vmatprep.subr.bf16.mxu0 %v655
    %697 = vmatpush1.bf16.msra.mxu0 %v654
    %698 = vmatprep.subr.bf16.mxu0 %v653
    %699 = vmatpush1.bf16.msra.mxu0 %v652
    %700 = vmatprep.subr.bf16.mxu0 0
    %701 = vmatpush2.bf16.msra.mxu0 0
    %702 = vmatprep.subr.bf16.mxu0 0
    %703 = vmatpush2.bf16.msra.mxu0 0
    %704 = vmatprep.subr.bf16.mxu0 0
    %705 = vmatpush2.bf16.msra.mxu0 0
    %706 = vmatprep.subr.bf16.mxu0 0
    %707 = vmatpush2.bf16.msra.mxu0 0
    %708 = vmatprep.subr.bf16.mxu0 0
    %709 = vmatpush2.bf16.msra.mxu0 0
    %710 = vmatprep.subr.bf16.mxu0 0
    %711 = vmatpush2.bf16.msra.mxu0 0
    %712 = vmatprep.subr.bf16.mxu0 0
    %713 = vmatpush2.bf16.msra.mxu0 0
    %714 = vmatprep.subr.bf16.mxu0 0
    %715 = vmatpush2.bf16.msra.mxu0 0
    %716 = vmatprep.mubr.bf16.mxu0 0
    %717 = vmatmul.mubr.bf16.gmra.mxu0 %v587
    %v718 = vpop.f32.mrf.mxu0
    %v719 = vadd.f32 0.0, %v718
    %v720 = vpop.f32.mrf.mxu0
    %v721 = vadd.f32 0.0, %v720
    %v722 = vpop.f32.mrf.mxu0
    %v723 = vpop.f32.mrf.mxu0
    %724 = vdwg.mxu0
    %v725 = vadd.f32 %v719, %v559
    %v726 = vadd.f32 %v725, %v197
    %v727 = vmul.f32 %v235, %v413
    %v728 = vmul.f32 %v237, %v424
    %v729 = vadd.f32 %v727, %v728
    %v730 = vmul.f32 %v729, 1.8
    %v731 = vadd.f32 %v730, 0.01
    %v732 = vmul.f32 %v420, %v227
    %v733 = vmul.f32 %v229, %v726
    %v734 = vadd.f32 %v732, %v733
    %v735 = vmul.f32 %v731, %v424
    %v736 = vsub.f32 %v734, %v735
    %v737 = vsub.f32 %v736, %v731
    %vm738 = vcmp.gt.f32.partialorder %v737, 0.0
    %v739 = vsel %vm738, 1, 0
    %v740 = vcvt.s32.f32 %v739
    %v741 = vpack.c.bf16 %v740, %v740
    %v742 = vld [vmem:[#allocation25] sm:$0xff]
    %v743 = vld [vmem:[#allocation25 + $0x8] sm:$0xff]
    %v744 = vld [vmem:[#allocation25 + $0x10] sm:$0xff]
    %v745 = vld [vmem:[#allocation25 + $0x18] sm:$0xff]
    %v746 = vld [vmem:[#allocation25 + $0x20] sm:$0xff]
    %v747 = vld [vmem:[#allocation25 + $0x28] sm:$0xff]
    %v748 = vld [vmem:[#allocation25 + $0x30] sm:$0xff]
    %v749 = vld [vmem:[#allocation25 + $0x38] sm:$0xff]
    %v750 = vld [vmem:[#allocation25 + $0x40] sm:$0xff]
    %v751 = vld [vmem:[#allocation25 + $0x48] sm:$0xff]
    %v752 = vld [vmem:[#allocation25 + $0x50] sm:$0xff]
    %v753 = vld [vmem:[#allocation25 + $0x58] sm:$0xff]
    %v754 = vld [vmem:[#allocation25 + $0x60] sm:$0xff]
    %v755 = vld [vmem:[#allocation25 + $0x68] sm:$0xff]
    %v756 = vld [vmem:[#allocation25 + $0x70] sm:$0xff]
    %v757 = vld [vmem:[#allocation25 + $0x78] sm:$0xff]
    %v774 = vunpack.c.l.b16 %v742
    %v775 = vunpack.c.h.b16 %v742
    %v776 = vunpack.c.l.b16 %v743
    %v777 = vunpack.c.h.b16 %v743
    %v778 = vunpack.c.l.b16 %v744
    %v779 = vunpack.c.h.b16 %v744
    %v780 = vunpack.c.l.b16 %v745
    %v781 = vunpack.c.h.b16 %v745
    %v782 = vunpack.c.l.b16 %v746
    %v783 = vunpack.c.h.b16 %v746
    %v784 = vunpack.c.l.b16 %v747
    %v785 = vunpack.c.h.b16 %v747
    %v786 = vunpack.c.l.b16 %v748
    %v787 = vunpack.c.h.b16 %v748
    %v788 = vunpack.c.l.b16 %v749
    %v789 = vunpack.c.h.b16 %v749
    %v790 = vunpack.c.l.b16 %v750
    %v791 = vunpack.c.h.b16 %v750
    %v792 = vunpack.c.l.b16 %v751
    %v793 = vunpack.c.h.b16 %v751
    %v794 = vunpack.c.l.b16 %v752
    %v795 = vunpack.c.h.b16 %v752
    %v796 = vunpack.c.l.b16 %v753
    %v797 = vunpack.c.h.b16 %v753
    %v798 = vunpack.c.l.b16 %v754
    %v799 = vunpack.c.h.b16 %v754
    %v800 = vunpack.c.l.b16 %v755
    %v801 = vunpack.c.h.b16 %v755
    %v802 = vunpack.c.l.b16 %v756
    %v803 = vunpack.c.h.b16 %v756
    %v804 = vunpack.c.l.b16 %v757
    %v805 = vunpack.c.h.b16 %v757
    %v806 = vpack.c.b16 %v776, %v774
    %v807 = vpack.c.b16 %v777, %v775
    %v808 = vpack.c.b16 %v780, %v778
    %v809 = vpack.c.b16 %v781, %v779
    %v810 = vpack.c.b16 %v784, %v782
    %v811 = vpack.c.b16 %v785, %v783
    %v812 = vpack.c.b16 %v788, %v786
    %v813 = vpack.c.b16 %v789, %v787
    %v814 = vpack.c.b16 %v792, %v790
    %v815 = vpack.c.b16 %v793, %v791
    %v816 = vpack.c.b16 %v796, %v794
    %v817 = vpack.c.b16 %v797, %v795
    %v818 = vpack.c.b16 %v800, %v798
    %v819 = vpack.c.b16 %v801, %v799
    %v820 = vpack.c.b16 %v804, %v802
    %v821 = vpack.c.b16 %v805, %v803
    %838 = vmatprep.subr.bf16.mxu0 %v821
    %839 = vmatpush1.bf16.msra.mxu0 %v820
    %840 = vmatprep.subr.bf16.mxu0 %v819
    %841 = vmatpush1.bf16.msra.mxu0 %v818
    %842 = vmatprep.subr.bf16.mxu0 %v817
    %843 = vmatpush1.bf16.msra.mxu0 %v816
    %844 = vmatprep.subr.bf16.mxu0 %v815
    %845 = vmatpush1.bf16.msra.mxu0 %v814
    %846 = vmatprep.subr.bf16.mxu0 %v813
    %847 = vmatpush1.bf16.msra.mxu0 %v812
    %848 = vmatprep.subr.bf16.mxu0 %v811
    %849 = vmatpush1.bf16.msra.mxu0 %v810
    %850 = vmatprep.subr.bf16.mxu0 %v809
    %851 = vmatpush1.bf16.msra.mxu0 %v808
    %852 = vmatprep.subr.bf16.mxu0 %v807
    %853 = vmatpush1.bf16.msra.mxu0 %v806
    %854 = vmatprep.subr.bf16.mxu0 0
    %855 = vmatpush2.bf16.msra.mxu0 0
    %856 = vmatprep.subr.bf16.mxu0 0
    %857 = vmatpush2.bf16.msra.mxu0 0
    %858 = vmatprep.subr.bf16.mxu0 0
    %859 = vmatpush2.bf16.msra.mxu0 0
    %860 = vmatprep.subr.bf16.mxu0 0
    %861 = vmatpush2.bf16.msra.mxu0 0
    %862 = vmatprep.subr.bf16.mxu0 0
    %863 = vmatpush2.bf16.msra.mxu0 0
    %864 = vmatprep.subr.bf16.mxu0 0
    %865 = vmatpush2.bf16.msra.mxu0 0
    %866 = vmatprep.subr.bf16.mxu0 0
    %867 = vmatpush2.bf16.msra.mxu0 0
    %868 = vmatprep.subr.bf16.mxu0 0
    %869 = vmatpush2.bf16.msra.mxu0 0
    %870 = vmatprep.mubr.bf16.mxu0 0
    %871 = vmatmul.mubr.bf16.gmra.mxu0 %v741
    %v872 = vpop.f32.mrf.mxu0
    %v873 = vadd.f32 0.0, %v872
    %v874 = vpop.f32.mrf.mxu0
    %v875 = vadd.f32 0.0, %v874
    %v876 = vpop.f32.mrf.mxu0
    %v877 = vpop.f32.mrf.mxu0
    %878 = vdwg.mxu0
    %v879 = vadd.f32 %v873, %v204
    %v880 = vmul.f32 %v566, %v243
    %v881 = vmul.f32 %v245, %v879
    %v882 = vadd.f32 %v880, %v881
    %s883 = scalar_lea.vmem [#allocation26], 8
    %884 = vst [vmem:[%s883] sm:$0xff] %v586
    %s885 = scalar_lea.vmem [#allocation27], 8
    %886 = vst [vmem:[%s885] sm:$0xff] %v582
    %s887 = scalar_lea.vmem [#allocation29], 8
    %888 = vst [vmem:[%s887] sm:$0xff] %v882
    %s889 = scalar_lea.vmem [#allocation11], 16
    %v890 = vld [vmem:[%s889] sm:$0xff]
    %v891 = vadd.f32 %v890, %v721
    %v892 = vmul.f32 %v219, %v575
    %v893 = vmul.f32 %v221, %v586
    %v894 = vadd.f32 %v892, %v893
    %v895 = vmul.f32 %v894, 1.8
    %v896 = vadd.f32 %v895, 0.01
    %v897 = vmul.f32 %v582, %v211
    %v898 = vmul.f32 %v213, %v891
    %v899 = vadd.f32 %v897, %v898
    %v900 = vmul.f32 %v896, %v586
    %v901 = vsub.f32 %v899, %v900
    %v902 = vsub.f32 %v901, %v896
    %vm903 = vcmp.gt.f32.partialorder %v902, 0.0
    %v904 = vsel %vm903, 1, 0
    %v905 = vcvt.s32.f32 %v904
    %v906 = vpack.c.bf16 %v905, %v905
    %v907 = vld [vmem:[#allocation23] sm:$0xff]
    %v908 = vld [vmem:[#allocation23 + $0x8] sm:$0xff]
    %v909 = vld [vmem:[#allocation23 + $0x10] sm:$0xff]
    %v910 = vld [vmem:[#allocation23 + $0x18] sm:$0xff]
    %v911 = vld [vmem:[#allocation23 + $0x20] sm:$0xff]
    %v912 = vld [vmem:[#allocation23 + $0x28] sm:$0xff]
    %v913 = vld [vmem:[#allocation23 + $0x30] sm:$0xff]
    %v914 = vld [vmem:[#allocation23 + $0x38] sm:$0xff]
    %v915 = vld [vmem:[#allocation23 + $0x40] sm:$0xff]
    %v916 = vld [vmem:[#allocation23 + $0x48] sm:$0xff]
    %v917 = vld [vmem:[#allocation23 + $0x50] sm:$0xff]
    %v918 = vld [vmem:[#allocation23 + $0x58] sm:$0xff]
    %v919 = vld [vmem:[#allocation23 + $0x60] sm:$0xff]
    %v920 = vld [vmem:[#allocation23 + $0x68] sm:$0xff]
    %v921 = vld [vmem:[#allocation23 + $0x70] sm:$0xff]
    %v922 = vld [vmem:[#allocation23 + $0x78] sm:$0xff]
    %v939 = vunpack.c.l.b16 %v907
    %v940 = vunpack.c.h.b16 %v907
    %v941 = vunpack.c.l.b16 %v908
    %v942 = vunpack.c.h.b16 %v908
    %v943 = vunpack.c.l.b16 %v909
    %v944 = vunpack.c.h.b16 %v909
    %v945 = vunpack.c.l.b16 %v910
    %v946 = vunpack.c.h.b16 %v910
    %v947 = vunpack.c.l.b16 %v911
    %v948 = vunpack.c.h.b16 %v911
    %v949 = vunpack.c.l.b16 %v912
    %v950 = vunpack.c.h.b16 %v912
    %v951 = vunpack.c.l.b16 %v913
    %v952 = vunpack.c.h.b16 %v913
    %v953 = vunpack.c.l.b16 %v914
    %v954 = vunpack.c.h.b16 %v914
    %v955 = vunpack.c.l.b16 %v915
    %v956 = vunpack.c.h.b16 %v915
    %v957 = vunpack.c.l.b16 %v916
    %v958 = vunpack.c.h.b16 %v916
    %v959 = vunpack.c.l.b16 %v917
    %v960 = vunpack.c.h.b16 %v917
    %v961 = vunpack.c.l.b16 %v918
    %v962 = vunpack.c.h.b16 %v918
    %v963 = vunpack.c.l.b16 %v919
    %v964 = vunpack.c.h.b16 %v919
    %v965 = vunpack.c.l.b16 %v920
    %v966 = vunpack.c.h.b16 %v920
    %v967 = vunpack.c.l.b16 %v921
    %v968 = vunpack.c.h.b16 %v921
    %v969 = vunpack.c.l.b16 %v922
    %v970 = vunpack.c.h.b16 %v922
    %v971 = vpack.c.b16 %v941, %v939
    %v972 = vpack.c.b16 %v942, %v940
    %v973 = vpack.c.b16 %v945, %v943
    %v974 = vpack.c.b16 %v946, %v944
    %v975 = vpack.c.b16 %v949, %v947
    %v976 = vpack.c.b16 %v950, %v948
    %v977 = vpack.c.b16 %v953, %v951
    %v978 = vpack.c.b16 %v954, %v952
    %v979 = vpack.c.b16 %v957, %v955
    %v980 = vpack.c.b16 %v958, %v956
    %v981 = vpack.c.b16 %v961, %v959
    %v982 = vpack.c.b16 %v962, %v960
    %v983 = vpack.c.b16 %v965, %v963
    %v984 = vpack.c.b16 %v966, %v964
    %v985 = vpack.c.b16 %v969, %v967
    %v986 = vpack.c.b16 %v970, %v968
    %1003 = vmatprep.subr.bf16.mxu0 %v986
    %1004 = vmatpush1.bf16.msra.mxu0 %v985
    %1005 = vmatprep.subr.bf16.mxu0 %v984
    %1006 = vmatpush1.bf16.msra.mxu0 %v983
    %1007 = vmatprep.subr.bf16.mxu0 %v982
    %1008 = vmatpush1.bf16.msra.mxu0 %v981
    %1009 = vmatprep.subr.bf16.mxu0 %v980
    %1010 = vmatpush1.bf16.msra.mxu0 %v979
    %1011 = vmatprep.subr.bf16.mxu0 %v978
    %1012 = vmatpush1.bf16.msra.mxu0 %v977
    %1013 = vmatprep.subr.bf16.mxu0 %v976
    %1014 = vmatpush1.bf16.msra.mxu0 %v975
    %1015 = vmatprep.subr.bf16.mxu0 %v974
    %1016 = vmatpush1.bf16.msra.mxu0 %v973
    %1017 = vmatprep.subr.bf16.mxu0 %v972
    %1018 = vmatpush1.bf16.msra.mxu0 %v971
    %1019 = vmatprep.subr.bf16.mxu0 0
    %1020 = vmatpush2.bf16.msra.mxu0 0
    %1021 = vmatprep.subr.bf16.mxu0 0
    %1022 = vmatpush2.bf16.msra.mxu0 0
    %1023 = vmatprep.subr.bf16.mxu0 0
    %1024 = vmatpush2.bf16.msra.mxu0 0
    %1025 = vmatprep.subr.bf16.mxu0 0
    %1026 = vmatpush2.bf16.msra.mxu0 0
    %1027 = vmatprep.subr.bf16.mxu0 0
    %1028 = vmatpush2.bf16.msra.mxu0 0
    %1029 = vmatprep.subr.bf16.mxu0 0
    %1030 = vmatpush2.bf16.msra.mxu0 0
    %1031 = vmatprep.subr.bf16.mxu0 0
    %1032 = vmatpush2.bf16.msra.mxu0 0
    %1033 = vmatprep.subr.bf16.mxu0 0
    %1034 = vmatpush2.bf16.msra.mxu0 0
    %1035 = vmatprep.mubr.bf16.mxu0 0
    %1036 = vmatmul.mubr.bf16.gmra.mxu0 %v906
    %v1037 = vpop.f32.mrf.mxu0
    %v1038 = vadd.f32 0.0, %v1037
    %v1039 = vpop.f32.mrf.mxu0
    %v1040 = vadd.f32 0.0, %v1039
    %v1041 = vpop.f32.mrf.mxu0
    %v1042 = vpop.f32.mrf.mxu0
    %1043 = vdwg.mxu0
    %v1044 = vadd.f32 %v1038, %v875
    %v1045 = vadd.f32 %v1044, %v197
    %v1046 = vmul.f32 %v235, %v729
    %v1047 = vmul.f32 %v237, %v740
    %v1048 = vadd.f32 %v1046, %v1047
    %v1049 = vmul.f32 %v1048, 1.8
    %v1050 = vadd.f32 %v1049, 0.01
    %v1051 = vmul.f32 %v736, %v227
    %v1052 = vmul.f32 %v229, %v1045
    %v1053 = vadd.f32 %v1051, %v1052
    %v1054 = vmul.f32 %v1050, %v740
    %v1055 = vsub.f32 %v1053, %v1054
    %v1056 = vsub.f32 %v1055, %v1050
    %vm1057 = vcmp.gt.f32.partialorder %v1056, 0.0
    %v1058 = vsel %vm1057, 1, 0
    %v1059 = vcvt.s32.f32 %v1058
    %v1060 = vpack.c.bf16 %v1059, %v1059
    %v1061 = vld [vmem:[#allocation25] sm:$0xff]
    %v1062 = vld [vmem:[#allocation25 + $0x8] sm:$0xff]
    %v1063 = vld [vmem:[#allocation25 + $0x10] sm:$0xff]
    %v1064 = vld [vmem:[#allocation25 + $0x18] sm:$0xff]
    %v1065 = vld [vmem:[#allocation25 + $0x20] sm:$0xff]
    %v1066 = vld [vmem:[#allocation25 + $0x28] sm:$0xff]
    %v1067 = vld [vmem:[#allocation25 + $0x30] sm:$0xff]
    %v1068 = vld [vmem:[#allocation25 + $0x38] sm:$0xff]
    %v1069 = vld [vmem:[#allocation25 + $0x40] sm:$0xff]
    %v1070 = vld [vmem:[#allocation25 + $0x48] sm:$0xff]
    %v1071 = vld [vmem:[#allocation25 + $0x50] sm:$0xff]
    %v1072 = vld [vmem:[#allocation25 + $0x58] sm:$0xff]
    %v1073 = vld [vmem:[#allocation25 + $0x60] sm:$0xff]
    %v1074 = vld [vmem:[#allocation25 + $0x68] sm:$0xff]
    %v1075 = vld [vmem:[#allocation25 + $0x70] sm:$0xff]
    %v1076 = vld [vmem:[#allocation25 + $0x78] sm:$0xff]
    %v1093 = vunpack.c.l.b16 %v1061
    %v1094 = vunpack.c.h.b16 %v1061
    %v1095 = vunpack.c.l.b16 %v1062
    %v1096 = vunpack.c.h.b16 %v1062
    %v1097 = vunpack.c.l.b16 %v1063
    %v1098 = vunpack.c.h.b16 %v1063
    %v1099 = vunpack.c.l.b16 %v1064
    %v1100 = vunpack.c.h.b16 %v1064
    %v1101 = vunpack.c.l.b16 %v1065
    %v1102 = vunpack.c.h.b16 %v1065
    %v1103 = vunpack.c.l.b16 %v1066
    %v1104 = vunpack.c.h.b16 %v1066
    %v1105 = vunpack.c.l.b16 %v1067
    %v1106 = vunpack.c.h.b16 %v1067
    %v1107 = vunpack.c.l.b16 %v1068
    %v1108 = vunpack.c.h.b16 %v1068
    %v1109 = vunpack.c.l.b16 %v1069
    %v1110 = vunpack.c.h.b16 %v1069
    %v1111 = vunpack.c.l.b16 %v1070
    %v1112 = vunpack.c.h.b16 %v1070
    %v1113 = vunpack.c.l.b16 %v1071
    %v1114 = vunpack.c.h.b16 %v1071
    %v1115 = vunpack.c.l.b16 %v1072
    %v1116 = vunpack.c.h.b16 %v1072
    %v1117 = vunpack.c.l.b16 %v1073
    %v1118 = vunpack.c.h.b16 %v1073
    %v1119 = vunpack.c.l.b16 %v1074
    %v1120 = vunpack.c.h.b16 %v1074
    %v1121 = vunpack.c.l.b16 %v1075
    %v1122 = vunpack.c.h.b16 %v1075
    %v1123 = vunpack.c.l.b16 %v1076
    %v1124 = vunpack.c.h.b16 %v1076
    %v1125 = vpack.c.b16 %v1095, %v1093
    %v1126 = vpack.c.b16 %v1096, %v1094
    %v1127 = vpack.c.b16 %v1099, %v1097
    %v1128 = vpack.c.b16 %v1100, %v1098
    %v1129 = vpack.c.b16 %v1103, %v1101
    %v1130 = vpack.c.b16 %v1104, %v1102
    %v1131 = vpack.c.b16 %v1107, %v1105
    %v1132 = vpack.c.b16 %v1108, %v1106
    %v1133 = vpack.c.b16 %v1111, %v1109
    %v1134 = vpack.c.b16 %v1112, %v1110
    %v1135 = vpack.c.b16 %v1115, %v1113
    %v1136 = vpack.c.b16 %v1116, %v1114
    %v1137 = vpack.c.b16 %v1119, %v1117
    %v1138 = vpack.c.b16 %v1120, %v1118
    %v1139 = vpack.c.b16 %v1123, %v1121
    %v1140 = vpack.c.b16 %v1124, %v1122
    %1157 = vmatprep.subr.bf16.mxu0 %v1140
    %1158 = vmatpush1.bf16.msra.mxu0 %v1139
    %1159 = vmatprep.subr.bf16.mxu0 %v1138
    %1160 = vmatpush1.bf16.msra.mxu0 %v1137
    %1161 = vmatprep.subr.bf16.mxu0 %v1136
    %1162 = vmatpush1.bf16.msra.mxu0 %v1135
    %1163 = vmatprep.subr.bf16.mxu0 %v1134
    %1164 = vmatpush1.bf16.msra.mxu0 %v1133
    %1165 = vmatprep.subr.bf16.mxu0 %v1132
    %1166 = vmatpush1.bf16.msra.mxu0 %v1131
    %1167 = vmatprep.subr.bf16.mxu0 %v1130
    %1168 = vmatpush1.bf16.msra.mxu0 %v1129
    %1169 = vmatprep.subr.bf16.mxu0 %v1128
    %1170 = vmatpush1.bf16.msra.mxu0 %v1127
    %1171 = vmatprep.subr.bf16.mxu0 %v1126
    %1172 = vmatpush1.bf16.msra.mxu0 %v1125
    %1173 = vmatprep.subr.bf16.mxu0 0
    %1174 = vmatpush2.bf16.msra.mxu0 0
    %1175 = vmatprep.subr.bf16.mxu0 0
    %1176 = vmatpush2.bf16.msra.mxu0 0
    %1177 = vmatprep.subr.bf16.mxu0 0
    %1178 = vmatpush2.bf16.msra.mxu0 0
    %1179 = vmatprep.subr.bf16.mxu0 0
    %1180 = vmatpush2.bf16.msra.mxu0 0
    %1181 = vmatprep.subr.bf16.mxu0 0
    %1182 = vmatpush2.bf16.msra.mxu0 0
    %1183 = vmatprep.subr.bf16.mxu0 0
    %1184 = vmatpush2.bf16.msra.mxu0 0
    %1185 = vmatprep.subr.bf16.mxu0 0
    %1186 = vmatpush2.bf16.msra.mxu0 0
    %1187 = vmatprep.subr.bf16.mxu0 0
    %1188 = vmatpush2.bf16.msra.mxu0 0
    %1189 = vmatprep.mubr.bf16.mxu0 0
    %1190 = vmatmul.mubr.bf16.gmra.mxu0 %v1060
    %v1191 = vpop.f32.mrf.mxu0
    %v1192 = vadd.f32 0.0, %v1191
    %v1193 = vpop.f32.mrf.mxu0
    %v1194 = vadd.f32 0.0, %v1193
    %v1195 = vpop.f32.mrf.mxu0
    %v1196 = vpop.f32.mrf.mxu0
    %1197 = vdwg.mxu0
    %v1198 = vadd.f32 %v1192, %v204
    %v1199 = vmul.f32 %v882, %v243
    %v1200 = vmul.f32 %v245, %v1198
    %v1201 = vadd.f32 %v1199, %v1200
    %s1202 = scalar_lea.vmem [#allocation26], 16
    %1203 = vst [vmem:[%s1202] sm:$0xff] %v905
    %s1204 = scalar_lea.vmem [#allocation27], 16
    %1205 = vst [vmem:[%s1204] sm:$0xff] %v901
    %s1206 = scalar_lea.vmem [#allocation29], 16
    %1207 = vst [vmem:[%s1206] sm:$0xff] %v1201
    %s1208 = scalar_lea.vmem [#allocation11], 24
    %v1209 = vld [vmem:[%s1208] sm:$0xff]
    %v1210 = vadd.f32 %v1209, %v1040
    %v1211 = vmul.f32 %v219, %v894
    %v1212 = vmul.f32 %v221, %v905
    %v1213 = vadd.f32 %v1211, %v1212
    %v1214 = vmul.f32 %v1213, 1.8
    %v1215 = vadd.f32 %v1214, 0.01
    %v1216 = vmul.f32 %v901, %v211
    %v1217 = vmul.f32 %v213, %v1210
    %v1218 = vadd.f32 %v1216, %v1217
    %v1219 = vmul.f32 %v1215, %v905
    %v1220 = vsub.f32 %v1218, %v1219
    %v1221 = vsub.f32 %v1220, %v1215
    %vm1222 = vcmp.gt.f32.partialorder %v1221, 0.0
    %v1223 = vsel %vm1222, 1, 0
    %v1224 = vcvt.s32.f32 %v1223
    %v1225 = vpack.c.bf16 %v1224, %v1224
    %v1226 = vld [vmem:[#allocation23] sm:$0xff]
    %v1227 = vld [vmem:[#allocation23 + $0x8] sm:$0xff]
    %v1228 = vld [vmem:[#allocation23 + $0x10] sm:$0xff]
    %v1229 = vld [vmem:[#allocation23 + $0x18] sm:$0xff]
    %v1230 = vld [vmem:[#allocation23 + $0x20] sm:$0xff]
    %v1231 = vld [vmem:[#allocation23 + $0x28] sm:$0xff]
    %v1232 = vld [vmem:[#allocation23 + $0x30] sm:$0xff]
    %v1233 = vld [vmem:[#allocation23 + $0x38] sm:$0xff]
    %v1234 = vld [vmem:[#allocation23 + $0x40] sm:$0xff]
    %v1235 = vld [vmem:[#allocation23 + $0x48] sm:$0xff]
    %v1236 = vld [vmem:[#allocation23 + $0x50] sm:$0xff]
    %v1237 = vld [vmem:[#allocation23 + $0x58] sm:$0xff]
    %v1238 = vld [vmem:[#allocation23 + $0x60] sm:$0xff]
    %v1239 = vld [vmem:[#allocation23 + $0x68] sm:$0xff]
    %v1240 = vld [vmem:[#allocation23 + $0x70] sm:$0xff]
    %v1241 = vld [vmem:[#allocation23 + $0x78] sm:$0xff]
    %v1258 = vunpack.c.l.b16 %v1226
    %v1259 = vunpack.c.h.b16 %v1226
    %v1260 = vunpack.c.l.b16 %v1227
    %v1261 = vunpack.c.h.b16 %v1227
    %v1262 = vunpack.c.l.b16 %v1228
    %v1263 = vunpack.c.h.b16 %v1228
    %v1264 = vunpack.c.l.b16 %v1229
    %v1265 = vunpack.c.h.b16 %v1229
    %v1266 = vunpack.c.l.b16 %v1230
    %v1267 = vunpack.c.h.b16 %v1230
    %v1268 = vunpack.c.l.b16 %v1231
    %v1269 = vunpack.c.h.b16 %v1231
    %v1270 = vunpack.c.l.b16 %v1232
    %v1271 = vunpack.c.h.b16 %v1232
    %v1272 = vunpack.c.l.b16 %v1233
    %v1273 = vunpack.c.h.b16 %v1233
    %v1274 = vunpack.c.l.b16 %v1234
    %v1275 = vunpack.c.h.b16 %v1234
    %v1276 = vunpack.c.l.b16 %v1235
    %v1277 = vunpack.c.h.b16 %v1235
    %v1278 = vunpack.c.l.b16 %v1236
    %v1279 = vunpack.c.h.b16 %v1236
    %v1280 = vunpack.c.l.b16 %v1237
    %v1281 = vunpack.c.h.b16 %v1237
    %v1282 = vunpack.c.l.b16 %v1238
    %v1283 = vunpack.c.h.b16 %v1238
    %v1284 = vunpack.c.l.b16 %v1239
    %v1285 = vunpack.c.h.b16 %v1239
    %v1286 = vunpack.c.l.b16 %v1240
    %v1287 = vunpack.c.h.b16 %v1240
    %v1288 = vunpack.c.l.b16 %v1241
    %v1289 = vunpack.c.h.b16 %v1241
    %v1290 = vpack.c.b16 %v1260, %v1258
    %v1291 = vpack.c.b16 %v1261, %v1259
    %v1292 = vpack.c.b16 %v1264, %v1262
    %v1293 = vpack.c.b16 %v1265, %v1263
    %v1294 = vpack.c.b16 %v1268, %v1266
    %v1295 = vpack.c.b16 %v1269, %v1267
    %v1296 = vpack.c.b16 %v1272, %v1270
    %v1297 = vpack.c.b16 %v1273, %v1271
    %v1298 = vpack.c.b16 %v1276, %v1274
    %v1299 = vpack.c.b16 %v1277, %v1275
    %v1300 = vpack.c.b16 %v1280, %v1278
    %v1301 = vpack.c.b16 %v1281, %v1279
    %v1302 = vpack.c.b16 %v1284, %v1282
    %v1303 = vpack.c.b16 %v1285, %v1283
    %v1304 = vpack.c.b16 %v1288, %v1286
    %v1305 = vpack.c.b16 %v1289, %v1287
    %1322 = vmatprep.subr.bf16.mxu0 %v1305
    %1323 = vmatpush1.bf16.msra.mxu0 %v1304
    %1324 = vmatprep.subr.bf16.mxu0 %v1303
    %1325 = vmatpush1.bf16.msra.mxu0 %v1302
    %1326 = vmatprep.subr.bf16.mxu0 %v1301
    %1327 = vmatpush1.bf16.msra.mxu0 %v1300
    %1328 = vmatprep.subr.bf16.mxu0 %v1299
    %1329 = vmatpush1.bf16.msra.mxu0 %v1298
    %1330 = vmatprep.subr.bf16.mxu0 %v1297
    %1331 = vmatpush1.bf16.msra.mxu0 %v1296
    %1332 = vmatprep.subr.bf16.mxu0 %v1295
    %1333 = vmatpush1.bf16.msra.mxu0 %v1294
    %1334 = vmatprep.subr.bf16.mxu0 %v1293
    %1335 = vmatpush1.bf16.msra.mxu0 %v1292
    %1336 = vmatprep.subr.bf16.mxu0 %v1291
    %1337 = vmatpush1.bf16.msra.mxu0 %v1290
    %1338 = vmatprep.subr.bf16.mxu0 0
    %1339 = vmatpush2.bf16.msra.mxu0 0
    %1340 = vmatprep.subr.bf16.mxu0 0
    %1341 = vmatpush2.bf16.msra.mxu0 0
    %1342 = vmatprep.subr.bf16.mxu0 0
    %1343 = vmatpush2.bf16.msra.mxu0 0
    %1344 = vmatprep.subr.bf16.mxu0 0
    %1345 = vmatpush2.bf16.msra.mxu0 0
    %1346 = vmatprep.subr.bf16.mxu0 0
    %1347 = vmatpush2.bf16.msra.mxu0 0
    %1348 = vmatprep.subr.bf16.mxu0 0
    %1349 = vmatpush2.bf16.msra.mxu0 0
    %1350 = vmatprep.subr.bf16.mxu0 0
    %1351 = vmatpush2.bf16.msra.mxu0 0
    %1352 = vmatprep.subr.bf16.mxu0 0
    %1353 = vmatpush2.bf16.msra.mxu0 0
    %1354 = vmatprep.mubr.bf16.mxu0 0
    %1355 = vmatmul.mubr.bf16.gmra.mxu0 %v1225
    %v1356 = vpop.f32.mrf.mxu0
    %v1357 = vadd.f32 0.0, %v1356
    %v1358 = vpop.f32.mrf.mxu0
    %v1359 = vadd.f32 0.0, %v1358
    %v1360 = vpop.f32.mrf.mxu0
    %v1361 = vpop.f32.mrf.mxu0
    %1362 = vdwg.mxu0
    %v1363 = vadd.f32 %v1357, %v1194
    %v1364 = vadd.f32 %v1363, %v197
    %v1365 = vmul.f32 %v235, %v1048
    %v1366 = vmul.f32 %v237, %v1059
    %v1367 = vadd.f32 %v1365, %v1366
    %v1368 = vmul.f32 %v1367, 1.8
    %v1369 = vadd.f32 %v1368, 0.01
    %v1370 = vmul.f32 %v1055, %v227
    %v1371 = vmul.f32 %v229, %v1364
    %v1372 = vadd.f32 %v1370, %v1371
    %v1373 = vmul.f32 %v1369, %v1059
    %v1374 = vsub.f32 %v1372, %v1373
    %v1375 = vsub.f32 %v1374, %v1369
    %vm1376 = vcmp.gt.f32.partialorder %v1375, 0.0
    %v1377 = vsel %vm1376, 1, 0
    %v1378 = vcvt.s32.f32 %v1377
    %v1379 = vpack.c.bf16 %v1378, %v1378
    %v1380 = vld [vmem:[#allocation25] sm:$0xff]
    %v1381 = vld [vmem:[#allocation25 + $0x8] sm:$0xff]
    %v1382 = vld [vmem:[#allocation25 + $0x10] sm:$0xff]
    %v1383 = vld [vmem:[#allocation25 + $0x18] sm:$0xff]
    %v1384 = vld [vmem:[#allocation25 + $0x20] sm:$0xff]
    %v1385 = vld [vmem:[#allocation25 + $0x28] sm:$0xff]
    %v1386 = vld [vmem:[#allocation25 + $0x30] sm:$0xff]
    %v1387 = vld [vmem:[#allocation25 + $0x38] sm:$0xff]
    %v1388 = vld [vmem:[#allocation25 + $0x40] sm:$0xff]
    %v1389 = vld [vmem:[#allocation25 + $0x48] sm:$0xff]
    %v1390 = vld [vmem:[#allocation25 + $0x50] sm:$0xff]
    %v1391 = vld [vmem:[#allocation25 + $0x58] sm:$0xff]
    %v1392 = vld [vmem:[#allocation25 + $0x60] sm:$0xff]
    %v1393 = vld [vmem:[#allocation25 + $0x68] sm:$0xff]
    %v1394 = vld [vmem:[#allocation25 + $0x70] sm:$0xff]
    %v1395 = vld [vmem:[#allocation25 + $0x78] sm:$0xff]
    %v1412 = vunpack.c.l.b16 %v1380
    %v1413 = vunpack.c.h.b16 %v1380
    %v1414 = vunpack.c.l.b16 %v1381
    %v1415 = vunpack.c.h.b16 %v1381
    %v1416 = vunpack.c.l.b16 %v1382
    %v1417 = vunpack.c.h.b16 %v1382
    %v1418 = vunpack.c.l.b16 %v1383
    %v1419 = vunpack.c.h.b16 %v1383
    %v1420 = vunpack.c.l.b16 %v1384
    %v1421 = vunpack.c.h.b16 %v1384
    %v1422 = vunpack.c.l.b16 %v1385
    %v1423 = vunpack.c.h.b16 %v1385
    %v1424 = vunpack.c.l.b16 %v1386
    %v1425 = vunpack.c.h.b16 %v1386
    %v1426 = vunpack.c.l.b16 %v1387
    %v1427 = vunpack.c.h.b16 %v1387
    %v1428 = vunpack.c.l.b16 %v1388
    %v1429 = vunpack.c.h.b16 %v1388
    %v1430 = vunpack.c.l.b16 %v1389
    %v1431 = vunpack.c.h.b16 %v1389
    %v1432 = vunpack.c.l.b16 %v1390
    %v1433 = vunpack.c.h.b16 %v1390
    %v1434 = vunpack.c.l.b16 %v1391
    %v1435 = vunpack.c.h.b16 %v1391
    %v1436 = vunpack.c.l.b16 %v1392
    %v1437 = vunpack.c.h.b16 %v1392
    %v1438 = vunpack.c.l.b16 %v1393
    %v1439 = vunpack.c.h.b16 %v1393
    %v1440 = vunpack.c.l.b16 %v1394
    %v1441 = vunpack.c.h.b16 %v1394
    %v1442 = vunpack.c.l.b16 %v1395
    %v1443 = vunpack.c.h.b16 %v1395
    %v1444 = vpack.c.b16 %v1414, %v1412
    %v1445 = vpack.c.b16 %v1415, %v1413
    %v1446 = vpack.c.b16 %v1418, %v1416
    %v1447 = vpack.c.b16 %v1419, %v1417
    %v1448 = vpack.c.b16 %v1422, %v1420
    %v1449 = vpack.c.b16 %v1423, %v1421
    %v1450 = vpack.c.b16 %v1426, %v1424
    %v1451 = vpack.c.b16 %v1427, %v1425
    %v1452 = vpack.c.b16 %v1430, %v1428
    %v1453 = vpack.c.b16 %v1431, %v1429
    %v1454 = vpack.c.b16 %v1434, %v1432
    %v1455 = vpack.c.b16 %v1435, %v1433
    %v1456 = vpack.c.b16 %v1438, %v1436
    %v1457 = vpack.c.b16 %v1439, %v1437
    %v1458 = vpack.c.b16 %v1442, %v1440
    %v1459 = vpack.c.b16 %v1443, %v1441
    %1476 = vmatprep.subr.bf16.mxu0 %v1459
    %1477 = vmatpush1.bf16.msra.mxu0 %v1458
    %1478 = vmatprep.subr.bf16.mxu0 %v1457
    %1479 = vmatpush1.bf16.msra.mxu0 %v1456
    %1480 = vmatprep.subr.bf16.mxu0 %v1455
    %1481 = vmatpush1.bf16.msra.mxu0 %v1454
    %1482 = vmatprep.subr.bf16.mxu0 %v1453
    %1483 = vmatpush1.bf16.msra.mxu0 %v1452
    %1484 = vmatprep.subr.bf16.mxu0 %v1451
    %1485 = vmatpush1.bf16.msra.mxu0 %v1450
    %1486 = vmatprep.subr.bf16.mxu0 %v1449
    %1487 = vmatpush1.bf16.msra.mxu0 %v1448
    %1488 = vmatprep.subr.bf16.mxu0 %v1447
    %1489 = vmatpush1.bf16.msra.mxu0 %v1446
    %1490 = vmatprep.subr.bf16.mxu0 %v1445
    %1491 = vmatpush1.bf16.msra.mxu0 %v1444
    %1492 = vmatprep.subr.bf16.mxu0 0
    %1493 = vmatpush2.bf16.msra.mxu0 0
    %1494 = vmatprep.subr.bf16.mxu0 0
    %1495 = vmatpush2.bf16.msra.mxu0 0
    %1496 = vmatprep.subr.bf16.mxu0 0
    %1497 = vmatpush2.bf16.msra.mxu0 0
    %1498 = vmatprep.subr.bf16.mxu0 0
    %1499 = vmatpush2.bf16.msra.mxu0 0
    %1500 = vmatprep.subr.bf16.mxu0 0
    %1501 = vmatpush2.bf16.msra.mxu0 0
    %1502 = vmatprep.subr.bf16.mxu0 0
    %1503 = vmatpush2.bf16.msra.mxu0 0
    %1504 = vmatprep.subr.bf16.mxu0 0
    %1505 = vmatpush2.bf16.msra.mxu0 0
    %1506 = vmatprep.subr.bf16.mxu0 0
    %1507 = vmatpush2.bf16.msra.mxu0 0
    %1508 = vmatprep.mubr.bf16.mxu0 0
    %1509 = vmatmul.mubr.bf16.gmra.mxu0 %v1379
    %v1510 = vpop.f32.mrf.mxu0
    %v1511 = vadd.f32 0.0, %v1510
    %v1512 = vpop.f32.mrf.mxu0
    %v1513 = vadd.f32 0.0, %v1512
    %v1514 = vpop.f32.mrf.mxu0
    %v1515 = vpop.f32.mrf.mxu0
    %1516 = vdwg.mxu0
    %v1517 = vadd.f32 %v1511, %v204
    %v1518 = vmul.f32 %v1201, %v243
    %v1519 = vmul.f32 %v245, %v1517
    %v1520 = vadd.f32 %v1518, %v1519
    %s1521 = scalar_lea.vmem [#allocation26], 24
    %1522 = vst [vmem:[%s1521] sm:$0xff] %v1224
    %s1523 = scalar_lea.vmem [#allocation27], 24
    %1524 = vst [vmem:[%s1523] sm:$0xff] %v1220
    %s1525 = scalar_lea.vmem [#allocation29], 24
    %1526 = vst [vmem:[%s1525] sm:$0xff] %v1520
    %s1527 = scalar_lea.vmem [#allocation11], 32
    %v1528 = vld [vmem:[%s1527] sm:$0xff]
    %v1529 = vadd.f32 %v1528, %v1359
    %v1530 = vmul.f32 %v219, %v1213
    %v1531 = vmul.f32 %v221, %v1224
    %v1532 = vadd.f32 %v1530, %v1531
    %v1533 = vmul.f32 %v1532, 1.8
    %v1534 = vadd.f32 %v1533, 0.01
    %v1535 = vmul.f32 %v1220, %v211
    %v1536 = vmul.f32 %v213, %v1529
    %v1537 = vadd.f32 %v1535, %v1536
    %v1538 = vmul.f32 %v1534, %v1224
    %v1539 = vsub.f32 %v1537, %v1538
    %v1540 = vsub.f32 %v1539, %v1534
    %vm1541 = vcmp.gt.f32.partialorder %v1540, 0.0
    %v1542 = vsel %vm1541, 1, 0
    %v1543 = vcvt.s32.f32 %v1542
    %v1544 = vpack.c.bf16 %v1543, %v1543
    %v1545 = vld [vmem:[#allocation23] sm:$0xff]
    %v1546 = vld [vmem:[#allocation23 + $0x8] sm:$0xff]
    %v1547 = vld [vmem:[#allocation23 + $0x10] sm:$0xff]
    %v1548 = vld [vmem:[#allocation23 + $0x18] sm:$0xff]
    %v1549 = vld [vmem:[#allocation23 + $0x20] sm:$0xff]
    %v1550 = vld [vmem:[#allocation23 + $0x28] sm:$0xff]
    %v1551 = vld [vmem:[#allocation23 + $0x30] sm:$0xff]
    %v1552 = vld [vmem:[#allocation23 + $0x38] sm:$0xff]
    %v1553 = vld [vmem:[#allocation23 + $0x40] sm:$0xff]
    %v1554 = vld [vmem:[#allocation23 + $0x48] sm:$0xff]
    %v1555 = vld [vmem:[#allocation23 + $0x50] sm:$0xff]
    %v1556 = vld [vmem:[#allocation23 + $0x58] sm:$0xff]
    %v1557 = vld [vmem:[#allocation23 + $0x60] sm:$0xff]
    %v1558 = vld [vmem:[#allocation23 + $0x68] sm:$0xff]
    %v1559 = vld [vmem:[#allocation23 + $0x70] sm:$0xff]
    %v1560 = vld [vmem:[#allocation23 + $0x78] sm:$0xff]
    %v1577 = vunpack.c.l.b16 %v1545
    %v1578 = vunpack.c.h.b16 %v1545
    %v1579 = vunpack.c.l.b16 %v1546
    %v1580 = vunpack.c.h.b16 %v1546
    %v1581 = vunpack.c.l.b16 %v1547
    %v1582 = vunpack.c.h.b16 %v1547
    %v1583 = vunpack.c.l.b16 %v1548
    %v1584 = vunpack.c.h.b16 %v1548
    %v1585 = vunpack.c.l.b16 %v1549
    %v1586 = vunpack.c.h.b16 %v1549
    %v1587 = vunpack.c.l.b16 %v1550
    %v1588 = vunpack.c.h.b16 %v1550
    %v1589 = vunpack.c.l.b16 %v1551
    %v1590 = vunpack.c.h.b16 %v1551
    %v1591 = vunpack.c.l.b16 %v1552
    %v1592 = vunpack.c.h.b16 %v1552
    %v1593 = vunpack.c.l.b16 %v1553
    %v1594 = vunpack.c.h.b16 %v1553
    %v1595 = vunpack.c.l.b16 %v1554
    %v1596 = vunpack.c.h.b16 %v1554
    %v1597 = vunpack.c.l.b16 %v1555
    %v1598 = vunpack.c.h.b16 %v1555
    %v1599 = vunpack.c.l.b16 %v1556
    %v1600 = vunpack.c.h.b16 %v1556
    %v1601 = vunpack.c.l.b16 %v1557
    %v1602 = vunpack.c.h.b16 %v1557
    %v1603 = vunpack.c.l.b16 %v1558
    %v1604 = vunpack.c.h.b16 %v1558
    %v1605 = vunpack.c.l.b16 %v1559
    %v1606 = vunpack.c.h.b16 %v1559
    %v1607 = vunpack.c.l.b16 %v1560
    %v1608 = vunpack.c.h.b16 %v1560
    %v1609 = vpack.c.b16 %v1579, %v1577
    %v1610 = vpack.c.b16 %v1580, %v1578
    %v1611 = vpack.c.b16 %v1583, %v1581
    %v1612 = vpack.c.b16 %v1584, %v1582
    %v1613 = vpack.c.b16 %v1587, %v1585
    %v1614 = vpack.c.b16 %v1588, %v1586
    %v1615 = vpack.c.b16 %v1591, %v1589
    %v1616 = vpack.c.b16 %v1592, %v1590
    %v1617 = vpack.c.b16 %v1595, %v1593
    %v1618 = vpack.c.b16 %v1596, %v1594
    %v1619 = vpack.c.b16 %v1599, %v1597
    %v1620 = vpack.c.b16 %v1600, %v1598
    %v1621 = vpack.c.b16 %v1603, %v1601
    %v1622 = vpack.c.b16 %v1604, %v1602
    %v1623 = vpack.c.b16 %v1607, %v1605
    %v1624 = vpack.c.b16 %v1608, %v1606
    %1641 = vmatprep.subr.bf16.mxu0 %v1624
    %1642 = vmatpush1.bf16.msra.mxu0 %v1623
    %1643 = vmatprep.subr.bf16.mxu0 %v1622
    %1644 = vmatpush1.bf16.msra.mxu0 %v1621
    %1645 = vmatprep.subr.bf16.mxu0 %v1620
    %1646 = vmatpush1.bf16.msra.mxu0 %v1619
    %1647 = vmatprep.subr.bf16.mxu0 %v1618
    %1648 = vmatpush1.bf16.msra.mxu0 %v1617
    %1649 = vmatprep.subr.bf16.mxu0 %v1616
    %1650 = vmatpush1.bf16.msra.mxu0 %v1615
    %1651 = vmatprep.subr.bf16.mxu0 %v1614
    %1652 = vmatpush1.bf16.msra.mxu0 %v1613
    %1653 = vmatprep.subr.bf16.mxu0 %v1612
    %1654 = vmatpush1.bf16.msra.mxu0 %v1611
    %1655 = vmatprep.subr.bf16.mxu0 %v1610
    %1656 = vmatpush1.bf16.msra.mxu0 %v1609
    %1657 = vmatprep.subr.bf16.mxu0 0
    %1658 = vmatpush2.bf16.msra.mxu0 0
    %1659 = vmatprep.subr.bf16.mxu0 0
    %1660 = vmatpush2.bf16.msra.mxu0 0
    %1661 = vmatprep.subr.bf16.mxu0 0
    %1662 = vmatpush2.bf16.msra.mxu0 0
    %1663 = vmatprep.subr.bf16.mxu0 0
    %1664 = vmatpush2.bf16.msra.mxu0 0
    %1665 = vmatprep.subr.bf16.mxu0 0
    %1666 = vmatpush2.bf16.msra.mxu0 0
    %1667 = vmatprep.subr.bf16.mxu0 0
    %1668 = vmatpush2.bf16.msra.mxu0 0
    %1669 = vmatprep.subr.bf16.mxu0 0
    %1670 = vmatpush2.bf16.msra.mxu0 0
    %1671 = vmatprep.subr.bf16.mxu0 0
    %1672 = vmatpush2.bf16.msra.mxu0 0
    %1673 = vmatprep.mubr.bf16.mxu0 0
    %1674 = vmatmul.mubr.bf16.gmra.mxu0 %v1544
    %v1675 = vpop.f32.mrf.mxu0
    %v1676 = vadd.f32 0.0, %v1675
    %v1677 = vpop.f32.mrf.mxu0
    %v1678 = vadd.f32 0.0, %v1677
    %v1679 = vpop.f32.mrf.mxu0
    %v1680 = vpop.f32.mrf.mxu0
    %1681 = vdwg.mxu0
    %v1682 = vadd.f32 %v1676, %v1513
    %v1683 = vadd.f32 %v1682, %v197
    %v1684 = vmul.f32 %v235, %v1367
    %v1685 = vmul.f32 %v237, %v1378
    %v1686 = vadd.f32 %v1684, %v1685
    %v1687 = vmul.f32 %v1686, 1.8
    %v1688 = vadd.f32 %v1687, 0.01
    %v1689 = vmul.f32 %v1374, %v227
    %v1690 = vmul.f32 %v229, %v1683
    %v1691 = vadd.f32 %v1689, %v1690
    %v1692 = vmul.f32 %v1688, %v1378
    %v1693 = vsub.f32 %v1691, %v1692
    %v1694 = vsub.f32 %v1693, %v1688
    %vm1695 = vcmp.gt.f32.partialorder %v1694, 0.0
    %v1696 = vsel %vm1695, 1, 0
    %v1697 = vcvt.s32.f32 %v1696
    %v1698 = vpack.c.bf16 %v1697, %v1697
    %v1699 = vld [vmem:[#allocation25] sm:$0xff]
    %v1700 = vld [vmem:[#allocation25 + $0x8] sm:$0xff]
    %v1701 = vld [vmem:[#allocation25 + $0x10] sm:$0xff]
    %v1702 = vld [vmem:[#allocation25 + $0x18] sm:$0xff]
    %v1703 = vld [vmem:[#allocation25 + $0x20] sm:$0xff]
    %v1704 = vld [vmem:[#allocation25 + $0x28] sm:$0xff]
    %v1705 = vld [vmem:[#allocation25 + $0x30] sm:$0xff]
    %v1706 = vld [vmem:[#allocation25 + $0x38] sm:$0xff]
    %v1707 = vld [vmem:[#allocation25 + $0x40] sm:$0xff]
    %v1708 = vld [vmem:[#allocation25 + $0x48] sm:$0xff]
    %v1709 = vld [vmem:[#allocation25 + $0x50] sm:$0xff]
    %v1710 = vld [vmem:[#allocation25 + $0x58] sm:$0xff]
    %v1711 = vld [vmem:[#allocation25 + $0x60] sm:$0xff]
    %v1712 = vld [vmem:[#allocation25 + $0x68] sm:$0xff]
    %v1713 = vld [vmem:[#allocation25 + $0x70] sm:$0xff]
    %v1714 = vld [vmem:[#allocation25 + $0x78] sm:$0xff]
    %v1731 = vunpack.c.l.b16 %v1699
    %v1732 = vunpack.c.h.b16 %v1699
    %v1733 = vunpack.c.l.b16 %v1700
    %v1734 = vunpack.c.h.b16 %v1700
    %v1735 = vunpack.c.l.b16 %v1701
    %v1736 = vunpack.c.h.b16 %v1701
    %v1737 = vunpack.c.l.b16 %v1702
    %v1738 = vunpack.c.h.b16 %v1702
    %v1739 = vunpack.c.l.b16 %v1703
    %v1740 = vunpack.c.h.b16 %v1703
    %v1741 = vunpack.c.l.b16 %v1704
    %v1742 = vunpack.c.h.b16 %v1704
    %v1743 = vunpack.c.l.b16 %v1705
    %v1744 = vunpack.c.h.b16 %v1705
    %v1745 = vunpack.c.l.b16 %v1706
    %v1746 = vunpack.c.h.b16 %v1706
    %v1747 = vunpack.c.l.b16 %v1707
    %v1748 = vunpack.c.h.b16 %v1707
    %v1749 = vunpack.c.l.b16 %v1708
    %v1750 = vunpack.c.h.b16 %v1708
    %v1751 = vunpack.c.l.b16 %v1709
    %v1752 = vunpack.c.h.b16 %v1709
    %v1753 = vunpack.c.l.b16 %v1710
    %v1754 = vunpack.c.h.b16 %v1710
    %v1755 = vunpack.c.l.b16 %v1711
    %v1756 = vunpack.c.h.b16 %v1711
    %v1757 = vunpack.c.l.b16 %v1712
    %v1758 = vunpack.c.h.b16 %v1712
    %v1759 = vunpack.c.l.b16 %v1713
    %v1760 = vunpack.c.h.b16 %v1713
    %v1761 = vunpack.c.l.b16 %v1714
    %v1762 = vunpack.c.h.b16 %v1714
    %v1763 = vpack.c.b16 %v1733, %v1731
    %v1764 = vpack.c.b16 %v1734, %v1732
    %v1765 = vpack.c.b16 %v1737, %v1735
    %v1766 = vpack.c.b16 %v1738, %v1736
    %v1767 = vpack.c.b16 %v1741, %v1739
    %v1768 = vpack.c.b16 %v1742, %v1740
    %v1769 = vpack.c.b16 %v1745, %v1743
    %v1770 = vpack.c.b16 %v1746, %v1744
    %v1771 = vpack.c.b16 %v1749, %v1747
    %v1772 = vpack.c.b16 %v1750, %v1748
    %v1773 = vpack.c.b16 %v1753, %v1751
    %v1774 = vpack.c.b16 %v1754, %v1752
    %v1775 = vpack.c.b16 %v1757, %v1755
    %v1776 = vpack.c.b16 %v1758, %v1756
    %v1777 = vpack.c.b16 %v1761, %v1759
    %v1778 = vpack.c.b16 %v1762, %v1760
    %1795 = vmatprep.subr.bf16.mxu0 %v1778
    %1796 = vmatpush1.bf16.msra.mxu0 %v1777
    %1797 = vmatprep.subr.bf16.mxu0 %v1776
    %1798 = vmatpush1.bf16.msra.mxu0 %v1775
    %1799 = vmatprep.subr.bf16.mxu0 %v1774
    %1800 = vmatpush1.bf16.msra.mxu0 %v1773
    %1801 = vmatprep.subr.bf16.mxu0 %v1772
    %1802 = vmatpush1.bf16.msra.mxu0 %v1771
    %1803 = vmatprep.subr.bf16.mxu0 %v1770
    %1804 = vmatpush1.bf16.msra.mxu0 %v1769
    %1805 = vmatprep.subr.bf16.mxu0 %v1768
    %1806 = vmatpush1.bf16.msra.mxu0 %v1767
    %1807 = vmatprep.subr.bf16.mxu0 %v1766
    %1808 = vmatpush1.bf16.msra.mxu0 %v1765
    %1809 = vmatprep.subr.bf16.mxu0 %v1764
    %1810 = vmatpush1.bf16.msra.mxu0 %v1763
    %1811 = vmatprep.subr.bf16.mxu0 0
    %1812 = vmatpush2.bf16.msra.mxu0 0
    %1813 = vmatprep.subr.bf16.mxu0 0
    %1814 = vmatpush2.bf16.msra.mxu0 0
    %1815 = vmatprep.subr.bf16.mxu0 0
    %1816 = vmatpush2.bf16.msra.mxu0 0
    %1817 = vmatprep.subr.bf16.mxu0 0
    %1818 = vmatpush2.bf16.msra.mxu0 0
    %1819 = vmatprep.subr.bf16.mxu0 0
    %1820 = vmatpush2.bf16.msra.mxu0 0
    %1821 = vmatprep.subr.bf16.mxu0 0
    %1822 = vmatpush2.bf16.msra.mxu0 0
    %1823 = vmatprep.subr.bf16.mxu0 0
    %1824 = vmatpush2.bf16.msra.mxu0 0
    %1825 = vmatprep.subr.bf16.mxu0 0
    %1826 = vmatpush2.bf16.msra.mxu0 0
    %1827 = vmatprep.mubr.bf16.mxu0 0
    %1828 = vmatmul.mubr.bf16.gmra.mxu0 %v1698
    %v1829 = vpop.f32.mrf.mxu0
    %v1830 = vadd.f32 0.0, %v1829
    %v1831 = vpop.f32.mrf.mxu0
    %v1832 = vadd.f32 0.0, %v1831
    %v1833 = vpop.f32.mrf.mxu0
    %v1834 = vpop.f32.mrf.mxu0
    %1835 = vdwg.mxu0
    %v1836 = vadd.f32 %v1830, %v204
    %v1837 = vmul.f32 %v1520, %v243
    %v1838 = vmul.f32 %v245, %v1836
    %v1839 = vadd.f32 %v1837, %v1838
    %s1840 = scalar_lea.vmem [#allocation26], 32
    %1841 = vst [vmem:[%s1840] sm:$0xff] %v1543
    %s1842 = scalar_lea.vmem [#allocation27], 32
    %1843 = vst [vmem:[%s1842] sm:$0xff] %v1539
    %s1844 = scalar_lea.vmem [#allocation29], 32
    %1845 = vst [vmem:[%s1844] sm:$0xff] %v1839
    %s1846 = scalar_lea.vmem [#allocation11], 40
    %v1847 = vld [vmem:[%s1846] sm:$0xff]
    %v1848 = vadd.f32 %v1847, %v1678
    %v1849 = vmul.f32 %v219, %v1532
    %v1850 = vmul.f32 %v221, %v1543
    %v1851 = vadd.f32 %v1849, %v1850
    %v1852 = vmul.f32 %v1851, 1.8
    %v1853 = vadd.f32 %v1852, 0.01
    %v1854 = vmul.f32 %v1539, %v211
    %v1855 = vmul.f32 %v213, %v1848
    %v1856 = vadd.f32 %v1854, %v1855
    %v1857 = vmul.f32 %v1853, %v1543
    %v1858 = vsub.f32 %v1856, %v1857
    %v1859 = vsub.f32 %v1858, %v1853
    %vm1860 = vcmp.gt.f32.partialorder %v1859, 0.0
    %v1861 = vsel %vm1860, 1, 0
    %v1862 = vcvt.s32.f32 %v1861
    %v1863 = vpack.c.bf16 %v1862, %v1862
    %v1864 = vld [vmem:[#allocation23] sm:$0xff]
    %v1865 = vld [vmem:[#allocation23 + $0x8] sm:$0xff]
    %v1866 = vld [vmem:[#allocation23 + $0x10] sm:$0xff]
    %v1867 = vld [vmem:[#allocation23 + $0x18] sm:$0xff]
    %v1868 = vld [vmem:[#allocation23 + $0x20] sm:$0xff]
    %v1869 = vld [vmem:[#allocation23 + $0x28] sm:$0xff]
    %v1870 = vld [vmem:[#allocation23 + $0x30] sm:$0xff]
    %v1871 = vld [vmem:[#allocation23 + $0x38] sm:$0xff]
    %v1872 = vld [vmem:[#allocation23 + $0x40] sm:$0xff]
    %v1873 = vld [vmem:[#allocation23 + $0x48] sm:$0xff]
    %v1874 = vld [vmem:[#allocation23 + $0x50] sm:$0xff]
    %v1875 = vld [vmem:[#allocation23 + $0x58] sm:$0xff]
    %v1876 = vld [vmem:[#allocation23 + $0x60] sm:$0xff]
    %v1877 = vld [vmem:[#allocation23 + $0x68] sm:$0xff]
    %v1878 = vld [vmem:[#allocation23 + $0x70] sm:$0xff]
    %v1879 = vld [vmem:[#allocation23 + $0x78] sm:$0xff]
    %v1896 = vunpack.c.l.b16 %v1864
    %v1897 = vunpack.c.h.b16 %v1864
    %v1898 = vunpack.c.l.b16 %v1865
    %v1899 = vunpack.c.h.b16 %v1865
    %v1900 = vunpack.c.l.b16 %v1866
    %v1901 = vunpack.c.h.b16 %v1866
    %v1902 = vunpack.c.l.b16 %v1867
    %v1903 = vunpack.c.h.b16 %v1867
    %v1904 = vunpack.c.l.b16 %v1868
    %v1905 = vunpack.c.h.b16 %v1868
    %v1906 = vunpack.c.l.b16 %v1869
    %v1907 = vunpack.c.h.b16 %v1869
    %v1908 = vunpack.c.l.b16 %v1870
    %v1909 = vunpack.c.h.b16 %v1870
    %v1910 = vunpack.c.l.b16 %v1871
    %v1911 = vunpack.c.h.b16 %v1871
    %v1912 = vunpack.c.l.b16 %v1872
    %v1913 = vunpack.c.h.b16 %v1872
    %v1914 = vunpack.c.l.b16 %v1873
    %v1915 = vunpack.c.h.b16 %v1873
    %v1916 = vunpack.c.l.b16 %v1874
    %v1917 = vunpack.c.h.b16 %v1874
    %v1918 = vunpack.c.l.b16 %v1875
    %v1919 = vunpack.c.h.b16 %v1875
    %v1920 = vunpack.c.l.b16 %v1876
    %v1921 = vunpack.c.h.b16 %v1876
    %v1922 = vunpack.c.l.b16 %v1877
    %v1923 = vunpack.c.h.b16 %v1877
    %v1924 = vunpack.c.l.b16 %v1878
    %v1925 = vunpack.c.h.b16 %v1878
    %v1926 = vunpack.c.l.b16 %v1879
    %v1927 = vunpack.c.h.b16 %v1879
    %v1928 = vpack.c.b16 %v1898, %v1896
    %v1929 = vpack.c.b16 %v1899, %v1897
    %v1930 = vpack.c.b16 %v1902, %v1900
    %v1931 = vpack.c.b16 %v1903, %v1901
    %v1932 = vpack.c.b16 %v1906, %v1904
    %v1933 = vpack.c.b16 %v1907, %v1905
    %v1934 = vpack.c.b16 %v1910, %v1908
    %v1935 = vpack.c.b16 %v1911, %v1909
    %v1936 = vpack.c.b16 %v1914, %v1912
    %v1937 = vpack.c.b16 %v1915, %v1913
    %v1938 = vpack.c.b16 %v1918, %v1916
    %v1939 = vpack.c.b16 %v1919, %v1917
    %v1940 = vpack.c.b16 %v1922, %v1920
    %v1941 = vpack.c.b16 %v1923, %v1921
    %v1942 = vpack.c.b16 %v1926, %v1924
    %v1943 = vpack.c.b16 %v1927, %v1925
    %1960 = vmatprep.subr.bf16.mxu0 %v1943
    %1961 = vmatpush1.bf16.msra.mxu0 %v1942
    %1962 = vmatprep.subr.bf16.mxu0 %v1941
    %1963 = vmatpush1.bf16.msra.mxu0 %v1940
    %1964 = vmatprep.subr.bf16.mxu0 %v1939
    %1965 = vmatpush1.bf16.msra.mxu0 %v1938
    %1966 = vmatprep.subr.bf16.mxu0 %v1937
    %1967 = vmatpush1.bf16.msra.mxu0 %v1936
    %1968 = vmatprep.subr.bf16.mxu0 %v1935
    %1969 = vmatpush1.bf16.msra.mxu0 %v1934
    %1970 = vmatprep.subr.bf16.mxu0 %v1933
    %1971 = vmatpush1.bf16.msra.mxu0 %v1932
    %1972 = vmatprep.subr.bf16.mxu0 %v1931
    %1973 = vmatpush1.bf16.msra.mxu0 %v1930
    %1974 = vmatprep.subr.bf16.mxu0 %v1929
    %1975 = vmatpush1.bf16.msra.mxu0 %v1928
    %1976 = vmatprep.subr.bf16.mxu0 0
    %1977 = vmatpush2.bf16.msra.mxu0 0
    %1978 = vmatprep.subr.bf16.mxu0 0
    %1979 = vmatpush2.bf16.msra.mxu0 0
    %1980 = vmatprep.subr.bf16.mxu0 0
    %1981 = vmatpush2.bf16.msra.mxu0 0
    %1982 = vmatprep.subr.bf16.mxu0 0
    %1983 = vmatpush2.bf16.msra.mxu0 0
    %1984 = vmatprep.subr.bf16.mxu0 0
    %1985 = vmatpush2.bf16.msra.mxu0 0
    %1986 = vmatprep.subr.bf16.mxu0 0
    %1987 = vmatpush2.bf16.msra.mxu0 0
    %1988 = vmatprep.subr.bf16.mxu0 0
    %1989 = vmatpush2.bf16.msra.mxu0 0
    %1990 = vmatprep.subr.bf16.mxu0 0
    %1991 = vmatpush2.bf16.msra.mxu0 0
    %1992 = vmatprep.mubr.bf16.mxu0 0
    %1993 = vmatmul.mubr.bf16.gmra.mxu0 %v1863
    %v1994 = vpop.f32.mrf.mxu0
    %v1995 = vadd.f32 0.0, %v1994
    %v1996 = vpop.f32.mrf.mxu0
    %v1997 = vadd.f32 0.0, %v1996
    %v1998 = vpop.f32.mrf.mxu0
    %v1999 = vpop.f32.mrf.mxu0
    %2000 = vdwg.mxu0
    %v2001 = vadd.f32 %v1995, %v1832
    %v2002 = vadd.f32 %v2001, %v197
    %v2003 = vmul.f32 %v235, %v1686
    %v2004 = vmul.f32 %v237, %v1697
    %v2005 = vadd.f32 %v2003, %v2004
    %v2006 = vmul.f32 %v2005, 1.8
    %v2007 = vadd.f32 %v2006, 0.01
    %v2008 = vmul.f32 %v1693, %v227
    %v2009 = vmul.f32 %v229, %v2002
    %v2010 = vadd.f32 %v2008, %v2009
    %v2011 = vmul.f32 %v2007, %v1697
    %v2012 = vsub.f32 %v2010, %v2011
    %v2013 = vsub.f32 %v2012, %v2007
    %vm2014 = vcmp.gt.f32.partialorder %v2013, 0.0
    %v2015 = vsel %vm2014, 1, 0
    %v2016 = vcvt.s32.f32 %v2015
    %v2017 = vpack.c.bf16 %v2016, %v2016
    %v2018 = vld [vmem:[#allocation25] sm:$0xff]
    %v2019 = vld [vmem:[#allocation25 + $0x8] sm:$0xff]
    %v2020 = vld [vmem:[#allocation25 + $0x10] sm:$0xff]
    %v2021 = vld [vmem:[#allocation25 + $0x18] sm:$0xff]
    %v2022 = vld [vmem:[#allocation25 + $0x20] sm:$0xff]
    %v2023 = vld [vmem:[#allocation25 + $0x28] sm:$0xff]
    %v2024 = vld [vmem:[#allocation25 + $0x30] sm:$0xff]
    %v2025 = vld [vmem:[#allocation25 + $0x38] sm:$0xff]
    %v2026 = vld [vmem:[#allocation25 + $0x40] sm:$0xff]
    %v2027 = vld [vmem:[#allocation25 + $0x48] sm:$0xff]
    %v2028 = vld [vmem:[#allocation25 + $0x50] sm:$0xff]
    %v2029 = vld [vmem:[#allocation25 + $0x58] sm:$0xff]
    %v2030 = vld [vmem:[#allocation25 + $0x60] sm:$0xff]
    %v2031 = vld [vmem:[#allocation25 + $0x68] sm:$0xff]
    %v2032 = vld [vmem:[#allocation25 + $0x70] sm:$0xff]
    %v2033 = vld [vmem:[#allocation25 + $0x78] sm:$0xff]
    %v2050 = vunpack.c.l.b16 %v2018
    %v2051 = vunpack.c.h.b16 %v2018
    %v2052 = vunpack.c.l.b16 %v2019
    %v2053 = vunpack.c.h.b16 %v2019
    %v2054 = vunpack.c.l.b16 %v2020
    %v2055 = vunpack.c.h.b16 %v2020
    %v2056 = vunpack.c.l.b16 %v2021
    %v2057 = vunpack.c.h.b16 %v2021
    %v2058 = vunpack.c.l.b16 %v2022
    %v2059 = vunpack.c.h.b16 %v2022
    %v2060 = vunpack.c.l.b16 %v2023
    %v2061 = vunpack.c.h.b16 %v2023
    %v2062 = vunpack.c.l.b16 %v2024
    %v2063 = vunpack.c.h.b16 %v2024
    %v2064 = vunpack.c.l.b16 %v2025
    %v2065 = vunpack.c.h.b16 %v2025
    %v2066 = vunpack.c.l.b16 %v2026
    %v2067 = vunpack.c.h.b16 %v2026
    %v2068 = vunpack.c.l.b16 %v2027
    %v2069 = vunpack.c.h.b16 %v2027
    %v2070 = vunpack.c.l.b16 %v2028
    %v2071 = vunpack.c.h.b16 %v2028
    %v2072 = vunpack.c.l.b16 %v2029
    %v2073 = vunpack.c.h.b16 %v2029
    %v2074 = vunpack.c.l.b16 %v2030
    %v2075 = vunpack.c.h.b16 %v2030
    %v2076 = vunpack.c.l.b16 %v2031
    %v2077 = vunpack.c.h.b16 %v2031
    %v2078 = vunpack.c.l.b16 %v2032
    %v2079 = vunpack.c.h.b16 %v2032
    %v2080 = vunpack.c.l.b16 %v2033
    %v2081 = vunpack.c.h.b16 %v2033
    %v2082 = vpack.c.b16 %v2052, %v2050
    %v2083 = vpack.c.b16 %v2053, %v2051
    %v2084 = vpack.c.b16 %v2056, %v2054
    %v2085 = vpack.c.b16 %v2057, %v2055
    %v2086 = vpack.c.b16 %v2060, %v2058
    %v2087 = vpack.c.b16 %v2061, %v2059
    %v2088 = vpack.c.b16 %v2064, %v2062
    %v2089 = vpack.c.b16 %v2065, %v2063
    %v2090 = vpack.c.b16 %v2068, %v2066
    %v2091 = vpack.c.b16 %v2069, %v2067
    %v2092 = vpack.c.b16 %v2072, %v2070
    %v2093 = vpack.c.b16 %v2073, %v2071
    %v2094 = vpack.c.b16 %v2076, %v2074
    %v2095 = vpack.c.b16 %v2077, %v2075
    %v2096 = vpack.c.b16 %v2080, %v2078
    %v2097 = vpack.c.b16 %v2081, %v2079
    %2114 = vmatprep.subr.bf16.mxu0 %v2097
    %2115 = vmatpush1.bf16.msra.mxu0 %v2096
    %2116 = vmatprep.subr.bf16.mxu0 %v2095
    %2117 = vmatpush1.bf16.msra.mxu0 %v2094
    %2118 = vmatprep.subr.bf16.mxu0 %v2093
    %2119 = vmatpush1.bf16.msra.mxu0 %v2092
    %2120 = vmatprep.subr.bf16.mxu0 %v2091
    %2121 = vmatpush1.bf16.msra.mxu0 %v2090
    %2122 = vmatprep.subr.bf16.mxu0 %v2089
    %2123 = vmatpush1.bf16.msra.mxu0 %v2088
    %2124 = vmatprep.subr.bf16.mxu0 %v2087
    %2125 = vmatpush1.bf16.msra.mxu0 %v2086
    %2126 = vmatprep.subr.bf16.mxu0 %v2085
    %2127 = vmatpush1.bf16.msra.mxu0 %v2084
    %2128 = vmatprep.subr.bf16.mxu0 %v2083
    %2129 = vmatpush1.bf16.msra.mxu0 %v2082
    %2130 = vmatprep.subr.bf16.mxu0 0
    %2131 = vmatpush2.bf16.msra.mxu0 0
    %2132 = vmatprep.subr.bf16.mxu0 0
    %2133 = vmatpush2.bf16.msra.mxu0 0
    %2134 = vmatprep.subr.bf16.mxu0 0
    %2135 = vmatpush2.bf16.msra.mxu0 0
    %2136 = vmatprep.subr.bf16.mxu0 0
    %2137 = vmatpush2.bf16.msra.mxu0 0
    %2138 = vmatprep.subr.bf16.mxu0 0
    %2139 = vmatpush2.bf16.msra.mxu0 0
    %2140 = vmatprep.subr.bf16.mxu0 0
    %2141 = vmatpush2.bf16.msra.mxu0 0
    %2142 = vmatprep.subr.bf16.mxu0 0
    %2143 = vmatpush2.bf16.msra.mxu0 0
    %2144 = vmatprep.subr.bf16.mxu0 0
    %2145 = vmatpush2.bf16.msra.mxu0 0
    %2146 = vmatprep.mubr.bf16.mxu0 0
    %2147 = vmatmul.mubr.bf16.gmra.mxu0 %v2017
    %v2148 = vpop.f32.mrf.mxu0
    %v2149 = vadd.f32 0.0, %v2148
    %v2150 = vpop.f32.mrf.mxu0
    %v2151 = vadd.f32 0.0, %v2150
    %v2152 = vpop.f32.mrf.mxu0
    %v2153 = vpop.f32.mrf.mxu0
    %2154 = vdwg.mxu0
    %v2155 = vadd.f32 %v2149, %v204
    %v2156 = vmul.f32 %v1839, %v243
    %v2157 = vmul.f32 %v245, %v2155
    %v2158 = vadd.f32 %v2156, %v2157
    %s2159 = scalar_lea.vmem [#allocation26], 40
    %2160 = vst [vmem:[%s2159] sm:$0xff] %v1862
    %s2161 = scalar_lea.vmem [#allocation27], 40
    %2162 = vst [vmem:[%s2161] sm:$0xff] %v1858
    %s2163 = scalar_lea.vmem [#allocation29], 40
    %2164 = vst [vmem:[%s2163] sm:$0xff] %v2158
    %s2165 = scalar_lea.vmem [#allocation11], 48
    %v2166 = vld [vmem:[%s2165] sm:$0xff]
    %v2167 = vadd.f32 %v2166, %v1997
    %v2168 = vmul.f32 %v219, %v1851
    %v2169 = vmul.f32 %v221, %v1862
    %v2170 = vadd.f32 %v2168, %v2169
    %v2171 = vmul.f32 %v2170, 1.8
    %v2172 = vadd.f32 %v2171, 0.01
    %v2173 = vmul.f32 %v1858, %v211
    %v2174 = vmul.f32 %v213, %v2167
    %v2175 = vadd.f32 %v2173, %v2174
    %v2176 = vmul.f32 %v2172, %v1862
    %v2177 = vsub.f32 %v2175, %v2176
    %v2178 = vsub.f32 %v2177, %v2172
    %vm2179 = vcmp.gt.f32.partialorder %v2178, 0.0
    %v2180 = vsel %vm2179, 1, 0
    %v2181 = vcvt.s32.f32 %v2180
    %v2182 = vpack.c.bf16 %v2181, %v2181
    %v2183 = vld [vmem:[#allocation23] sm:$0xff]
    %v2184 = vld [vmem:[#allocation23 + $0x8] sm:$0xff]
    %v2185 = vld [vmem:[#allocation23 + $0x10] sm:$0xff]
    %v2186 = vld [vmem:[#allocation23 + $0x18] sm:$0xff]
    %v2187 = vld [vmem:[#allocation23 + $0x20] sm:$0xff]
    %v2188 = vld [vmem:[#allocation23 + $0x28] sm:$0xff]
    %v2189 = vld [vmem:[#allocation23 + $0x30] sm:$0xff]
    %v2190 = vld [vmem:[#allocation23 + $0x38] sm:$0xff]
    %v2191 = vld [vmem:[#allocation23 + $0x40] sm:$0xff]
    %v2192 = vld [vmem:[#allocation23 + $0x48] sm:$0xff]
    %v2193 = vld [vmem:[#allocation23 + $0x50] sm:$0xff]
    %v2194 = vld [vmem:[#allocation23 + $0x58] sm:$0xff]
    %v2195 = vld [vmem:[#allocation23 + $0x60] sm:$0xff]
    %v2196 = vld [vmem:[#allocation23 + $0x68] sm:$0xff]
    %v2197 = vld [vmem:[#allocation23 + $0x70] sm:$0xff]
    %v2198 = vld [vmem:[#allocation23 + $0x78] sm:$0xff]
    %v2215 = vunpack.c.l.b16 %v2183
    %v2216 = vunpack.c.h.b16 %v2183
    %v2217 = vunpack.c.l.b16 %v2184
    %v2218 = vunpack.c.h.b16 %v2184
    %v2219 = vunpack.c.l.b16 %v2185
    %v2220 = vunpack.c.h.b16 %v2185
    %v2221 = vunpack.c.l.b16 %v2186
    %v2222 = vunpack.c.h.b16 %v2186
    %v2223 = vunpack.c.l.b16 %v2187
    %v2224 = vunpack.c.h.b16 %v2187
    %v2225 = vunpack.c.l.b16 %v2188
    %v2226 = vunpack.c.h.b16 %v2188
    %v2227 = vunpack.c.l.b16 %v2189
    %v2228 = vunpack.c.h.b16 %v2189
    %v2229 = vunpack.c.l.b16 %v2190
    %v2230 = vunpack.c.h.b16 %v2190
    %v2231 = vunpack.c.l.b16 %v2191
    %v2232 = vunpack.c.h.b16 %v2191
    %v2233 = vunpack.c.l.b16 %v2192
    %v2234 = vunpack.c.h.b16 %v2192
    %v2235 = vunpack.c.l.b16 %v2193
    %v2236 = vunpack.c.h.b16 %v2193
    %v2237 = vunpack.c.l.b16 %v2194
    %v2238 = vunpack.c.h.b16 %v2194
    %v2239 = vunpack.c.l.b16 %v2195
    %v2240 = vunpack.c.h.b16 %v2195
    %v2241 = vunpack.c.l.b16 %v2196
    %v2242 = vunpack.c.h.b16 %v2196
    %v2243 = vunpack.c.l.b16 %v2197
    %v2244 = vunpack.c.h.b16 %v2197
    %v2245 = vunpack.c.l.b16 %v2198
    %v2246 = vunpack.c.h.b16 %v2198
    %v2247 = vpack.c.b16 %v2217, %v2215
    %v2248 = vpack.c.b16 %v2218, %v2216
    %v2249 = vpack.c.b16 %v2221, %v2219
    %v2250 = vpack.c.b16 %v2222, %v2220
    %v2251 = vpack.c.b16 %v2225, %v2223
    %v2252 = vpack.c.b16 %v2226, %v2224
    %v2253 = vpack.c.b16 %v2229, %v2227
    %v2254 = vpack.c.b16 %v2230, %v2228
    %v2255 = vpack.c.b16 %v2233, %v2231
    %v2256 = vpack.c.b16 %v2234, %v2232
    %v2257 = vpack.c.b16 %v2237, %v2235
    %v2258 = vpack.c.b16 %v2238, %v2236
    %v2259 = vpack.c.b16 %v2241, %v2239
    %v2260 = vpack.c.b16 %v2242, %v2240
    %v2261 = vpack.c.b16 %v2245, %v2243
    %v2262 = vpack.c.b16 %v2246, %v2244
    %2279 = vmatprep.subr.bf16.mxu0 %v2262
    %2280 = vmatpush1.bf16.msra.mxu0 %v2261
    %2281 = vmatprep.subr.bf16.mxu0 %v2260
    %2282 = vmatpush1.bf16.msra.mxu0 %v2259
    %2283 = vmatprep.subr.bf16.mxu0 %v2258
    %2284 = vmatpush1.bf16.msra.mxu0 %v2257
    %2285 = vmatprep.subr.bf16.mxu0 %v2256
    %2286 = vmatpush1.bf16.msra.mxu0 %v2255
    %2287 = vmatprep.subr.bf16.mxu0 %v2254
    %2288 = vmatpush1.bf16.msra.mxu0 %v2253
    %2289 = vmatprep.subr.bf16.mxu0 %v2252
    %2290 = vmatpush1.bf16.msra.mxu0 %v2251
    %2291 = vmatprep.subr.bf16.mxu0 %v2250
    %2292 = vmatpush1.bf16.msra.mxu0 %v2249
    %2293 = vmatprep.subr.bf16.mxu0 %v2248
    %2294 = vmatpush1.bf16.msra.mxu0 %v2247
    %2295 = vmatprep.subr.bf16.mxu0 0
    %2296 = vmatpush2.bf16.msra.mxu0 0
    %2297 = vmatprep.subr.bf16.mxu0 0
    %2298 = vmatpush2.bf16.msra.mxu0 0
    %2299 = vmatprep.subr.bf16.mxu0 0
    %2300 = vmatpush2.bf16.msra.mxu0 0
    %2301 = vmatprep.subr.bf16.mxu0 0
    %2302 = vmatpush2.bf16.msra.mxu0 0
    %2303 = vmatprep.subr.bf16.mxu0 0
    %2304 = vmatpush2.bf16.msra.mxu0 0
    %2305 = vmatprep.subr.bf16.mxu0 0
    %2306 = vmatpush2.bf16.msra.mxu0 0
    %2307 = vmatprep.subr.bf16.mxu0 0
    %2308 = vmatpush2.bf16.msra.mxu0 0
    %2309 = vmatprep.subr.bf16.mxu0 0
    %2310 = vmatpush2.bf16.msra.mxu0 0
    %2311 = vmatprep.mubr.bf16.mxu0 0
    %2312 = vmatmul.mubr.bf16.gmra.mxu0 %v2182
    %v2313 = vpop.f32.mrf.mxu0
    %v2314 = vadd.f32 0.0, %v2313
    %v2315 = vpop.f32.mrf.mxu0
    %v2316 = vadd.f32 0.0, %v2315
    %v2317 = vpop.f32.mrf.mxu0
    %v2318 = vpop.f32.mrf.mxu0
    %2319 = vdwg.mxu0
    %v2320 = vadd.f32 %v2314, %v2151
    %v2321 = vadd.f32 %v2320, %v197
    %v2322 = vmul.f32 %v235, %v2005
    %v2323 = vmul.f32 %v237, %v2016
    %v2324 = vadd.f32 %v2322, %v2323
    %v2325 = vmul.f32 %v2324, 1.8
    %v2326 = vadd.f32 %v2325, 0.01
    %v2327 = vmul.f32 %v2012, %v227
    %v2328 = vmul.f32 %v229, %v2321
    %v2329 = vadd.f32 %v2327, %v2328
    %v2330 = vmul.f32 %v2326, %v2016
    %v2331 = vsub.f32 %v2329, %v2330
    %v2332 = vsub.f32 %v2331, %v2326
    %vm2333 = vcmp.gt.f32.partialorder %v2332, 0.0
    %v2334 = vsel %vm2333, 1, 0
    %v2335 = vcvt.s32.f32 %v2334
    %v2336 = vpack.c.bf16 %v2335, %v2335
    %v2337 = vld [vmem:[#allocation25] sm:$0xff]
    %v2338 = vld [vmem:[#allocation25 + $0x8] sm:$0xff]
    %v2339 = vld [vmem:[#allocation25 + $0x10] sm:$0xff]
    %v2340 = vld [vmem:[#allocation25 + $0x18] sm:$0xff]
    %v2341 = vld [vmem:[#allocation25 + $0x20] sm:$0xff]
    %v2342 = vld [vmem:[#allocation25 + $0x28] sm:$0xff]
    %v2343 = vld [vmem:[#allocation25 + $0x30] sm:$0xff]
    %v2344 = vld [vmem:[#allocation25 + $0x38] sm:$0xff]
    %v2345 = vld [vmem:[#allocation25 + $0x40] sm:$0xff]
    %v2346 = vld [vmem:[#allocation25 + $0x48] sm:$0xff]
    %v2347 = vld [vmem:[#allocation25 + $0x50] sm:$0xff]
    %v2348 = vld [vmem:[#allocation25 + $0x58] sm:$0xff]
    %v2349 = vld [vmem:[#allocation25 + $0x60] sm:$0xff]
    %v2350 = vld [vmem:[#allocation25 + $0x68] sm:$0xff]
    %v2351 = vld [vmem:[#allocation25 + $0x70] sm:$0xff]
    %v2352 = vld [vmem:[#allocation25 + $0x78] sm:$0xff]
    %v2369 = vunpack.c.l.b16 %v2337
    %v2370 = vunpack.c.h.b16 %v2337
    %v2371 = vunpack.c.l.b16 %v2338
    %v2372 = vunpack.c.h.b16 %v2338
    %v2373 = vunpack.c.l.b16 %v2339
    %v2374 = vunpack.c.h.b16 %v2339
    %v2375 = vunpack.c.l.b16 %v2340
    %v2376 = vunpack.c.h.b16 %v2340
    %v2377 = vunpack.c.l.b16 %v2341
    %v2378 = vunpack.c.h.b16 %v2341
    %v2379 = vunpack.c.l.b16 %v2342
    %v2380 = vunpack.c.h.b16 %v2342
    %v2381 = vunpack.c.l.b16 %v2343
    %v2382 = vunpack.c.h.b16 %v2343
    %v2383 = vunpack.c.l.b16 %v2344
    %v2384 = vunpack.c.h.b16 %v2344
    %v2385 = vunpack.c.l.b16 %v2345
    %v2386 = vunpack.c.h.b16 %v2345
    %v2387 = vunpack.c.l.b16 %v2346
    %v2388 = vunpack.c.h.b16 %v2346
    %v2389 = vunpack.c.l.b16 %v2347
    %v2390 = vunpack.c.h.b16 %v2347
    %v2391 = vunpack.c.l.b16 %v2348
    %v2392 = vunpack.c.h.b16 %v2348
    %v2393 = vunpack.c.l.b16 %v2349
    %v2394 = vunpack.c.h.b16 %v2349
    %v2395 = vunpack.c.l.b16 %v2350
    %v2396 = vunpack.c.h.b16 %v2350
    %v2397 = vunpack.c.l.b16 %v2351
    %v2398 = vunpack.c.h.b16 %v2351
    %v2399 = vunpack.c.l.b16 %v2352
    %v2400 = vunpack.c.h.b16 %v2352
    %v2401 = vpack.c.b16 %v2371, %v2369
    %v2402 = vpack.c.b16 %v2372, %v2370
    %v2403 = vpack.c.b16 %v2375, %v2373
    %v2404 = vpack.c.b16 %v2376, %v2374
    %v2405 = vpack.c.b16 %v2379, %v2377
    %v2406 = vpack.c.b16 %v2380, %v2378
    %v2407 = vpack.c.b16 %v2383, %v2381
    %v2408 = vpack.c.b16 %v2384, %v2382
    %v2409 = vpack.c.b16 %v2387, %v2385
    %v2410 = vpack.c.b16 %v2388, %v2386
    %v2411 = vpack.c.b16 %v2391, %v2389
    %v2412 = vpack.c.b16 %v2392, %v2390
    %v2413 = vpack.c.b16 %v2395, %v2393
    %v2414 = vpack.c.b16 %v2396, %v2394
    %v2415 = vpack.c.b16 %v2399, %v2397
    %v2416 = vpack.c.b16 %v2400, %v2398
    %2433 = vmatprep.subr.bf16.mxu0 %v2416
    %2434 = vmatpush1.bf16.msra.mxu0 %v2415
    %2435 = vmatprep.subr.bf16.mxu0 %v2414
    %2436 = vmatpush1.bf16.msra.mxu0 %v2413
    %2437 = vmatprep.subr.bf16.mxu0 %v2412
    %2438 = vmatpush1.bf16.msra.mxu0 %v2411
    %2439 = vmatprep.subr.bf16.mxu0 %v2410
    %2440 = vmatpush1.bf16.msra.mxu0 %v2409
    %2441 = vmatprep.subr.bf16.mxu0 %v2408
    %2442 = vmatpush1.bf16.msra.mxu0 %v2407
    %2443 = vmatprep.subr.bf16.mxu0 %v2406
    %2444 = vmatpush1.bf16.msra.mxu0 %v2405
    %2445 = vmatprep.subr.bf16.mxu0 %v2404
    %2446 = vmatpush1.bf16.msra.mxu0 %v2403
    %2447 = vmatprep.subr.bf16.mxu0 %v2402
    %2448 = vmatpush1.bf16.msra.mxu0 %v2401
    %2449 = vmatprep.subr.bf16.mxu0 0
    %2450 = vmatpush2.bf16.msra.mxu0 0
    %2451 = vmatprep.subr.bf16.mxu0 0
    %2452 = vmatpush2.bf16.msra.mxu0 0
    %2453 = vmatprep.subr.bf16.mxu0 0
    %2454 = vmatpush2.bf16.msra.mxu0 0
    %2455 = vmatprep.subr.bf16.mxu0 0
    %2456 = vmatpush2.bf16.msra.mxu0 0
    %2457 = vmatprep.subr.bf16.mxu0 0
    %2458 = vmatpush2.bf16.msra.mxu0 0
    %2459 = vmatprep.subr.bf16.mxu0 0
    %2460 = vmatpush2.bf16.msra.mxu0 0
    %2461 = vmatprep.subr.bf16.mxu0 0
    %2462 = vmatpush2.bf16.msra.mxu0 0
    %2463 = vmatprep.subr.bf16.mxu0 0
    %2464 = vmatpush2.bf16.msra.mxu0 0
    %2465 = vmatprep.mubr.bf16.mxu0 0
    %2466 = vmatmul.mubr.bf16.gmra.mxu0 %v2336
    %v2467 = vpop.f32.mrf.mxu0
    %v2468 = vadd.f32 0.0, %v2467
    %v2469 = vpop.f32.mrf.mxu0
    %v2470 = vadd.f32 0.0, %v2469
    %v2471 = vpop.f32.mrf.mxu0
    %v2472 = vpop.f32.mrf.mxu0
    %2473 = vdwg.mxu0
    %v2474 = vadd.f32 %v2468, %v204
    %v2475 = vmul.f32 %v2158, %v243
    %v2476 = vmul.f32 %v245, %v2474
    %v2477 = vadd.f32 %v2475, %v2476
    %s2478 = scalar_lea.vmem [#allocation26], 48
    %2479 = vst [vmem:[%s2478] sm:$0xff] %v2181
    %s2480 = scalar_lea.vmem [#allocation27], 48
    %2481 = vst [vmem:[%s2480] sm:$0xff] %v2177
    %s2482 = scalar_lea.vmem [#allocation29], 48
    %2483 = vst [vmem:[%s2482] sm:$0xff] %v2477
    %s2484 = scalar_lea.vmem [#allocation11], 56
    %v2485 = vld [vmem:[%s2484] sm:$0xff]
    %v2486 = vadd.f32 %v2485, %v2316
    %v2487 = vmul.f32 %v219, %v2170
    %v2488 = vmul.f32 %v221, %v2181
    %v2489 = vadd.f32 %v2487, %v2488
    %v2490 = vmul.f32 %v2489, 1.8
    %v2491 = vadd.f32 %v2490, 0.01
    %v2492 = vmul.f32 %v2177, %v211
    %v2493 = vmul.f32 %v213, %v2486
    %v2494 = vadd.f32 %v2492, %v2493
    %v2495 = vmul.f32 %v2491, %v2181
    %v2496 = vsub.f32 %v2494, %v2495
    %v2497 = vsub.f32 %v2496, %v2491
    %vm2498 = vcmp.gt.f32.partialorder %v2497, 0.0
    %v2499 = vsel %vm2498, 1, 0
    %v2500 = vcvt.s32.f32 %v2499
    %v2501 = vpack.c.bf16 %v2500, %v2500
    %v2502 = vld [vmem:[#allocation23] sm:$0xff]
    %v2503 = vld [vmem:[#allocation23 + $0x8] sm:$0xff]
    %v2504 = vld [vmem:[#allocation23 + $0x10] sm:$0xff]
    %v2505 = vld [vmem:[#allocation23 + $0x18] sm:$0xff]
    %v2506 = vld [vmem:[#allocation23 + $0x20] sm:$0xff]
    %v2507 = vld [vmem:[#allocation23 + $0x28] sm:$0xff]
    %v2508 = vld [vmem:[#allocation23 + $0x30] sm:$0xff]
    %v2509 = vld [vmem:[#allocation23 + $0x38] sm:$0xff]
    %v2510 = vld [vmem:[#allocation23 + $0x40] sm:$0xff]
    %v2511 = vld [vmem:[#allocation23 + $0x48] sm:$0xff]
    %v2512 = vld [vmem:[#allocation23 + $0x50] sm:$0xff]
    %v2513 = vld [vmem:[#allocation23 + $0x58] sm:$0xff]
    %v2514 = vld [vmem:[#allocation23 + $0x60] sm:$0xff]
    %v2515 = vld [vmem:[#allocation23 + $0x68] sm:$0xff]
    %v2516 = vld [vmem:[#allocation23 + $0x70] sm:$0xff]
    %v2517 = vld [vmem:[#allocation23 + $0x78] sm:$0xff]
    %v2534 = vunpack.c.l.b16 %v2502
    %v2535 = vunpack.c.h.b16 %v2502
    %v2536 = vunpack.c.l.b16 %v2503
    %v2537 = vunpack.c.h.b16 %v2503
    %v2538 = vunpack.c.l.b16 %v2504
    %v2539 = vunpack.c.h.b16 %v2504
    %v2540 = vunpack.c.l.b16 %v2505
    %v2541 = vunpack.c.h.b16 %v2505
    %v2542 = vunpack.c.l.b16 %v2506
    %v2543 = vunpack.c.h.b16 %v2506
    %v2544 = vunpack.c.l.b16 %v2507
    %v2545 = vunpack.c.h.b16 %v2507
    %v2546 = vunpack.c.l.b16 %v2508
    %v2547 = vunpack.c.h.b16 %v2508
    %v2548 = vunpack.c.l.b16 %v2509
    %v2549 = vunpack.c.h.b16 %v2509
    %v2550 = vunpack.c.l.b16 %v2510
    %v2551 = vunpack.c.h.b16 %v2510
    %v2552 = vunpack.c.l.b16 %v2511
    %v2553 = vunpack.c.h.b16 %v2511
    %v2554 = vunpack.c.l.b16 %v2512
    %v2555 = vunpack.c.h.b16 %v2512
    %v2556 = vunpack.c.l.b16 %v2513
    %v2557 = vunpack.c.h.b16 %v2513
    %v2558 = vunpack.c.l.b16 %v2514
    %v2559 = vunpack.c.h.b16 %v2514
    %v2560 = vunpack.c.l.b16 %v2515
    %v2561 = vunpack.c.h.b16 %v2515
    %v2562 = vunpack.c.l.b16 %v2516
    %v2563 = vunpack.c.h.b16 %v2516
    %v2564 = vunpack.c.l.b16 %v2517
    %v2565 = vunpack.c.h.b16 %v2517
    %v2566 = vpack.c.b16 %v2536, %v2534
    %v2567 = vpack.c.b16 %v2537, %v2535
    %v2568 = vpack.c.b16 %v2540, %v2538
    %v2569 = vpack.c.b16 %v2541, %v2539
    %v2570 = vpack.c.b16 %v2544, %v2542
    %v2571 = vpack.c.b16 %v2545, %v2543
    %v2572 = vpack.c.b16 %v2548, %v2546
    %v2573 = vpack.c.b16 %v2549, %v2547
    %v2574 = vpack.c.b16 %v2552, %v2550
    %v2575 = vpack.c.b16 %v2553, %v2551
    %v2576 = vpack.c.b16 %v2556, %v2554
    %v2577 = vpack.c.b16 %v2557, %v2555
    %v2578 = vpack.c.b16 %v2560, %v2558
    %v2579 = vpack.c.b16 %v2561, %v2559
    %v2580 = vpack.c.b16 %v2564, %v2562
    %v2581 = vpack.c.b16 %v2565, %v2563
    %2598 = vmatprep.subr.bf16.mxu0 %v2581
    %2599 = vmatpush1.bf16.msra.mxu0 %v2580
    %2600 = vmatprep.subr.bf16.mxu0 %v2579
    %2601 = vmatpush1.bf16.msra.mxu0 %v2578
    %2602 = vmatprep.subr.bf16.mxu0 %v2577
    %2603 = vmatpush1.bf16.msra.mxu0 %v2576
    %2604 = vmatprep.subr.bf16.mxu0 %v2575
    %2605 = vmatpush1.bf16.msra.mxu0 %v2574
    %2606 = vmatprep.subr.bf16.mxu0 %v2573
    %2607 = vmatpush1.bf16.msra.mxu0 %v2572
    %2608 = vmatprep.subr.bf16.mxu0 %v2571
    %2609 = vmatpush1.bf16.msra.mxu0 %v2570
    %2610 = vmatprep.subr.bf16.mxu0 %v2569
    %2611 = vmatpush1.bf16.msra.mxu0 %v2568
    %2612 = vmatprep.subr.bf16.mxu0 %v2567
    %2613 = vmatpush1.bf16.msra.mxu0 %v2566
    %2614 = vmatprep.subr.bf16.mxu0 0
    %2615 = vmatpush2.bf16.msra.mxu0 0
    %2616 = vmatprep.subr.bf16.mxu0 0
    %2617 = vmatpush2.bf16.msra.mxu0 0
    %2618 = vmatprep.subr.bf16.mxu0 0
    %2619 = vmatpush2.bf16.msra.mxu0 0
    %2620 = vmatprep.subr.bf16.mxu0 0
    %2621 = vmatpush2.bf16.msra.mxu0 0
    %2622 = vmatprep.subr.bf16.mxu0 0
    %2623 = vmatpush2.bf16.msra.mxu0 0
    %2624 = vmatprep.subr.bf16.mxu0 0
    %2625 = vmatpush2.bf16.msra.mxu0 0
    %2626 = vmatprep.subr.bf16.mxu0 0
    %2627 = vmatpush2.bf16.msra.mxu0 0
    %2628 = vmatprep.subr.bf16.mxu0 0
    %2629 = vmatpush2.bf16.msra.mxu0 0
    %2630 = vmatprep.mubr.bf16.mxu0 0
    %2631 = vmatmul.mubr.bf16.gmra.mxu0 %v2501
    %v2632 = vpop.f32.mrf.mxu0
    %v2633 = vadd.f32 0.0, %v2632
    %v2634 = vpop.f32.mrf.mxu0
    %v2635 = vadd.f32 0.0, %v2634
    %v2636 = vpop.f32.mrf.mxu0
    %v2637 = vpop.f32.mrf.mxu0
    %2638 = vdwg.mxu0
    %v2639 = vadd.f32 %v2633, %v2470
    %v2640 = vadd.f32 %v2639, %v197
    %v2641 = vmul.f32 %v235, %v2324
    %v2642 = vmul.f32 %v237, %v2335
    %v2643 = vadd.f32 %v2641, %v2642
    %v2644 = vmul.f32 %v2643, 1.8
    %v2645 = vadd.f32 %v2644, 0.01
    %v2646 = vmul.f32 %v2331, %v227
    %v2647 = vmul.f32 %v229, %v2640
    %v2648 = vadd.f32 %v2646, %v2647
    %v2649 = vmul.f32 %v2645, %v2335
    %v2650 = vsub.f32 %v2648, %v2649
    %v2651 = vsub.f32 %v2650, %v2645
    %vm2652 = vcmp.gt.f32.partialorder %v2651, 0.0
    %v2653 = vsel %vm2652, 1, 0
    %v2654 = vcvt.s32.f32 %v2653
    %v2655 = vpack.c.bf16 %v2654, %v2654
    %v2656 = vld [vmem:[#allocation25] sm:$0xff]
    %v2657 = vld [vmem:[#allocation25 + $0x8] sm:$0xff]
    %v2658 = vld [vmem:[#allocation25 + $0x10] sm:$0xff]
    %v2659 = vld [vmem:[#allocation25 + $0x18] sm:$0xff]
    %v2660 = vld [vmem:[#allocation25 + $0x20] sm:$0xff]
    %v2661 = vld [vmem:[#allocation25 + $0x28] sm:$0xff]
    %v2662 = vld [vmem:[#allocation25 + $0x30] sm:$0xff]
    %v2663 = vld [vmem:[#allocation25 + $0x38] sm:$0xff]
    %v2664 = vld [vmem:[#allocation25 + $0x40] sm:$0xff]
    %v2665 = vld [vmem:[#allocation25 + $0x48] sm:$0xff]
    %v2666 = vld [vmem:[#allocation25 + $0x50] sm:$0xff]
    %v2667 = vld [vmem:[#allocation25 + $0x58] sm:$0xff]
    %v2668 = vld [vmem:[#allocation25 + $0x60] sm:$0xff]
    %v2669 = vld [vmem:[#allocation25 + $0x68] sm:$0xff]
    %v2670 = vld [vmem:[#allocation25 + $0x70] sm:$0xff]
    %v2671 = vld [vmem:[#allocation25 + $0x78] sm:$0xff]
    %v2688 = vunpack.c.l.b16 %v2656
    %v2689 = vunpack.c.h.b16 %v2656
    %v2690 = vunpack.c.l.b16 %v2657
    %v2691 = vunpack.c.h.b16 %v2657
    %v2692 = vunpack.c.l.b16 %v2658
    %v2693 = vunpack.c.h.b16 %v2658
    %v2694 = vunpack.c.l.b16 %v2659
    %v2695 = vunpack.c.h.b16 %v2659
    %v2696 = vunpack.c.l.b16 %v2660
    %v2697 = vunpack.c.h.b16 %v2660
    %v2698 = vunpack.c.l.b16 %v2661
    %v2699 = vunpack.c.h.b16 %v2661
    %v2700 = vunpack.c.l.b16 %v2662
    %v2701 = vunpack.c.h.b16 %v2662
    %v2702 = vunpack.c.l.b16 %v2663
    %v2703 = vunpack.c.h.b16 %v2663
    %v2704 = vunpack.c.l.b16 %v2664
    %v2705 = vunpack.c.h.b16 %v2664
    %v2706 = vunpack.c.l.b16 %v2665
    %v2707 = vunpack.c.h.b16 %v2665
    %v2708 = vunpack.c.l.b16 %v2666
    %v2709 = vunpack.c.h.b16 %v2666
    %v2710 = vunpack.c.l.b16 %v2667
    %v2711 = vunpack.c.h.b16 %v2667
    %v2712 = vunpack.c.l.b16 %v2668
    %v2713 = vunpack.c.h.b16 %v2668
    %v2714 = vunpack.c.l.b16 %v2669
    %v2715 = vunpack.c.h.b16 %v2669
    %v2716 = vunpack.c.l.b16 %v2670
    %v2717 = vunpack.c.h.b16 %v2670
    %v2718 = vunpack.c.l.b16 %v2671
    %v2719 = vunpack.c.h.b16 %v2671
    %v2720 = vpack.c.b16 %v2690, %v2688
    %v2721 = vpack.c.b16 %v2691, %v2689
    %v2722 = vpack.c.b16 %v2694, %v2692
    %v2723 = vpack.c.b16 %v2695, %v2693
    %v2724 = vpack.c.b16 %v2698, %v2696
    %v2725 = vpack.c.b16 %v2699, %v2697
    %v2726 = vpack.c.b16 %v2702, %v2700
    %v2727 = vpack.c.b16 %v2703, %v2701
    %v2728 = vpack.c.b16 %v2706, %v2704
    %v2729 = vpack.c.b16 %v2707, %v2705
    %v2730 = vpack.c.b16 %v2710, %v2708
    %v2731 = vpack.c.b16 %v2711, %v2709
    %v2732 = vpack.c.b16 %v2714, %v2712
    %v2733 = vpack.c.b16 %v2715, %v2713
    %v2734 = vpack.c.b16 %v2718, %v2716
    %v2735 = vpack.c.b16 %v2719, %v2717
    %2752 = vmatprep.subr.bf16.mxu0 %v2735
    %2753 = vmatpush1.bf16.msra.mxu0 %v2734
    %2754 = vmatprep.subr.bf16.mxu0 %v2733
    %2755 = vmatpush1.bf16.msra.mxu0 %v2732
    %2756 = vmatprep.subr.bf16.mxu0 %v2731
    %2757 = vmatpush1.bf16.msra.mxu0 %v2730
    %2758 = vmatprep.subr.bf16.mxu0 %v2729
    %2759 = vmatpush1.bf16.msra.mxu0 %v2728
    %2760 = vmatprep.subr.bf16.mxu0 %v2727
    %2761 = vmatpush1.bf16.msra.mxu0 %v2726
    %2762 = vmatprep.subr.bf16.mxu0 %v2725
    %2763 = vmatpush1.bf16.msra.mxu0 %v2724
    %2764 = vmatprep.subr.bf16.mxu0 %v2723
    %2765 = vmatpush1.bf16.msra.mxu0 %v2722
    %2766 = vmatprep.subr.bf16.mxu0 %v2721
    %2767 = vmatpush1.bf16.msra.mxu0 %v2720
    %2768 = vmatprep.subr.bf16.mxu0 0
    %2769 = vmatpush2.bf16.msra.mxu0 0
    %2770 = vmatprep.subr.bf16.mxu0 0
    %2771 = vmatpush2.bf16.msra.mxu0 0
    %2772 = vmatprep.subr.bf16.mxu0 0
    %2773 = vmatpush2.bf16.msra.mxu0 0
    %2774 = vmatprep.subr.bf16.mxu0 0
    %2775 = vmatpush2.bf16.msra.mxu0 0
    %2776 = vmatprep.subr.bf16.mxu0 0
    %2777 = vmatpush2.bf16.msra.mxu0 0
    %2778 = vmatprep.subr.bf16.mxu0 0
    %2779 = vmatpush2.bf16.msra.mxu0 0
    %2780 = vmatprep.subr.bf16.mxu0 0
    %2781 = vmatpush2.bf16.msra.mxu0 0
    %2782 = vmatprep.subr.bf16.mxu0 0
    %2783 = vmatpush2.bf16.msra.mxu0 0
    %2784 = vmatprep.mubr.bf16.mxu0 0
    %2785 = vmatmul.mubr.bf16.gmra.mxu0 %v2655
    %v2786 = vpop.f32.mrf.mxu0
    %v2787 = vadd.f32 0.0, %v2786
    %v2788 = vpop.f32.mrf.mxu0
    %v2789 = vadd.f32 0.0, %v2788
    %v2790 = vpop.f32.mrf.mxu0
    %v2791 = vpop.f32.mrf.mxu0
    %2792 = vdwg.mxu0
    %v2793 = vadd.f32 %v2787, %v204
    %v2794 = vmul.f32 %v2477, %v243
    %v2795 = vmul.f32 %v245, %v2793
    %v2796 = vadd.f32 %v2794, %v2795
    %s2797 = scalar_lea.vmem [#allocation26], 56
    %2798 = vst [vmem:[%s2797] sm:$0xff] %v2500
    %s2799 = scalar_lea.vmem [#allocation27], 56
    %2800 = vst [vmem:[%s2799] sm:$0xff] %v2496
    %s2801 = scalar_lea.vmem [#allocation29], 56
    %2802 = vst [vmem:[%s2801] sm:$0xff] %v2796
    %2803 = vst [vmem:[#allocation2] sm:$0xff] %v2496
    %2804 = vst [vmem:[#allocation3] sm:$0xff] %v2500
    %2805 = vst [vmem:[#allocation4] sm:$0xff] %v2489
    %2806 = vst [vmem:[#allocation5] sm:$0xff] %v2635
    %2807 = vst [vmem:[#allocation6] sm:$0xff] %v2650
    %2808 = vst [vmem:[#allocation7] sm:$0xff] %v2654
    %2809 = vst [vmem:[#allocation8] sm:$0xff] %v2643
    %2810 = vst [vmem:[#allocation9] sm:$0xff] %v2789
    %2811 = vst [vmem:[#allocation10] sm:$0xff] %v2796
    // Predicated region
    $region110: #{tpu_custom_call.1} parent=1 // pred_check
      _
    $region111: #{tpu_custom_call.1} parent=1 // pred_check_branch
      %2813 = sbr.rel (0) target = $region113
    $region112: #{tpu_custom_call.1} parent=1 // pred_region
      %s2815 = ssub.s32 1024, 1024
      %2816 = vsyncadd [#allocation13], %s2815
      %s2817 = sshll.u32 [#allocation26], 4
      %s2818 = int_to_ptr.vmem [resolvable:$true] %s2817
      %2823 = dma.vmem_to_hbm [thread:$0]  %s2818, 1024, %s17, [#allocation13], 128, 128, 8
    $region113: #{tpu_custom_call.1} parent=1 // pred_fallthru
      _
    // Predicated region
    $region114: #{tpu_custom_call.1} parent=1 // pred_check
      _
    $region115: #{tpu_custom_call.1} parent=1 // pred_check_branch
      %2825 = sbr.rel (0) target = $region117
    $region116: #{tpu_custom_call.1} parent=1 // pred_region
      %s2827 = ssub.s32 1024, 1024
      %2828 = vsyncadd [#allocation28], %s2827
      %s2829 = sshll.u32 [#allocation27], 4
      %s2830 = int_to_ptr.vmem [resolvable:$true] %s2829
      %2835 = dma.vmem_to_hbm [thread:$0]  %s2830, 1024, %s18, [#allocation28], 128, 128, 8
    $region117: #{tpu_custom_call.1} parent=1 // pred_fallthru
      _
    // Predicated region
    $region118: #{tpu_custom_call.1} parent=1 // pred_check
      _
    $region119: #{tpu_custom_call.1} parent=1 // pred_check_branch
      %2837 = sbr.rel (0) target = $region121
    $region120: #{tpu_custom_call.1} parent=1 // pred_region
      %s2839 = ssub.s32 1024, 1024
      %2840 = vsyncadd [#allocation28], %s2839
      %s2841 = sshll.u32 [#allocation29], 4
      %s2842 = int_to_ptr.vmem [resolvable:$true] %s2841
      %2847 = dma.vmem_to_hbm [thread:$0]  %s2842, 1024, %s19, [#allocation28], 128, 128, 8
    $region121: #{tpu_custom_call.1} parent=1 // pred_fallthru
      _
    // Predicated region
    $region122: #{tpu_custom_call.1} parent=1 // pred_check
      _
    $region123: #{tpu_custom_call.1} parent=1 // pred_check_branch
      %2849 = sbr.rel (0) target = $region125
    $region124: #{tpu_custom_call.1} parent=1 // pred_region
      %2850 = dma.done [#allocation13], 1024
    $region125: #{tpu_custom_call.1} parent=1 // pred_fallthru
      _
    // Predicated region
    $region126: #{tpu_custom_call.1} parent=1 // pred_check
      _
    $region127: #{tpu_custom_call.1} parent=1 // pred_check_branch
      %2852 = sbr.rel (0) target = $region129
    $region128: #{tpu_custom_call.1} parent=1 // pred_region
      %2853 = dma.done [#allocation28], 1024
    $region129: #{tpu_custom_call.1} parent=1 // pred_fallthru
      _
    // Predicated region
    $region130: #{tpu_custom_call.1} parent=1 // pred_check
      _
    $region131: #{tpu_custom_call.1} parent=1 // pred_check_branch
      %2855 = sbr.rel (0) target = $region133
    $region132: #{tpu_custom_call.1} parent=1 // pred_region
      %2856 = dma.done [#allocation28], 1024
    $region133: #{tpu_custom_call.1} parent=1 // pred_fallthru
      _
    %2857 = vsyncpa [#allocation12], 1
    %2858 = vsyncpa [#allocation15], 1
    %2859 = vsyncpa [#allocation18], 1
    %2860 = vsyncpa [#allocation21], 1
    %2861 = vsyncpa [#allocation24], 1
    %2862 = vsyncpa [#allocation13], 1
    %2863 = vsyncpa [#allocation28], 1

</llo_original>
